<compile_context>
chip_gen: v5e
topology: v5e:2x2
jax: 0.10.0
libtpu: 0.0.40
codegen_flags: <defaults>
</compile_context>

<pallas_src>
import functools

import jax
import jax.numpy as jnp
from jax import lax
from jax.experimental import pallas as pl
from jax.experimental.pallas import tpu as pltpu


def _att_forward_ta_kernel(
        enc_ref,      # (R, E)    R = BT*T flattened encoder rows of this block
        dec_ref,      # (BT, D)   decoder state
        ap_ref,       # (BT, T)   previous attention weights (time on lanes)
        outp_ref,     # (BT, O)   previous decoder outputs
        lens_ref,     # (BT, 1)   int32 valid lengths
        ta_ref,       # (BT, 1)   previous transition-agent probability
        wenc_ref,     # (E, A)
        benc_ref,     # (1, A)
        wdec_ref,     # (D, A)
        wloc_ref,     # (2K+1, A) fused loc_conv + mlp_att weight
        gvecw_ref,    # (1, A)
        gvecb_ref,    # (1, 1)
        wtac_ref,     # (1, E)    mlp_ta weight slice for c
        wtao_ref,     # (1, O)    mlp_ta weight slice for out_prev
        wtad_ref,     # (1, D)    mlp_ta weight slice for dec_z
        bta_ref,      # (1, 1)
        c_ref,        # out (BT, E)
        w_ref,        # out (BT, T)
        ta_out_ref,   # out (BT, 1)
        *, n_taps, scaling):
    f32 = jnp.float32
    BT, T = ap_ref.shape
    R, _ = enc_ref.shape
    K = (n_taps - 1) // 2

    enc = enc_ref[...].astype(f32)            # (R, E)
    dec = dec_ref[...].astype(f32)            # (BT, D)
    ap = ap_ref[...].astype(f32)              # (BT, T)
    outp = outp_ref[...].astype(f32)          # (BT, O)
    lens = lens_ref[...]                      # (BT, 1) int32
    ta = ta_ref[...].astype(f32)              # (BT, 1)

    # ----- constant index helpers (iotas + compares only: no div/rem/reshape)
    r_rb = lax.broadcasted_iota(jnp.int32, (R, BT), 0)
    b_rb = lax.broadcasted_iota(jnp.int32, (R, BT), 1)
    rep = jnp.logical_and(r_rb >= b_rb * T, r_rb < b_rb * T + T).astype(f32)   # (R, BT)
    b_br = lax.broadcasted_iota(jnp.int32, (BT, R), 0)
    r_br = lax.broadcasted_iota(jnp.int32, (BT, R), 1)
    rep_t = jnp.logical_and(r_br >= b_br * T, r_br < b_br * T + T).astype(f32) # (BT, R)
    # m[r] = r mod T (time index of flattened row r), exact small floats
    m_col = jnp.sum(rep * (r_rb - b_rb * T).astype(f32), axis=1, keepdims=True)  # (R, 1)
    t_rt = lax.broadcasted_iota(jnp.int32, (R, T), 1).astype(f32)                # (R, T)
    t_bt = lax.broadcasted_iota(jnp.int32, (BT, T), 1)                           # (BT, T)

    def onehot_time(off):
        # (R, T): 1.0 at column (r mod T)+off when it lies in [0, T), else 0-row.
        return (t_rt == m_col + float(off)).astype(f32)

    # ----- mlp_enc over all BT*T rows in one MXU matmul
    pre = jnp.dot(enc, wenc_ref[...].astype(f32),
                  preferred_element_type=f32) + benc_ref[...].astype(f32)        # (R, A)

    # ----- mlp_dec, broadcast to rows via the one-hot batch selector
    dproj = jnp.dot(dec, wdec_ref[...].astype(f32), preferred_element_type=f32)  # (BT, A)
    dproj_rows = jnp.dot(rep, dproj, preferred_element_type=f32)                 # (R, A)

    # ----- fused location conv + mlp_att: 2K+1 gathered taps * (1, A) rows
    apg = jnp.dot(rep, ap, preferred_element_type=f32)                           # (R, T)
    wloc = wloc_ref[...].astype(f32)                                             # (2K+1, A)
    att_proj = jnp.zeros((R, wloc.shape[1]), f32)
    for k in range(n_taps):
        tap = jnp.sum(apg * onehot_time(k - K), axis=1, keepdims=True)           # (R, 1)
        att_proj = att_proj + tap * wloc[k:k + 1, :]                             # (R, A)

    # ----- energies: gvec as VPU multiply + lane reduce
    z = jnp.tanh(pre + dproj_rows + att_proj)                                    # (R, A)
    e_col = (jnp.sum(z * gvecw_ref[...].astype(f32), axis=1, keepdims=True)
             + gvecb_ref[...].astype(f32))                                       # (R, 1)
    # relayout column -> lane-dense (BT, T) rows via one-hot MXU matmul
    e_rows = jnp.dot(rep_t, e_col * onehot_time(0), preferred_element_type=f32)  # (BT, T)

    # ----- masked, scaled softmax over time (lane reductions)
    e_rows = e_rows * scaling
    e_rows = jnp.where(t_bt >= lens, jnp.float32(-jnp.inf), e_rows)
    e_max = jnp.max(e_rows, axis=1, keepdims=True)
    p = jnp.exp(e_rows - e_max)
    w = p / jnp.sum(p, axis=1, keepdims=True)                                    # (BT, T)

    # ----- forward-attention recursion with transition agent
    tp = lax.broadcasted_iota(jnp.int32, (T, T), 0)
    tt = lax.broadcasted_iota(jnp.int32, (T, T), 1)
    shift_mat = (tt == tp + 1).astype(f32)                                       # (T, T)
    ap_shift = jnp.dot(ap, shift_mat, preferred_element_type=f32)                # ap[b, t-1]
    w = (ta * ap + (1.0 - ta) * ap_shift) * w
    w = jnp.maximum(w, 1e-6)
    w = w / jnp.maximum(jnp.sum(w, axis=1, keepdims=True), 1e-12)

    # ----- context via MXU: c[b, :] = sum_t w[b, t] * enc[b, t, :]
    w_col = jnp.sum(jnp.dot(rep, w, preferred_element_type=f32) * onehot_time(0),
                    axis=1, keepdims=True)                                       # (R, 1)
    c = jnp.dot(rep_t, enc * w_col, preferred_element_type=f32)                  # (BT, E)

    # ----- transition-agent update: sigmoid(mlp_ta([c, out_prev, dec_z]))
    ta_logit = (jnp.sum(c * wtac_ref[...].astype(f32), axis=1, keepdims=True)
                + jnp.sum(outp * wtao_ref[...].astype(f32), axis=1, keepdims=True)
                + jnp.sum(dec * wtad_ref[...].astype(f32), axis=1, keepdims=True)
                + bta_ref[...].astype(f32))                                      # (BT, 1)
    ta_new = jax.nn.sigmoid(ta_logit)

    c_ref[...] = c.astype(c_ref.dtype)
    w_ref[...] = w.astype(w_ref.dtype)
    ta_out_ref[...] = ta_new.astype(ta_out_ref.dtype)


def att_forward_ta(enc_hs_pad, enc_hs_len, dec_z, att_prev, out_prev, params,
                   *, aconv_filts, trans_agent_prob=None, scaling=1.0,
                   block_b=8):
    """Functional AttForwardTA forward. Returns (c, w, new_trans_agent_prob)."""
    dtype = enc_hs_pad.dtype
    B, T, E = enc_hs_pad.shape
    A = params["w_enc"].shape[0]
    D = params["w_dec"].shape[1]
    O = out_prev.shape[1]
    n_taps = 2 * aconv_filts + 1

    if dec_z is None:
        dec_z = jnp.zeros((B, D), dtype)
    else:
        dec_z = jnp.asarray(dec_z, dtype).reshape(B, D)
    if att_prev is None:
        att_prev = jnp.zeros((B, T), dtype).at[:, 0].set(1.0)
    else:
        att_prev = jnp.asarray(att_prev, dtype)
    if trans_agent_prob is None:
        ta_prev = jnp.full((B, 1), 0.5, dtype)
    else:
        ta_prev = jnp.broadcast_to(
            jnp.asarray(trans_agent_prob, dtype).reshape(-1, 1), (B, 1))
    out_prev = jnp.asarray(out_prev, dtype)
    lens = jnp.asarray(enc_hs_len, jnp.int32).reshape(B, 1)

    BT = block_b
    B_p = ((B + BT - 1) // BT) * BT
    pad = B_p - B

    def pad_rows(x, fill=0):
        if pad == 0:
            return x
        return jnp.concatenate(
            [x, jnp.full((pad,) + x.shape[1:], fill, x.dtype)], axis=0)

    enc_p = pad_rows(enc_hs_pad)
    dec_p = pad_rows(dec_z)
    ap_p = pad_rows(att_prev)
    out_p = pad_rows(out_prev)
    ta_p = pad_rows(ta_prev, 0.5)
    lens_p = pad_rows(lens, T)          # full length for padded rows -> no NaN

    enc_flat = enc_p.reshape(B_p * T, E)   # flattened in the wrapper (free)

    f32 = jnp.float32
    w_enc_t = params["w_enc"].T.astype(f32)                           # (E, A)
    b_enc = params["b_enc"].reshape(1, A).astype(f32)
    w_dec_t = params["w_dec"].T.astype(f32)                           # (D, A)
    # fused loc_conv + mlp_att weight: (2K+1, A)
    w_loc = (params["w_conv"].T @ params["w_att"].T).astype(f32)
    gvec_w = params["w_gvec"].reshape(1, A).astype(f32)
    gvec_b = params["b_gvec"].reshape(1, 1).astype(f32)
    w_ta = params["w_ta"].astype(f32)                                 # (1, E+O+D)
    w_ta_c, w_ta_o, w_ta_d = w_ta[:, :E], w_ta[:, E:E + O], w_ta[:, E + O:]
    b_ta = params["b_ta"].reshape(1, 1).astype(f32)

    R = BT * T
    kernel = functools.partial(_att_forward_ta_kernel,
                               n_taps=n_taps, scaling=float(scaling))

    def data_spec(shape):
        return pl.BlockSpec(shape, lambda i: (i, 0))

    def rep_spec(shape):
        return pl.BlockSpec(shape, lambda i: (0, 0))

    c_p, w_p, ta_new_p = pl.pallas_call(
        kernel,
        grid=(B_p // BT,),
        in_specs=[
            data_spec((R, E)),        # enc_flat
            data_spec((BT, D)),       # dec_z
            data_spec((BT, T)),       # att_prev (lane-dense)
            data_spec((BT, O)),       # out_prev
            data_spec((BT, 1)),       # lens
            data_spec((BT, 1)),       # trans_agent_prob
            rep_spec((E, A)),
            rep_spec((1, A)),
            rep_spec((D, A)),
            rep_spec((n_taps, A)),
            rep_spec((1, A)),
            rep_spec((1, 1)),
            rep_spec((1, E)),
            rep_spec((1, O)),
            rep_spec((1, D)),
            rep_spec((1, 1)),
        ],
        out_specs=[
            data_spec((BT, E)),       # context c, lane-dense
            data_spec((BT, T)),       # attention weights, lane-dense
            data_spec((BT, 1)),       # new transition-agent prob
        ],
        out_shape=(
            jax.ShapeDtypeStruct((B_p, E), dtype),
            jax.ShapeDtypeStruct((B_p, T), dtype),
            jax.ShapeDtypeStruct((B_p, 1), dtype),
        ),
        compiler_params=pltpu.CompilerParams(
            dimension_semantics=("parallel",)),
    )(enc_flat, dec_p, ap_p, out_p, lens_p, ta_p,
      w_enc_t, b_enc, w_dec_t, w_loc, gvec_w, gvec_b,
      w_ta_c, w_ta_o, w_ta_d, b_ta)

    return c_p[:B], w_p[:B], ta_new_p[:B]


def att_forward_ta_ref(enc, lens, dec_z, att_prev, out_prev, ta_prev, params,
                       *, aconv_filts, scaling=1.0):
    """Pure-JAX reference mirroring the PyTorch AttForwardTA.forward."""
    B, T, E = enc.shape
    D = params["w_dec"].shape[1]
    if dec_z is None:
        dec_z = jnp.zeros((B, D), enc.dtype)
    else:
        dec_z = jnp.asarray(dec_z, enc.dtype).reshape(B, D)
    if att_prev is None:
        att_prev = jnp.zeros((B, T), enc.dtype).at[:, 0].set(1.0)
    if ta_prev is None:
        ta_prev = jnp.full((B, 1), 0.5, enc.dtype)
    else:
        ta_prev = jnp.broadcast_to(
            jnp.asarray(ta_prev, enc.dtype).reshape(-1, 1), (B, 1))
    K = aconv_filts
    pre = enc @ params["w_enc"].T + params["b_enc"]
    dec_proj = dec_z @ params["w_dec"].T
    ap_pad = jnp.pad(att_prev, ((0, 0), (K, K)))
    taps = jnp.stack([ap_pad[:, k:k + T] for k in range(2 * K + 1)], axis=-1)
    att_conv = taps @ params["w_conv"].T
    att_proj = att_conv @ params["w_att"].T
    e = (jnp.tanh(pre + dec_proj[:, None, :] + att_proj) @ params["w_gvec"].T
         + params["b_gvec"])[..., 0]
    mask = jnp.arange(T)[None, :] >= jnp.asarray(lens).reshape(B, 1)
    e = jnp.where(mask, -jnp.inf, scaling * e)
    w = jax.nn.softmax(e, axis=1)
    ap_shift = jnp.pad(att_prev, ((0, 0), (1, 0)))[:, :-1]
    w = (ta_prev * att_prev + (1.0 - ta_prev) * ap_shift) * w
    w = jnp.maximum(w, 1e-6)
    w = w / jnp.maximum(jnp.sum(w, axis=1, keepdims=True), 1e-12)
    c = jnp.sum(enc * w[..., None], axis=1)
    ta_in = jnp.concatenate([c, out_prev, dec_z], axis=1)
    ta_new = jax.nn.sigmoid(ta_in @ params["w_ta"].T + params["b_ta"])
    return c, w, ta_new


if __name__ == "__main__":
    B, T = 12, 16
    eunits, dunits, att_dim = 32, 32, 32
    aconv_chans, aconv_filts = 4, 2
    odim = 16

    key = jax.random.PRNGKey(0)
    ks = jax.random.split(key, 16)
    s = 0.1
    params = {
        "w_enc": jax.random.normal(ks[0], (att_dim, eunits), jnp.float32) * s,
        "b_enc": jax.random.normal(ks[1], (att_dim,), jnp.float32) * s,
        "w_dec": jax.random.normal(ks[2], (att_dim, dunits), jnp.float32) * s,
        "w_att": jax.random.normal(ks[3], (att_dim, aconv_chans), jnp.float32) * s,
        "w_conv": jax.random.normal(ks[4], (aconv_chans, 2 * aconv_filts + 1),
                                    jnp.float32) * s,
        "w_gvec": jax.random.normal(ks[5], (1, att_dim), jnp.float32) * s,
        "b_gvec": jax.random.normal(ks[6], (1,), jnp.float32) * s,
        "w_ta": jax.random.normal(ks[7], (1, eunits + odim + dunits),
                                  jnp.float32) * s,
        "b_ta": jax.random.normal(ks[8], (1,), jnp.float32) * s,
    }

    enc = jax.random.normal(ks[9], (B, T, eunits), jnp.float32)
    dec_z = jax.random.normal(ks[10], (B, dunits), jnp.float32)
    out_prev = jax.random.normal(ks[11], (B, odim), jnp.float32)
    lens = [16, 11, 7, 16, 13, 9, 16, 5, 12, 16, 8, 14]

    # --- step 1: first decoder step (att_prev=None, trans_agent_prob=0.5) ---
    c1, w1, ta1 = att_forward_ta(enc, lens, dec_z, None, out_prev, params,
                                 aconv_filts=aconv_filts, scaling=1.0)
    jax.block_until_ready((c1, w1, ta1))
    c1_r, w1_r, ta1_r = att_forward_ta_ref(enc, lens, dec_z, None, out_prev,
                                           None, params,
                                           aconv_filts=aconv_filts, scaling=1.0)
    assert c1.shape == (B, eunits) and w1.shape == (B, T) and ta1.shape == (B, 1)
    assert jnp.allclose(c1, c1_r, rtol=1e-4, atol=1e-4), "step-1 context mismatch"
    assert jnp.allclose(w1, w1_r, rtol=1e-4, atol=1e-4), "step-1 attention mismatch"
    assert jnp.allclose(ta1, ta1_r, rtol=1e-4, atol=1e-4), "step-1 trans-agent mismatch"

    # --- step 2: feed previous attention weights / transition prob back in ---
    dec_z2 = jax.random.normal(ks[12], (B, dunits), jnp.float32)
    out_prev2 = jax.random.normal(ks[13], (B, odim), jnp.float32)
    c2, w2, ta2 = att_forward_ta(enc, lens, dec_z2, w1, out_prev2, params,
                                 aconv_filts=aconv_filts,
                                 trans_agent_prob=ta1, scaling=2.0)
    jax.block_until_ready((c2, w2, ta2))
    c2_r, w2_r, ta2_r = att_forward_ta_ref(enc, lens, dec_z2, w1, out_prev2,
                                           ta1, params,
                                           aconv_filts=aconv_filts, scaling=2.0)
    assert jnp.allclose(c2, c2_r, rtol=1e-4, atol=1e-4), "step-2 context mismatch"
    assert jnp.allclose(w2, w2_r, rtol=1e-4, atol=1e-4), "step-2 attention mismatch"
    assert jnp.allclose(ta2, ta2_r, rtol=1e-4, atol=1e-4), "step-2 trans-agent mismatch"

    print("KERNEL_OK")
</pallas_src>

<mosaic_0001>
module attributes {stable_mosaic.version = 11 : i64} {
  func.func @_att_forward_ta_kernel(%arg0: i32, %arg1: memref<128x32xf32, #tpu.memory_space<vmem>>, %arg2: memref<8x32xf32, #tpu.memory_space<vmem>>, %arg3: memref<8x16xf32, #tpu.memory_space<vmem>>, %arg4: memref<8x16xf32, #tpu.memory_space<vmem>>, %arg5: memref<8x1xi32, #tpu.memory_space<vmem>>, %arg6: memref<8x1xf32, #tpu.memory_space<vmem>>, %arg7: memref<32x32xf32, #tpu.memory_space<vmem>>, %arg8: memref<1x32xf32, #tpu.memory_space<vmem>>, %arg9: memref<32x32xf32, #tpu.memory_space<vmem>>, %arg10: memref<5x32xf32, #tpu.memory_space<vmem>>, %arg11: memref<1x32xf32, #tpu.memory_space<vmem>>, %arg12: memref<1x1xf32, #tpu.memory_space<vmem>>, %arg13: memref<1x32xf32, #tpu.memory_space<vmem>>, %arg14: memref<1x16xf32, #tpu.memory_space<vmem>>, %arg15: memref<1x32xf32, #tpu.memory_space<vmem>>, %arg16: memref<1x1xf32, #tpu.memory_space<vmem>>, %arg17: memref<8x32xf32, #tpu.memory_space<vmem>>, %arg18: memref<8x16xf32, #tpu.memory_space<vmem>>, %arg19: memref<8x1xf32, #tpu.memory_space<vmem>>) attributes {dimension_semantics = [#tpu.dimension_semantics<parallel>], iteration_bounds = array<i64: 2>, scalar_prefetch = 0 : i64, scratch_operands = 0 : i64, tpu.core_type = #tpu.core_type<tc>, window_params = [{transform_indices = @transform_0, window_bounds = array<i64: 128, 32>}, {transform_indices = @transform_1, window_bounds = array<i64: 8, 32>}, {transform_indices = @transform_2, window_bounds = array<i64: 8, 16>}, {transform_indices = @transform_3, window_bounds = array<i64: 8, 16>}, {transform_indices = @transform_4, window_bounds = array<i64: 8, 1>}, {transform_indices = @transform_5, window_bounds = array<i64: 8, 1>}, {pipeline_mode = #tpu.pipeline_mode<synchronous>, transform_indices = @transform_6, window_bounds = array<i64: 32, 32>}, {pipeline_mode = #tpu.pipeline_mode<synchronous>, transform_indices = @transform_7, window_bounds = array<i64: 1, 32>}, {pipeline_mode = #tpu.pipeline_mode<synchronous>, transform_indices = @transform_8, window_bounds = array<i64: 32, 32>}, {pipeline_mode = #tpu.pipeline_mode<synchronous>, transform_indices = @transform_9, window_bounds = array<i64: 5, 32>}, {pipeline_mode = #tpu.pipeline_mode<synchronous>, transform_indices = @transform_10, window_bounds = array<i64: 1, 32>}, {pipeline_mode = #tpu.pipeline_mode<synchronous>, transform_indices = @transform_11, window_bounds = array<i64: 1, 1>}, {pipeline_mode = #tpu.pipeline_mode<synchronous>, transform_indices = @transform_12, window_bounds = array<i64: 1, 32>}, {pipeline_mode = #tpu.pipeline_mode<synchronous>, transform_indices = @transform_13, window_bounds = array<i64: 1, 16>}, {pipeline_mode = #tpu.pipeline_mode<synchronous>, transform_indices = @transform_14, window_bounds = array<i64: 1, 32>}, {pipeline_mode = #tpu.pipeline_mode<synchronous>, transform_indices = @transform_15, window_bounds = array<i64: 1, 1>}, {transform_indices = @transform_16, window_bounds = array<i64: 8, 32>}, {transform_indices = @transform_17, window_bounds = array<i64: 8, 16>}, {transform_indices = @transform_18, window_bounds = array<i64: 8, 1>}]} {
    %c0 = arith.constant 0 : index
    %c0_0 = arith.constant 0 : index
    %0 = vector.load %arg1[%c0, %c0_0] : memref<128x32xf32, #tpu.memory_space<vmem>>, vector<128x32xf32>
    %c0_1 = arith.constant 0 : index
    %c0_2 = arith.constant 0 : index
    %1 = vector.load %arg2[%c0_1, %c0_2] : memref<8x32xf32, #tpu.memory_space<vmem>>, vector<8x32xf32>
    %c0_3 = arith.constant 0 : index
    %c0_4 = arith.constant 0 : index
    %2 = vector.load %arg3[%c0_3, %c0_4] : memref<8x16xf32, #tpu.memory_space<vmem>>, vector<8x16xf32>
    %c0_5 = arith.constant 0 : index
    %c0_6 = arith.constant 0 : index
    %3 = vector.load %arg4[%c0_5, %c0_6] : memref<8x16xf32, #tpu.memory_space<vmem>>, vector<8x16xf32>
    %c0_7 = arith.constant 0 : index
    %c0_8 = arith.constant 0 : index
    %4 = vector.load %arg5[%c0_7, %c0_8] : memref<8x1xi32, #tpu.memory_space<vmem>>, vector<8x1xi32>
    %c0_9 = arith.constant 0 : index
    %c0_10 = arith.constant 0 : index
    %5 = vector.load %arg6[%c0_9, %c0_10] : memref<8x1xf32, #tpu.memory_space<vmem>>, vector<8x1xf32>
    %6 = tpu.iota {dimensions = array<i32: 0>} : vector<128x8xi32>
    %7 = tpu.iota {dimensions = array<i32: 1>} : vector<128x8xi32>
    %c16_i32 = arith.constant 16 : i32
    %8 = vector.broadcast %c16_i32 : i32 to vector<128x8xi32>
    %9 = arith.muli %7, %8 : vector<128x8xi32>
    %10 = arith.cmpi sge, %6, %9 : vector<128x8xi32>
    %c16_i32_11 = arith.constant 16 : i32
    %11 = vector.broadcast %c16_i32_11 : i32 to vector<128x8xi32>
    %12 = arith.muli %7, %11 : vector<128x8xi32>
    %c16_i32_12 = arith.constant 16 : i32
    %13 = vector.broadcast %c16_i32_12 : i32 to vector<128x8xi32>
    %14 = arith.addi %12, %13 : vector<128x8xi32>
    %15 = arith.cmpi slt, %6, %14 : vector<128x8xi32>
    %16 = arith.andi %10, %15 : vector<128x8xi1>
    %17 = arith.extui %16 : vector<128x8xi1> to vector<128x8xi32>
    %18 = arith.sitofp %17 : vector<128x8xi32> to vector<128x8xf32>
    %19 = tpu.iota {dimensions = array<i32: 0>} : vector<8x128xi32>
    %20 = tpu.iota {dimensions = array<i32: 1>} : vector<8x128xi32>
    %c16_i32_13 = arith.constant 16 : i32
    %21 = vector.broadcast %c16_i32_13 : i32 to vector<8x128xi32>
    %22 = arith.muli %19, %21 : vector<8x128xi32>
    %23 = arith.cmpi sge, %20, %22 : vector<8x128xi32>
    %c16_i32_14 = arith.constant 16 : i32
    %24 = vector.broadcast %c16_i32_14 : i32 to vector<8x128xi32>
    %25 = arith.muli %19, %24 : vector<8x128xi32>
    %c16_i32_15 = arith.constant 16 : i32
    %26 = vector.broadcast %c16_i32_15 : i32 to vector<8x128xi32>
    %27 = arith.addi %25, %26 : vector<8x128xi32>
    %28 = arith.cmpi slt, %20, %27 : vector<8x128xi32>
    %29 = arith.andi %23, %28 : vector<8x128xi1>
    %30 = arith.extui %29 : vector<8x128xi1> to vector<8x128xi32>
    %31 = arith.sitofp %30 : vector<8x128xi32> to vector<8x128xf32>
    %c16_i32_16 = arith.constant 16 : i32
    %32 = vector.broadcast %c16_i32_16 : i32 to vector<128x8xi32>
    %33 = arith.muli %7, %32 : vector<128x8xi32>
    %34 = arith.subi %6, %33 : vector<128x8xi32>
    %35 = arith.sitofp %34 : vector<128x8xi32> to vector<128x8xf32>
    %36 = arith.mulf %18, %35 : vector<128x8xf32>
    %cst = arith.constant dense<0.000000e+00> : vector<128xf32>
    %37 = vector.multi_reduction <add>, %36, %cst [1] : vector<128x8xf32> to vector<128xf32>
    %38 = vector.shape_cast %37 : vector<128xf32> to vector<128x1xf32>
    %39 = tpu.iota {dimensions = array<i32: 1>} : vector<128x16xi32>
    %40 = arith.sitofp %39 : vector<128x16xi32> to vector<128x16xf32>
    %41 = tpu.iota {dimensions = array<i32: 1>} : vector<8x16xi32>
    %c0_17 = arith.constant 0 : index
    %c0_18 = arith.constant 0 : index
    %42 = vector.load %arg7[%c0_17, %c0_18] : memref<32x32xf32, #tpu.memory_space<vmem>>, vector<32x32xf32>
    %cst_19 = arith.constant dense<0.000000e+00> : vector<128x32xf32>
    %43 = tpu.matmul %0, %42, %cst_19 {dimension_numbers = #tpu.dot_dimension_numbers<[1], [0], [0], [1], [0, 0, 1, 1], [], []>} : vector<128x32xf32>, vector<32x32xf32>, vector<128x32xf32> -> vector<128x32xf32>
    %c0_20 = arith.constant 0 : index
    %c0_21 = arith.constant 0 : index
    %44 = vector.load %arg8[%c0_20, %c0_21] : memref<1x32xf32, #tpu.memory_space<vmem>>, vector<1x32xf32>
    %45 = vector.broadcast %44 : vector<1x32xf32> to vector<128x32xf32>
    %46 = arith.addf %43, %45 : vector<128x32xf32>
    %c0_22 = arith.constant 0 : index
    %c0_23 = arith.constant 0 : index
    %47 = vector.load %arg9[%c0_22, %c0_23] : memref<32x32xf32, #tpu.memory_space<vmem>>, vector<32x32xf32>
    %cst_24 = arith.constant dense<0.000000e+00> : vector<8x32xf32>
    %48 = tpu.matmul %1, %47, %cst_24 {dimension_numbers = #tpu.dot_dimension_numbers<[1], [0], [0], [1], [0, 0, 1, 1], [], []>} : vector<8x32xf32>, vector<32x32xf32>, vector<8x32xf32> -> vector<8x32xf32>
    %cst_25 = arith.constant dense<0.000000e+00> : vector<128x32xf32>
    %49 = tpu.matmul %18, %48, %cst_25 {dimension_numbers = #tpu.dot_dimension_numbers<[1], [0], [0], [1], [0, 0, 1, 1], [], []>} : vector<128x8xf32>, vector<8x32xf32>, vector<128x32xf32> -> vector<128x32xf32>
    %cst_26 = arith.constant dense<0.000000e+00> : vector<128x16xf32>
    %50 = tpu.matmul %18, %2, %cst_26 {dimension_numbers = #tpu.dot_dimension_numbers<[1], [0], [0], [1], [0, 0, 1, 1], [], []>} : vector<128x8xf32>, vector<8x16xf32>, vector<128x16xf32> -> vector<128x16xf32>
    %c0_27 = arith.constant 0 : index
    %c0_28 = arith.constant 0 : index
    %51 = vector.load %arg10[%c0_27, %c0_28] : memref<5x32xf32, #tpu.memory_space<vmem>>, vector<5x32xf32>
    %cst_29 = arith.constant 0.000000e+00 : f32
    %52 = vector.broadcast %cst_29 : f32 to vector<128x32xf32>
    %cst_30 = arith.constant -2.000000e+00 : f32
    %53 = vector.broadcast %cst_30 : f32 to vector<128x1xf32>
    %54 = arith.addf %38, %53 : vector<128x1xf32>
    %55 = vector.broadcast %54 : vector<128x1xf32> to vector<128x16xf32>
    %56 = arith.cmpf oeq, %40, %55 : vector<128x16xf32>
    %57 = arith.extui %56 : vector<128x16xi1> to vector<128x16xi32>
    %58 = arith.sitofp %57 : vector<128x16xi32> to vector<128x16xf32>
    %59 = arith.mulf %50, %58 : vector<128x16xf32>
    %cst_31 = arith.constant dense<0.000000e+00> : vector<128xf32>
    %60 = vector.multi_reduction <add>, %59, %cst_31 [1] : vector<128x16xf32> to vector<128xf32>
    %61 = vector.shape_cast %60 : vector<128xf32> to vector<128x1xf32>
    %62 = vector.extract_strided_slice %51 {offsets = [0, 0], sizes = [1, 32], strides = [1, 1]} : vector<5x32xf32> to vector<1x32xf32>
    %63 = vector.broadcast %61 : vector<128x1xf32> to vector<128x32xf32>
    %64 = vector.broadcast %62 : vector<1x32xf32> to vector<128x32xf32>
    %65 = arith.mulf %63, %64 : vector<128x32xf32>
    %66 = arith.addf %52, %65 : vector<128x32xf32>
    %cst_32 = arith.constant -1.000000e+00 : f32
    %67 = vector.broadcast %cst_32 : f32 to vector<128x1xf32>
    %68 = arith.addf %38, %67 : vector<128x1xf32>
    %69 = vector.broadcast %68 : vector<128x1xf32> to vector<128x16xf32>
    %70 = arith.cmpf oeq, %40, %69 : vector<128x16xf32>
    %71 = arith.extui %70 : vector<128x16xi1> to vector<128x16xi32>
    %72 = arith.sitofp %71 : vector<128x16xi32> to vector<128x16xf32>
    %73 = arith.mulf %50, %72 : vector<128x16xf32>
    %cst_33 = arith.constant dense<0.000000e+00> : vector<128xf32>
    %74 = vector.multi_reduction <add>, %73, %cst_33 [1] : vector<128x16xf32> to vector<128xf32>
    %75 = vector.shape_cast %74 : vector<128xf32> to vector<128x1xf32>
    %76 = vector.extract_strided_slice %51 {offsets = [1, 0], sizes = [1, 32], strides = [1, 1]} : vector<5x32xf32> to vector<1x32xf32>
    %77 = vector.broadcast %75 : vector<128x1xf32> to vector<128x32xf32>
    %78 = vector.broadcast %76 : vector<1x32xf32> to vector<128x32xf32>
    %79 = arith.mulf %77, %78 : vector<128x32xf32>
    %80 = arith.addf %66, %79 : vector<128x32xf32>
    %cst_34 = arith.constant 0.000000e+00 : f32
    %81 = vector.broadcast %cst_34 : f32 to vector<128x1xf32>
    %82 = arith.addf %38, %81 : vector<128x1xf32>
    %83 = vector.broadcast %82 : vector<128x1xf32> to vector<128x16xf32>
    %84 = arith.cmpf oeq, %40, %83 : vector<128x16xf32>
    %85 = arith.extui %84 : vector<128x16xi1> to vector<128x16xi32>
    %86 = arith.sitofp %85 : vector<128x16xi32> to vector<128x16xf32>
    %87 = arith.mulf %50, %86 : vector<128x16xf32>
    %cst_35 = arith.constant dense<0.000000e+00> : vector<128xf32>
    %88 = vector.multi_reduction <add>, %87, %cst_35 [1] : vector<128x16xf32> to vector<128xf32>
    %89 = vector.shape_cast %88 : vector<128xf32> to vector<128x1xf32>
    %90 = vector.extract_strided_slice %51 {offsets = [2, 0], sizes = [1, 32], strides = [1, 1]} : vector<5x32xf32> to vector<1x32xf32>
    %91 = vector.broadcast %89 : vector<128x1xf32> to vector<128x32xf32>
    %92 = vector.broadcast %90 : vector<1x32xf32> to vector<128x32xf32>
    %93 = arith.mulf %91, %92 : vector<128x32xf32>
    %94 = arith.addf %80, %93 : vector<128x32xf32>
    %cst_36 = arith.constant 1.000000e+00 : f32
    %95 = vector.broadcast %cst_36 : f32 to vector<128x1xf32>
    %96 = arith.addf %38, %95 : vector<128x1xf32>
    %97 = vector.broadcast %96 : vector<128x1xf32> to vector<128x16xf32>
    %98 = arith.cmpf oeq, %40, %97 : vector<128x16xf32>
    %99 = arith.extui %98 : vector<128x16xi1> to vector<128x16xi32>
    %100 = arith.sitofp %99 : vector<128x16xi32> to vector<128x16xf32>
    %101 = arith.mulf %50, %100 : vector<128x16xf32>
    %cst_37 = arith.constant dense<0.000000e+00> : vector<128xf32>
    %102 = vector.multi_reduction <add>, %101, %cst_37 [1] : vector<128x16xf32> to vector<128xf32>
    %103 = vector.shape_cast %102 : vector<128xf32> to vector<128x1xf32>
    %104 = vector.extract_strided_slice %51 {offsets = [3, 0], sizes = [1, 32], strides = [1, 1]} : vector<5x32xf32> to vector<1x32xf32>
    %105 = vector.broadcast %103 : vector<128x1xf32> to vector<128x32xf32>
    %106 = vector.broadcast %104 : vector<1x32xf32> to vector<128x32xf32>
    %107 = arith.mulf %105, %106 : vector<128x32xf32>
    %108 = arith.addf %94, %107 : vector<128x32xf32>
    %cst_38 = arith.constant 2.000000e+00 : f32
    %109 = vector.broadcast %cst_38 : f32 to vector<128x1xf32>
    %110 = arith.addf %38, %109 : vector<128x1xf32>
    %111 = vector.broadcast %110 : vector<128x1xf32> to vector<128x16xf32>
    %112 = arith.cmpf oeq, %40, %111 : vector<128x16xf32>
    %113 = arith.extui %112 : vector<128x16xi1> to vector<128x16xi32>
    %114 = arith.sitofp %113 : vector<128x16xi32> to vector<128x16xf32>
    %115 = arith.mulf %50, %114 : vector<128x16xf32>
    %cst_39 = arith.constant dense<0.000000e+00> : vector<128xf32>
    %116 = vector.multi_reduction <add>, %115, %cst_39 [1] : vector<128x16xf32> to vector<128xf32>
    %117 = vector.shape_cast %116 : vector<128xf32> to vector<128x1xf32>
    %118 = vector.extract_strided_slice %51 {offsets = [4, 0], sizes = [1, 32], strides = [1, 1]} : vector<5x32xf32> to vector<1x32xf32>
    %119 = vector.broadcast %117 : vector<128x1xf32> to vector<128x32xf32>
    %120 = vector.broadcast %118 : vector<1x32xf32> to vector<128x32xf32>
    %121 = arith.mulf %119, %120 : vector<128x32xf32>
    %122 = arith.addf %108, %121 : vector<128x32xf32>
    %123 = arith.addf %46, %49 : vector<128x32xf32>
    %124 = arith.addf %123, %122 : vector<128x32xf32>
    %125 = math.tanh %124 : vector<128x32xf32>
    %c0_40 = arith.constant 0 : index
    %c0_41 = arith.constant 0 : index
    %126 = vector.load %arg11[%c0_40, %c0_41] : memref<1x32xf32, #tpu.memory_space<vmem>>, vector<1x32xf32>
    %127 = vector.broadcast %126 : vector<1x32xf32> to vector<128x32xf32>
    %128 = arith.mulf %125, %127 : vector<128x32xf32>
    %cst_42 = arith.constant dense<0.000000e+00> : vector<128xf32>
    %129 = vector.multi_reduction <add>, %128, %cst_42 [1] : vector<128x32xf32> to vector<128xf32>
    %130 = vector.shape_cast %129 : vector<128xf32> to vector<128x1xf32>
    %c0_43 = arith.constant 0 : index
    %c0_44 = arith.constant 0 : index
    %131 = vector.load %arg12[%c0_43, %c0_44] : memref<1x1xf32, #tpu.memory_space<vmem>>, vector<1x1xf32>
    %132 = vector.broadcast %131 : vector<1x1xf32> to vector<128x1xf32>
    %133 = arith.addf %130, %132 : vector<128x1xf32>
    %cst_45 = arith.constant 0.000000e+00 : f32
    %134 = vector.broadcast %cst_45 : f32 to vector<128x1xf32>
    %135 = arith.addf %38, %134 : vector<128x1xf32>
    %136 = vector.broadcast %135 : vector<128x1xf32> to vector<128x16xf32>
    %137 = arith.cmpf oeq, %40, %136 : vector<128x16xf32>
    %138 = arith.extui %137 : vector<128x16xi1> to vector<128x16xi32>
    %139 = arith.sitofp %138 : vector<128x16xi32> to vector<128x16xf32>
    %140 = vector.broadcast %133 : vector<128x1xf32> to vector<128x16xf32>
    %141 = arith.mulf %140, %139 : vector<128x16xf32>
    %cst_46 = arith.constant dense<0.000000e+00> : vector<8x16xf32>
    %142 = tpu.matmul %31, %141, %cst_46 {dimension_numbers = #tpu.dot_dimension_numbers<[1], [0], [0], [1], [0, 0, 1, 1], [], []>} : vector<8x128xf32>, vector<128x16xf32>, vector<8x16xf32> -> vector<8x16xf32>
    %cst_47 = arith.constant 1.000000e+00 : f32
    %143 = vector.broadcast %cst_47 : f32 to vector<8x16xf32>
    %144 = arith.mulf %142, %143 : vector<8x16xf32>
    %145 = vector.broadcast %4 : vector<8x1xi32> to vector<8x16xi32>
    %146 = arith.cmpi sge, %41, %145 : vector<8x16xi32>
    %cst_48 = arith.constant 0xFF800000 : f32
    %147 = vector.broadcast %cst_48 : f32 to vector<8x16xf32>
    %148 = arith.select %146, %147, %144 : vector<8x16xi1>, vector<8x16xf32>
    %cst_49 = arith.constant dense<0xFF800000> : vector<8xf32>
    %149 = vector.multi_reduction <maximumf>, %148, %cst_49 [1] : vector<8x16xf32> to vector<8xf32>
    %150 = vector.shape_cast %149 : vector<8xf32> to vector<8x1xf32>
    %151 = vector.broadcast %150 : vector<8x1xf32> to vector<8x16xf32>
    %152 = arith.subf %148, %151 : vector<8x16xf32>
    %153 = math.exp %152 : vector<8x16xf32>
    %cst_50 = arith.constant dense<0.000000e+00> : vector<8xf32>
    %154 = vector.multi_reduction <add>, %153, %cst_50 [1] : vector<8x16xf32> to vector<8xf32>
    %155 = vector.shape_cast %154 : vector<8xf32> to vector<8x1xf32>
    %156 = vector.broadcast %155 : vector<8x1xf32> to vector<8x16xf32>
    %157 = arith.divf %153, %156 : vector<8x16xf32>
    %158 = tpu.iota {dimensions = array<i32: 0>} : vector<16x16xi32>
    %159 = tpu.iota {dimensions = array<i32: 1>} : vector<16x16xi32>
    %c1_i32 = arith.constant 1 : i32
    %160 = vector.broadcast %c1_i32 : i32 to vector<16x16xi32>
    %161 = arith.addi %158, %160 : vector<16x16xi32>
    %162 = arith.cmpi eq, %159, %161 : vector<16x16xi32>
    %163 = arith.extui %162 : vector<16x16xi1> to vector<16x16xi32>
    %164 = arith.sitofp %163 : vector<16x16xi32> to vector<16x16xf32>
    %cst_51 = arith.constant dense<0.000000e+00> : vector<8x16xf32>
    %165 = tpu.matmul %2, %164, %cst_51 {dimension_numbers = #tpu.dot_dimension_numbers<[1], [0], [0], [1], [0, 0, 1, 1], [], []>} : vector<8x16xf32>, vector<16x16xf32>, vector<8x16xf32> -> vector<8x16xf32>
    %166 = vector.broadcast %5 : vector<8x1xf32> to vector<8x16xf32>
    %167 = arith.mulf %166, %2 : vector<8x16xf32>
    %cst_52 = arith.constant 1.000000e+00 : f32
    %168 = vector.broadcast %cst_52 : f32 to vector<8x1xf32>
    %169 = arith.subf %168, %5 : vector<8x1xf32>
    %170 = vector.broadcast %169 : vector<8x1xf32> to vector<8x16xf32>
    %171 = arith.mulf %170, %165 : vector<8x16xf32>
    %172 = arith.addf %167, %171 : vector<8x16xf32>
    %173 = arith.mulf %172, %157 : vector<8x16xf32>
    %cst_53 = arith.constant 9.99999997E-7 : f32
    %174 = vector.broadcast %cst_53 : f32 to vector<8x16xf32>
    %175 = arith.maximumf %173, %174 : vector<8x16xf32>
    %cst_54 = arith.constant dense<0.000000e+00> : vector<8xf32>
    %176 = vector.multi_reduction <add>, %175, %cst_54 [1] : vector<8x16xf32> to vector<8xf32>
    %177 = vector.shape_cast %176 : vector<8xf32> to vector<8x1xf32>
    %cst_55 = arith.constant 9.99999996E-13 : f32
    %178 = vector.broadcast %cst_55 : f32 to vector<8x1xf32>
    %179 = arith.maximumf %177, %178 : vector<8x1xf32>
    %180 = vector.broadcast %179 : vector<8x1xf32> to vector<8x16xf32>
    %181 = arith.divf %175, %180 : vector<8x16xf32>
    %cst_56 = arith.constant dense<0.000000e+00> : vector<128x16xf32>
    %182 = tpu.matmul %18, %181, %cst_56 {dimension_numbers = #tpu.dot_dimension_numbers<[1], [0], [0], [1], [0, 0, 1, 1], [], []>} : vector<128x8xf32>, vector<8x16xf32>, vector<128x16xf32> -> vector<128x16xf32>
    %cst_57 = arith.constant 0.000000e+00 : f32
    %183 = vector.broadcast %cst_57 : f32 to vector<128x1xf32>
    %184 = arith.addf %38, %183 : vector<128x1xf32>
    %185 = vector.broadcast %184 : vector<128x1xf32> to vector<128x16xf32>
    %186 = arith.cmpf oeq, %40, %185 : vector<128x16xf32>
    %187 = arith.extui %186 : vector<128x16xi1> to vector<128x16xi32>
    %188 = arith.sitofp %187 : vector<128x16xi32> to vector<128x16xf32>
    %189 = arith.mulf %182, %188 : vector<128x16xf32>
    %cst_58 = arith.constant dense<0.000000e+00> : vector<128xf32>
    %190 = vector.multi_reduction <add>, %189, %cst_58 [1] : vector<128x16xf32> to vector<128xf32>
    %191 = vector.shape_cast %190 : vector<128xf32> to vector<128x1xf32>
    %192 = vector.broadcast %191 : vector<128x1xf32> to vector<128x32xf32>
    %193 = arith.mulf %0, %192 : vector<128x32xf32>
    %cst_59 = arith.constant dense<0.000000e+00> : vector<8x32xf32>
    %194 = tpu.matmul %31, %193, %cst_59 {dimension_numbers = #tpu.dot_dimension_numbers<[1], [0], [0], [1], [0, 0, 1, 1], [], []>} : vector<8x128xf32>, vector<128x32xf32>, vector<8x32xf32> -> vector<8x32xf32>
    %c0_60 = arith.constant 0 : index
    %c0_61 = arith.constant 0 : index
    %195 = vector.load %arg13[%c0_60, %c0_61] : memref<1x32xf32, #tpu.memory_space<vmem>>, vector<1x32xf32>
    %196 = vector.broadcast %195 : vector<1x32xf32> to vector<8x32xf32>
    %197 = arith.mulf %194, %196 : vector<8x32xf32>
    %cst_62 = arith.constant dense<0.000000e+00> : vector<8xf32>
    %198 = vector.multi_reduction <add>, %197, %cst_62 [1] : vector<8x32xf32> to vector<8xf32>
    %199 = vector.shape_cast %198 : vector<8xf32> to vector<8x1xf32>
    %c0_63 = arith.constant 0 : index
    %c0_64 = arith.constant 0 : index
    %200 = vector.load %arg14[%c0_63, %c0_64] : memref<1x16xf32, #tpu.memory_space<vmem>>, vector<1x16xf32>
    %201 = vector.broadcast %200 : vector<1x16xf32> to vector<8x16xf32>
    %202 = arith.mulf %3, %201 : vector<8x16xf32>
    %cst_65 = arith.constant dense<0.000000e+00> : vector<8xf32>
    %203 = vector.multi_reduction <add>, %202, %cst_65 [1] : vector<8x16xf32> to vector<8xf32>
    %204 = vector.shape_cast %203 : vector<8xf32> to vector<8x1xf32>
    %205 = arith.addf %199, %204 : vector<8x1xf32>
    %c0_66 = arith.constant 0 : index
    %c0_67 = arith.constant 0 : index
    %206 = vector.load %arg15[%c0_66, %c0_67] : memref<1x32xf32, #tpu.memory_space<vmem>>, vector<1x32xf32>
    %207 = vector.broadcast %206 : vector<1x32xf32> to vector<8x32xf32>
    %208 = arith.mulf %1, %207 : vector<8x32xf32>
    %cst_68 = arith.constant dense<0.000000e+00> : vector<8xf32>
    %209 = vector.multi_reduction <add>, %208, %cst_68 [1] : vector<8x32xf32> to vector<8xf32>
    %210 = vector.shape_cast %209 : vector<8xf32> to vector<8x1xf32>
    %211 = arith.addf %205, %210 : vector<8x1xf32>
    %c0_69 = arith.constant 0 : index
    %c0_70 = arith.constant 0 : index
    %212 = vector.load %arg16[%c0_69, %c0_70] : memref<1x1xf32, #tpu.memory_space<vmem>>, vector<1x1xf32>
    %213 = vector.broadcast %212 : vector<1x1xf32> to vector<8x1xf32>
    %214 = arith.addf %211, %213 : vector<8x1xf32>
    %215 = arith.negf %214 : vector<8x1xf32>
    %216 = math.exp %215 : vector<8x1xf32>
    %cst_71 = arith.constant 1.000000e+00 : f32
    %217 = vector.broadcast %cst_71 : f32 to vector<8x1xf32>
    %218 = arith.addf %217, %216 : vector<8x1xf32>
    %219 = arith.divf %217, %218 : vector<8x1xf32>
    %c0_72 = arith.constant 0 : index
    %c0_73 = arith.constant 0 : index
    %220 = vector.load %arg17[%c0_72, %c0_73] : memref<8x32xf32, #tpu.memory_space<vmem>>, vector<8x32xf32>
    tpu.vector_store %arg17[%c0_72, %c0_73], %194 {strides = array<i32>} : memref<8x32xf32, #tpu.memory_space<vmem>>, vector<8x32xf32>,
    %c0_74 = arith.constant 0 : index
    %c0_75 = arith.constant 0 : index
    %221 = vector.load %arg18[%c0_74, %c0_75] : memref<8x16xf32, #tpu.memory_space<vmem>>, vector<8x16xf32>
    tpu.vector_store %arg18[%c0_74, %c0_75], %181 {strides = array<i32>} : memref<8x16xf32, #tpu.memory_space<vmem>>, vector<8x16xf32>,
    %c0_76 = arith.constant 0 : index
    %c0_77 = arith.constant 0 : index
    %222 = vector.load %arg19[%c0_76, %c0_77] : memref<8x1xf32, #tpu.memory_space<vmem>>, vector<8x1xf32>
    tpu.vector_store %arg19[%c0_76, %c0_77], %219 {strides = array<i32>} : memref<8x1xf32, #tpu.memory_space<vmem>>, vector<8x1xf32>,
    return
  }
  func.func @transform_0(%arg0: i32) -> (i32, i32) {
    %c0_i32 = arith.constant 0 : i32
    %c0_i32_0 = arith.constant 0 : i32
    return %arg0, %c0_i32 : i32, i32
  }
  func.func @transform_1(%arg0: i32) -> (i32, i32) {
    %c0_i32 = arith.constant 0 : i32
    %c0_i32_0 = arith.constant 0 : i32
    return %arg0, %c0_i32 : i32, i32
  }
  func.func @transform_2(%arg0: i32) -> (i32, i32) {
    %c0_i32 = arith.constant 0 : i32
    %c0_i32_0 = arith.constant 0 : i32
    return %arg0, %c0_i32 : i32, i32
  }
  func.func @transform_3(%arg0: i32) -> (i32, i32) {
    %c0_i32 = arith.constant 0 : i32
    %c0_i32_0 = arith.constant 0 : i32
    return %arg0, %c0_i32 : i32, i32
  }
  func.func @transform_4(%arg0: i32) -> (i32, i32) {
    %c0_i32 = arith.constant 0 : i32
    %c0_i32_0 = arith.constant 0 : i32
    return %arg0, %c0_i32 : i32, i32
  }
  func.func @transform_5(%arg0: i32) -> (i32, i32) {
    %c0_i32 = arith.constant 0 : i32
    %c0_i32_0 = arith.constant 0 : i32
    return %arg0, %c0_i32 : i32, i32
  }
  func.func @transform_6(%arg0: i32) -> (i32, i32) {
    %c0_i32 = arith.constant 0 : i32
    %c0_i32_0 = arith.constant 0 : i32
    %c0_i32_1 = arith.constant 0 : i32
    return %c0_i32, %c0_i32_0 : i32, i32
  }
  func.func @transform_7(%arg0: i32) -> (i32, i32) {
    %c0_i32 = arith.constant 0 : i32
    %c0_i32_0 = arith.constant 0 : i32
    %c0_i32_1 = arith.constant 0 : i32
    return %c0_i32, %c0_i32_0 : i32, i32
  }
  func.func @transform_8(%arg0: i32) -> (i32, i32) {
    %c0_i32 = arith.constant 0 : i32
    %c0_i32_0 = arith.constant 0 : i32
    %c0_i32_1 = arith.constant 0 : i32
    return %c0_i32, %c0_i32_0 : i32, i32
  }
  func.func @transform_9(%arg0: i32) -> (i32, i32) {
    %c0_i32 = arith.constant 0 : i32
    %c0_i32_0 = arith.constant 0 : i32
    %c0_i32_1 = arith.constant 0 : i32
    return %c0_i32, %c0_i32_0 : i32, i32
  }
  func.func @transform_10(%arg0: i32) -> (i32, i32) {
    %c0_i32 = arith.constant 0 : i32
    %c0_i32_0 = arith.constant 0 : i32
    %c0_i32_1 = arith.constant 0 : i32
    return %c0_i32, %c0_i32_0 : i32, i32
  }
  func.func @transform_11(%arg0: i32) -> (i32, i32) {
    %c0_i32 = arith.constant 0 : i32
    %c0_i32_0 = arith.constant 0 : i32
    %c0_i32_1 = arith.constant 0 : i32
    return %c0_i32, %c0_i32_0 : i32, i32
  }
  func.func @transform_12(%arg0: i32) -> (i32, i32) {
    %c0_i32 = arith.constant 0 : i32
    %c0_i32_0 = arith.constant 0 : i32
    %c0_i32_1 = arith.constant 0 : i32
    return %c0_i32, %c0_i32_0 : i32, i32
  }
  func.func @transform_13(%arg0: i32) -> (i32, i32) {
    %c0_i32 = arith.constant 0 : i32
    %c0_i32_0 = arith.constant 0 : i32
    %c0_i32_1 = arith.constant 0 : i32
    return %c0_i32, %c0_i32_0 : i32, i32
  }
  func.func @transform_14(%arg0: i32) -> (i32, i32) {
    %c0_i32 = arith.constant 0 : i32
    %c0_i32_0 = arith.constant 0 : i32
    %c0_i32_1 = arith.constant 0 : i32
    return %c0_i32, %c0_i32_0 : i32, i32
  }
  func.func @transform_15(%arg0: i32) -> (i32, i32) {
    %c0_i32 = arith.constant 0 : i32
    %c0_i32_0 = arith.constant 0 : i32
    %c0_i32_1 = arith.constant 0 : i32
    return %c0_i32, %c0_i32_0 : i32, i32
  }
  func.func @transform_16(%arg0: i32) -> (i32, i32) {
    %c0_i32 = arith.constant 0 : i32
    %c0_i32_0 = arith.constant 0 : i32
    return %arg0, %c0_i32 : i32, i32
  }
  func.func @transform_17(%arg0: i32) -> (i32, i32) {
    %c0_i32 = arith.constant 0 : i32
    %c0_i32_0 = arith.constant 0 : i32
    return %arg0, %c0_i32 : i32, i32
  }
  func.func @transform_18(%arg0: i32) -> (i32, i32) {
    %c0_i32 = arith.constant 0 : i32
    %c0_i32_0 = arith.constant 0 : i32
    return %arg0, %c0_i32 : i32, i32
  }
}

</mosaic_0001>

<llo_original>
// kernel: tpu_custom_call.1
$region0: #{tpu_custom_call.1}
  #allocation0 [shape = 'u32[]', space=smem, size = 0x4, offset = 0x4, fixed_abs, tag = 'smem constant byte address 0x4 - core index']
  #allocation1 [shape = 'u32[72,128]{1,0:T(1,128)}', space=vmem, size = 0x9000, scoped, tag = 'internal scratch']
  #allocation2 [shape = 'f32[1,1]{1,0:T(1,128)S(1)}', space=vmem, size = 0x200, scoped, tag = 'scoped memory for tpu_custom_call.1']
  #allocation3 [shape = 'f32[1,1]{1,0:T(1,128)S(1)}', space=vmem, size = 0x200, scoped, tag = 'scoped memory for tpu_custom_call.1']
  %s0 = inlined_call_operand.vmem [shape: f32[256,32], index: 0, kind: input, shape index: {}]
  %s1 = inlined_call_operand.vmem [shape: f32[16,32], index: 1, kind: input, shape index: {}]
  %s2 = inlined_call_operand.vmem [shape: f32[16,16], index: 2, kind: input, shape index: {}]
  %s3 = inlined_call_operand.vmem [shape: f32[16,16], index: 3, kind: input, shape index: {}]
  %s4 = inlined_call_operand.vmem [shape: s32[16,1], index: 4, kind: input, shape index: {}]
  %s5 = inlined_call_operand.vmem [shape: f32[16,1], index: 5, kind: input, shape index: {}]
  %s6 = inlined_call_operand.vmem [shape: f32[32,32], index: 6, kind: input, shape index: {}]
  %s7 = inlined_call_operand.vmem [shape: f32[1,32], index: 7, kind: input, shape index: {}]
  %s8 = inlined_call_operand.vmem [shape: f32[32,32], index: 8, kind: input, shape index: {}]
  %s9 = inlined_call_operand.vmem [shape: f32[5,32], index: 9, kind: input, shape index: {}]
  %s10 = inlined_call_operand.vmem [shape: f32[1,32], index: 10, kind: input, shape index: {}]
  %s11 = inlined_call_operand.<no memory space> [shape: f32[1,1], index: 11, kind: input, shape index: {}]
  %s12 = inlined_call_operand.vmem [shape: f32[1,32], index: 12, kind: input, shape index: {}]
  %s13 = inlined_call_operand.vmem [shape: f32[1,16], index: 13, kind: input, shape index: {}]
  %s14 = inlined_call_operand.vmem [shape: f32[1,32], index: 14, kind: input, shape index: {}]
  %s15 = inlined_call_operand.<no memory space> [shape: f32[1,1], index: 15, kind: input, shape index: {}]
  %s16 = inlined_call_operand.hbm [shape: f32[16,32], index: 16, kind: output, shape index: {0}]
  %s17 = inlined_call_operand.hbm [shape: f32[16,16], index: 17, kind: output, shape index: {1}]
  %s18 = inlined_call_operand.vmem [shape: f32[16,1], index: 18, kind: output, shape index: {2}]
  %19 = xla_tuple %s16, %s17, %s18
  %s20 = sld [smem:[#allocation0]]
  $region113: #{tpu_custom_call.1} parent=0
    _
  %s22 = ssub.s32 1, %s20
  %s23 = scalar_select 0, %s22, %s20
  %v24 = vstv %s11
  %25 = vst [vmem:[#allocation2] sm:$0x1] %v24
  %v26 = vstv %s15
  %27 = vst [vmem:[#allocation3] sm:$0x1] %v26
  $region1: #{tpu_custom_call.1} parent=0
    #allocation4 [shape = 'u8[8192]{0}', space=vmem, size = 0x2000, scoped, tag = 'output window, operand 0']
    #allocation5 [shape = 's32[2]{0}', space=sflag, size = 0x8, scoped, tag = 'scoped memory for tpu_custom_call.1']
    #allocation6 [shape = 'u8[8192]{0}', space=vmem, size = 0x2000, scoped, tag = 'output window, operand 1']
    #allocation7 [shape = 's32[2]{0}', space=sflag, size = 0x8, scoped, tag = 'scoped memory for tpu_custom_call.1']
    %28 = vsyncpa [#allocation5], 0
    %s29 = scalar_lea.sflag [#allocation5], 1
    %30 = vsyncpa %s29, 0
    %31 = vsyncpa [#allocation7], 0
    %s32 = scalar_lea.sflag [#allocation7], 1
    %33 = vsyncpa %s32, 0
    loop: start=0, step=1, limit=4
    $region2: #{tpu_custom_call.1} parent=1 // loop_pre_header
      _
    $region3: #{tpu_custom_call.1} parent=1 // loop_header
      %s35 = sphi 0, %s39
      %p36 = scmp.ge.s32.totalorder %s35, 4
      %s45 = sphi 0, %s47
      %s48 = sphi 0, %s45
      %s49 = sphi 0, %s48
      %s65 = sphi 0, %s49
      %s71 = sphi 0, %s73
      %s74 = sphi 0, %s71
      %s75 = sphi 0, %s74
      %s91 = sphi 0, %s75
      %s97 = sphi 0, %s99
      %s100 = sphi 0, %s97
      %s101 = sphi 0, %s100
      %s117 = sphi 0, %s101
      %s123 = sphi 0, %s125
      %s126 = sphi 0, %s123
      %s127 = sphi 0, %s126
      %s143 = sphi 0, %s127
      %s149 = sphi 0, %s151
      %s152 = sphi 0, %s149
      %s153 = sphi 0, %s152
      %s169 = sphi 0, %s153
      %s175 = sphi 0, %s177
      %s178 = sphi 0, %s175
      %s179 = sphi 0, %s178
      %s195 = sphi 0, %s179
      %s199 = sphi 0, %s199
      %s201 = sphi 0, %s199
      %s202 = sphi 0, %s201
      %s216 = sphi 0, %s202
      %s220 = sphi 0, %s220
      %s222 = sphi 0, %s220
      %s223 = sphi 0, %s222
      %s237 = sphi 0, %s223
      %s241 = sphi 0, %s241
      %s243 = sphi 0, %s241
      %s244 = sphi 0, %s243
      %s258 = sphi 0, %s244
      %s262 = sphi 0, %s262
      %s264 = sphi 0, %s262
      %s265 = sphi 0, %s264
      %s279 = sphi 0, %s265
      %s283 = sphi 0, %s283
      %s285 = sphi 0, %s283
      %s286 = sphi 0, %s285
      %s300 = sphi 0, %s286
      %s304 = sphi 0, %s304
      %s306 = sphi 0, %s304
      %s307 = sphi 0, %s306
      %s321 = sphi 0, %s307
      %s325 = sphi 0, %s325
      %s327 = sphi 0, %s325
      %s328 = sphi 0, %s327
      %s342 = sphi 0, %s328
      %s346 = sphi 0, %s346
      %s348 = sphi 0, %s346
      %s349 = sphi 0, %s348
      %s363 = sphi 0, %s349
      %s367 = sphi 0, %s367
      %s369 = sphi 0, %s367
      %s370 = sphi 0, %s369
      %s384 = sphi 0, %s370
      %s388 = sphi 0, %s388
      %s390 = sphi 0, %s388
      %s391 = sphi 0, %s390
      %s405 = sphi 0, %s391
      %s411 = sphi 0, %s413
      %s414 = sphi 0, %s411
      %s415 = sphi 0, %s414
      %s431 = sphi 0, %s415
      %s437 = sphi 0, %s439
      %s440 = sphi 0, %s437
      %s441 = sphi 0, %s440
      %s457 = sphi 0, %s441
      %s463 = sphi 0, %s465
      %s466 = sphi 0, %s463
      %s467 = sphi 0, %s466
      %s483 = sphi 0, %s467
    $region4: #{tpu_custom_call.1} parent=1 // loop_header_branch
      %38 = sbr.rel (%p36) target = $region8
    $region5: #{tpu_custom_call.1} parent=1 // loop_body
      %s40 = ssub.s32 %s35, 1
      %s41 = ssub.s32 %s35, 2
      %s42 = sadd.s32 %s35, 1
      %s43 = ssub.s32 %s35, %s42
      %p44 = scmp.eq.s32.totalorder %s43, 0
      %s46 = sadd.s32 %s45, 1
      %s47 = scalar_select %p44, %s45, %s46
      %p50 = pneg %p44
      %p51 = scmp.eq.s32.totalorder %s35, 1
      %p52 = por %p50, %p51
      %p53 = scmp.ne.s32.totalorder %s45, %s48
      %p54 = scmp.eq.s32.totalorder %s35, 0
      %p55 = por %p53, %p54
      %p56 = scmp.ne.s32.totalorder %s45, %s48
      %p57 = scmp.eq.s32.totalorder %s40, 1
      %p58 = por %p56, %p57
      %p59 = scmp.ne.s32.totalorder %s48, %s49
      %p60 = scmp.eq.s32.totalorder %s40, 0
      %p61 = por %p59, %p60
      %p62 = scmp.ne.s32.totalorder %s48, %s49
      %p63 = scmp.eq.s32.totalorder %s41, 1
      %p64 = por %p62, %p63
      %p66 = scmp.ne.s32.totalorder %s49, %s65
      %p67 = scmp.eq.s32.totalorder %s41, 0
      %p68 = por %p66, %p67
      %s69 = ssub.s32 %s35, %s42
      %p70 = scmp.eq.s32.totalorder %s69, 0
      %s72 = sadd.s32 %s71, 1
      %s73 = scalar_select %p70, %s71, %s72
      %p76 = pneg %p70
      %p77 = scmp.eq.s32.totalorder %s35, 1
      %p78 = por %p76, %p77
      %p79 = scmp.ne.s32.totalorder %s71, %s74
      %p80 = scmp.eq.s32.totalorder %s35, 0
      %p81 = por %p79, %p80
      %p82 = scmp.ne.s32.totalorder %s71, %s74
      %p83 = scmp.eq.s32.totalorder %s40, 1
      %p84 = por %p82, %p83
      %p85 = scmp.ne.s32.totalorder %s74, %s75
      %p86 = scmp.eq.s32.totalorder %s40, 0
      %p87 = por %p85, %p86
      %p88 = scmp.ne.s32.totalorder %s74, %s75
      %p89 = scmp.eq.s32.totalorder %s41, 1
      %p90 = por %p88, %p89
      %p92 = scmp.ne.s32.totalorder %s75, %s91
      %p93 = scmp.eq.s32.totalorder %s41, 0
      %p94 = por %p92, %p93
      %s95 = ssub.s32 %s35, %s42
      %p96 = scmp.eq.s32.totalorder %s95, 0
      %s98 = sadd.s32 %s97, 1
      %s99 = scalar_select %p96, %s97, %s98
      %p102 = pneg %p96
      %p103 = scmp.eq.s32.totalorder %s35, 1
      %p104 = por %p102, %p103
      %p105 = scmp.ne.s32.totalorder %s97, %s100
      %p106 = scmp.eq.s32.totalorder %s35, 0
      %p107 = por %p105, %p106
      %p108 = scmp.ne.s32.totalorder %s97, %s100
      %p109 = scmp.eq.s32.totalorder %s40, 1
      %p110 = por %p108, %p109
      %p111 = scmp.ne.s32.totalorder %s100, %s101
      %p112 = scmp.eq.s32.totalorder %s40, 0
      %p113 = por %p111, %p112
      %p114 = scmp.ne.s32.totalorder %s100, %s101
      %p115 = scmp.eq.s32.totalorder %s41, 1
      %p116 = por %p114, %p115
      %p118 = scmp.ne.s32.totalorder %s101, %s117
      %p119 = scmp.eq.s32.totalorder %s41, 0
      %p120 = por %p118, %p119
      %s121 = ssub.s32 %s35, %s42
      %p122 = scmp.eq.s32.totalorder %s121, 0
      %s124 = sadd.s32 %s123, 1
      %s125 = scalar_select %p122, %s123, %s124
      %p128 = pneg %p122
      %p129 = scmp.eq.s32.totalorder %s35, 1
      %p130 = por %p128, %p129
      %p131 = scmp.ne.s32.totalorder %s123, %s126
      %p132 = scmp.eq.s32.totalorder %s35, 0
      %p133 = por %p131, %p132
      %p134 = scmp.ne.s32.totalorder %s123, %s126
      %p135 = scmp.eq.s32.totalorder %s40, 1
      %p136 = por %p134, %p135
      %p137 = scmp.ne.s32.totalorder %s126, %s127
      %p138 = scmp.eq.s32.totalorder %s40, 0
      %p139 = por %p137, %p138
      %p140 = scmp.ne.s32.totalorder %s126, %s127
      %p141 = scmp.eq.s32.totalorder %s41, 1
      %p142 = por %p140, %p141
      %p144 = scmp.ne.s32.totalorder %s127, %s143
      %p145 = scmp.eq.s32.totalorder %s41, 0
      %p146 = por %p144, %p145
      %s147 = ssub.s32 %s35, %s42
      %p148 = scmp.eq.s32.totalorder %s147, 0
      %s150 = sadd.s32 %s149, 1
      %s151 = scalar_select %p148, %s149, %s150
      %p154 = pneg %p148
      %p155 = scmp.eq.s32.totalorder %s35, 1
      %p156 = por %p154, %p155
      %p157 = scmp.ne.s32.totalorder %s149, %s152
      %p158 = scmp.eq.s32.totalorder %s35, 0
      %p159 = por %p157, %p158
      %p160 = scmp.ne.s32.totalorder %s149, %s152
      %p161 = scmp.eq.s32.totalorder %s40, 1
      %p162 = por %p160, %p161
      %p163 = scmp.ne.s32.totalorder %s152, %s153
      %p164 = scmp.eq.s32.totalorder %s40, 0
      %p165 = por %p163, %p164
      %p166 = scmp.ne.s32.totalorder %s152, %s153
      %p167 = scmp.eq.s32.totalorder %s41, 1
      %p168 = por %p166, %p167
      %p170 = scmp.ne.s32.totalorder %s153, %s169
      %p171 = scmp.eq.s32.totalorder %s41, 0
      %p172 = por %p170, %p171
      %s173 = ssub.s32 %s35, %s42
      %p174 = scmp.eq.s32.totalorder %s173, 0
      %s176 = sadd.s32 %s175, 1
      %s177 = scalar_select %p174, %s175, %s176
      %p180 = pneg %p174
      %p181 = scmp.eq.s32.totalorder %s35, 1
      %p182 = por %p180, %p181
      %p183 = scmp.ne.s32.totalorder %s175, %s178
      %p184 = scmp.eq.s32.totalorder %s35, 0
      %p185 = por %p183, %p184
      %p186 = scmp.ne.s32.totalorder %s175, %s178
      %p187 = scmp.eq.s32.totalorder %s40, 1
      %p188 = por %p186, %p187
      %p189 = scmp.ne.s32.totalorder %s178, %s179
      %p190 = scmp.eq.s32.totalorder %s40, 0
      %p191 = por %p189, %p190
      %p192 = scmp.ne.s32.totalorder %s178, %s179
      %p193 = scmp.eq.s32.totalorder %s41, 1
      %p194 = por %p192, %p193
      %p196 = scmp.ne.s32.totalorder %s179, %s195
      %p197 = scmp.eq.s32.totalorder %s41, 0
      %p198 = por %p196, %p197
      %s200 = sadd.s32 %s199, 1
      %p203 = scmp.eq.s32.totalorder %s35, 1
      %p204 = scmp.ne.s32.totalorder %s199, %s201
      %p205 = scmp.eq.s32.totalorder %s35, 0
      %p206 = por %p204, %p205
      %p207 = scmp.ne.s32.totalorder %s199, %s201
      %p208 = scmp.eq.s32.totalorder %s40, 1
      %p209 = por %p207, %p208
      %p210 = scmp.ne.s32.totalorder %s201, %s202
      %p211 = scmp.eq.s32.totalorder %s40, 0
      %p212 = por %p210, %p211
      %p213 = scmp.ne.s32.totalorder %s201, %s202
      %p214 = scmp.eq.s32.totalorder %s41, 1
      %p215 = por %p213, %p214
      %p217 = scmp.ne.s32.totalorder %s202, %s216
      %p218 = scmp.eq.s32.totalorder %s41, 0
      %p219 = por %p217, %p218
      %s221 = sadd.s32 %s220, 1
      %p224 = scmp.eq.s32.totalorder %s35, 1
      %p225 = scmp.ne.s32.totalorder %s220, %s222
      %p226 = scmp.eq.s32.totalorder %s35, 0
      %p227 = por %p225, %p226
      %p228 = scmp.ne.s32.totalorder %s220, %s222
      %p229 = scmp.eq.s32.totalorder %s40, 1
      %p230 = por %p228, %p229
      %p231 = scmp.ne.s32.totalorder %s222, %s223
      %p232 = scmp.eq.s32.totalorder %s40, 0
      %p233 = por %p231, %p232
      %p234 = scmp.ne.s32.totalorder %s222, %s223
      %p235 = scmp.eq.s32.totalorder %s41, 1
      %p236 = por %p234, %p235
      %p238 = scmp.ne.s32.totalorder %s223, %s237
      %p239 = scmp.eq.s32.totalorder %s41, 0
      %p240 = por %p238, %p239
      %s242 = sadd.s32 %s241, 1
      %p245 = scmp.eq.s32.totalorder %s35, 1
      %p246 = scmp.ne.s32.totalorder %s241, %s243
      %p247 = scmp.eq.s32.totalorder %s35, 0
      %p248 = por %p246, %p247
      %p249 = scmp.ne.s32.totalorder %s241, %s243
      %p250 = scmp.eq.s32.totalorder %s40, 1
      %p251 = por %p249, %p250
      %p252 = scmp.ne.s32.totalorder %s243, %s244
      %p253 = scmp.eq.s32.totalorder %s40, 0
      %p254 = por %p252, %p253
      %p255 = scmp.ne.s32.totalorder %s243, %s244
      %p256 = scmp.eq.s32.totalorder %s41, 1
      %p257 = por %p255, %p256
      %p259 = scmp.ne.s32.totalorder %s244, %s258
      %p260 = scmp.eq.s32.totalorder %s41, 0
      %p261 = por %p259, %p260
      %s263 = sadd.s32 %s262, 1
      %p266 = scmp.eq.s32.totalorder %s35, 1
      %p267 = scmp.ne.s32.totalorder %s262, %s264
      %p268 = scmp.eq.s32.totalorder %s35, 0
      %p269 = por %p267, %p268
      %p270 = scmp.ne.s32.totalorder %s262, %s264
      %p271 = scmp.eq.s32.totalorder %s40, 1
      %p272 = por %p270, %p271
      %p273 = scmp.ne.s32.totalorder %s264, %s265
      %p274 = scmp.eq.s32.totalorder %s40, 0
      %p275 = por %p273, %p274
      %p276 = scmp.ne.s32.totalorder %s264, %s265
      %p277 = scmp.eq.s32.totalorder %s41, 1
      %p278 = por %p276, %p277
      %p280 = scmp.ne.s32.totalorder %s265, %s279
      %p281 = scmp.eq.s32.totalorder %s41, 0
      %p282 = por %p280, %p281
      %s284 = sadd.s32 %s283, 1
      %p287 = scmp.eq.s32.totalorder %s35, 1
      %p288 = scmp.ne.s32.totalorder %s283, %s285
      %p289 = scmp.eq.s32.totalorder %s35, 0
      %p290 = por %p288, %p289
      %p291 = scmp.ne.s32.totalorder %s283, %s285
      %p292 = scmp.eq.s32.totalorder %s40, 1
      %p293 = por %p291, %p292
      %p294 = scmp.ne.s32.totalorder %s285, %s286
      %p295 = scmp.eq.s32.totalorder %s40, 0
      %p296 = por %p294, %p295
      %p297 = scmp.ne.s32.totalorder %s285, %s286
      %p298 = scmp.eq.s32.totalorder %s41, 1
      %p299 = por %p297, %p298
      %p301 = scmp.ne.s32.totalorder %s286, %s300
      %p302 = scmp.eq.s32.totalorder %s41, 0
      %p303 = por %p301, %p302
      %s305 = sadd.s32 %s304, 1
      %p308 = scmp.eq.s32.totalorder %s35, 1
      %p309 = scmp.ne.s32.totalorder %s304, %s306
      %p310 = scmp.eq.s32.totalorder %s35, 0
      %p311 = por %p309, %p310
      %p312 = scmp.ne.s32.totalorder %s304, %s306
      %p313 = scmp.eq.s32.totalorder %s40, 1
      %p314 = por %p312, %p313
      %p315 = scmp.ne.s32.totalorder %s306, %s307
      %p316 = scmp.eq.s32.totalorder %s40, 0
      %p317 = por %p315, %p316
      %p318 = scmp.ne.s32.totalorder %s306, %s307
      %p319 = scmp.eq.s32.totalorder %s41, 1
      %p320 = por %p318, %p319
      %p322 = scmp.ne.s32.totalorder %s307, %s321
      %p323 = scmp.eq.s32.totalorder %s41, 0
      %p324 = por %p322, %p323
      %s326 = sadd.s32 %s325, 1
      %p329 = scmp.eq.s32.totalorder %s35, 1
      %p330 = scmp.ne.s32.totalorder %s325, %s327
      %p331 = scmp.eq.s32.totalorder %s35, 0
      %p332 = por %p330, %p331
      %p333 = scmp.ne.s32.totalorder %s325, %s327
      %p334 = scmp.eq.s32.totalorder %s40, 1
      %p335 = por %p333, %p334
      %p336 = scmp.ne.s32.totalorder %s327, %s328
      %p337 = scmp.eq.s32.totalorder %s40, 0
      %p338 = por %p336, %p337
      %p339 = scmp.ne.s32.totalorder %s327, %s328
      %p340 = scmp.eq.s32.totalorder %s41, 1
      %p341 = por %p339, %p340
      %p343 = scmp.ne.s32.totalorder %s328, %s342
      %p344 = scmp.eq.s32.totalorder %s41, 0
      %p345 = por %p343, %p344
      %s347 = sadd.s32 %s346, 1
      %p350 = scmp.eq.s32.totalorder %s35, 1
      %p351 = scmp.ne.s32.totalorder %s346, %s348
      %p352 = scmp.eq.s32.totalorder %s35, 0
      %p353 = por %p351, %p352
      %p354 = scmp.ne.s32.totalorder %s346, %s348
      %p355 = scmp.eq.s32.totalorder %s40, 1
      %p356 = por %p354, %p355
      %p357 = scmp.ne.s32.totalorder %s348, %s349
      %p358 = scmp.eq.s32.totalorder %s40, 0
      %p359 = por %p357, %p358
      %p360 = scmp.ne.s32.totalorder %s348, %s349
      %p361 = scmp.eq.s32.totalorder %s41, 1
      %p362 = por %p360, %p361
      %p364 = scmp.ne.s32.totalorder %s349, %s363
      %p365 = scmp.eq.s32.totalorder %s41, 0
      %p366 = por %p364, %p365
      %s368 = sadd.s32 %s367, 1
      %p371 = scmp.eq.s32.totalorder %s35, 1
      %p372 = scmp.ne.s32.totalorder %s367, %s369
      %p373 = scmp.eq.s32.totalorder %s35, 0
      %p374 = por %p372, %p373
      %p375 = scmp.ne.s32.totalorder %s367, %s369
      %p376 = scmp.eq.s32.totalorder %s40, 1
      %p377 = por %p375, %p376
      %p378 = scmp.ne.s32.totalorder %s369, %s370
      %p379 = scmp.eq.s32.totalorder %s40, 0
      %p380 = por %p378, %p379
      %p381 = scmp.ne.s32.totalorder %s369, %s370
      %p382 = scmp.eq.s32.totalorder %s41, 1
      %p383 = por %p381, %p382
      %p385 = scmp.ne.s32.totalorder %s370, %s384
      %p386 = scmp.eq.s32.totalorder %s41, 0
      %p387 = por %p385, %p386
      %s389 = sadd.s32 %s388, 1
      %p392 = scmp.eq.s32.totalorder %s35, 1
      %p393 = scmp.ne.s32.totalorder %s388, %s390
      %p394 = scmp.eq.s32.totalorder %s35, 0
      %p395 = por %p393, %p394
      %p396 = scmp.ne.s32.totalorder %s388, %s390
      %p397 = scmp.eq.s32.totalorder %s40, 1
      %p398 = por %p396, %p397
      %p399 = scmp.ne.s32.totalorder %s390, %s391
      %p400 = scmp.eq.s32.totalorder %s40, 0
      %p401 = por %p399, %p400
      %p402 = scmp.ne.s32.totalorder %s390, %s391
      %p403 = scmp.eq.s32.totalorder %s41, 1
      %p404 = por %p402, %p403
      %p406 = scmp.ne.s32.totalorder %s391, %s405
      %p407 = scmp.eq.s32.totalorder %s41, 0
      %p408 = por %p406, %p407
      %s409 = ssub.s32 %s35, %s42
      %p410 = scmp.eq.s32.totalorder %s409, 0
      %s412 = sadd.s32 %s411, 1
      %s413 = scalar_select %p410, %s411, %s412
      %p416 = pneg %p410
      %p417 = scmp.eq.s32.totalorder %s35, 1
      %p418 = por %p416, %p417
      %p419 = scmp.ne.s32.totalorder %s411, %s414
      %p420 = scmp.eq.s32.totalorder %s35, 0
      %p421 = por %p419, %p420
      %p422 = scmp.ne.s32.totalorder %s411, %s414
      %p423 = scmp.eq.s32.totalorder %s40, 1
      %p424 = por %p422, %p423
      %p425 = scmp.ne.s32.totalorder %s414, %s415
      %p426 = scmp.eq.s32.totalorder %s40, 0
      %p427 = por %p425, %p426
      %p428 = scmp.ne.s32.totalorder %s414, %s415
      %p429 = scmp.eq.s32.totalorder %s41, 1
      %p430 = por %p428, %p429
      %p432 = scmp.ne.s32.totalorder %s415, %s431
      %p433 = scmp.eq.s32.totalorder %s41, 0
      %p434 = por %p432, %p433
      %s435 = ssub.s32 %s35, %s42
      %p436 = scmp.eq.s32.totalorder %s435, 0
      %s438 = sadd.s32 %s437, 1
      %s439 = scalar_select %p436, %s437, %s438
      %p442 = pneg %p436
      %p443 = scmp.eq.s32.totalorder %s35, 1
      %p444 = por %p442, %p443
      %p445 = scmp.ne.s32.totalorder %s437, %s440
      %p446 = scmp.eq.s32.totalorder %s35, 0
      %p447 = por %p445, %p446
      %p448 = scmp.ne.s32.totalorder %s437, %s440
      %p449 = scmp.eq.s32.totalorder %s40, 1
      %p450 = por %p448, %p449
      %p451 = scmp.ne.s32.totalorder %s440, %s441
      %p452 = scmp.eq.s32.totalorder %s40, 0
      %p453 = por %p451, %p452
      %p454 = scmp.ne.s32.totalorder %s440, %s441
      %p455 = scmp.eq.s32.totalorder %s41, 1
      %p456 = por %p454, %p455
      %p458 = scmp.ne.s32.totalorder %s441, %s457
      %p459 = scmp.eq.s32.totalorder %s41, 0
      %p460 = por %p458, %p459
      %s461 = ssub.s32 %s35, %s42
      %p462 = scmp.eq.s32.totalorder %s461, 0
      %s464 = sadd.s32 %s463, 1
      %s465 = scalar_select %p462, %s463, %s464
      %p468 = pneg %p462
      %p469 = scmp.eq.s32.totalorder %s35, 1
      %p470 = por %p468, %p469
      %p471 = scmp.ne.s32.totalorder %s463, %s466
      %p472 = scmp.eq.s32.totalorder %s35, 0
      %p473 = por %p471, %p472
      %p474 = scmp.ne.s32.totalorder %s463, %s466
      %p475 = scmp.eq.s32.totalorder %s40, 1
      %p476 = por %p474, %p475
      %p477 = scmp.ne.s32.totalorder %s466, %s467
      %p478 = scmp.eq.s32.totalorder %s40, 0
      %p479 = por %p477, %p478
      %p480 = scmp.ne.s32.totalorder %s466, %s467
      %p481 = scmp.eq.s32.totalorder %s41, 1
      %p482 = por %p480, %p481
      %p484 = scmp.ne.s32.totalorder %s467, %s483
      %p485 = scmp.eq.s32.totalorder %s41, 0
      %p486 = por %p484, %p485
      %p487 = scmp.le.s32.totalorder 1, %s35
      %p488 = scmp.lt.s32.totalorder %s35, 3
      %p489 = pnand %p487, %p488
      %p490 = pneg %p489
      // Predicated region
      $region9: #{tpu_custom_call.1} parent=5 // pred_check
        _
      $region10: #{tpu_custom_call.1} parent=5 // pred_check_branch
        %492 = sbr.rel (%p489) target = $region12
      $region11: #{tpu_custom_call.1} parent=5 // pred_region
        %s493 = ssub.s32 %s35, 1
        // Predicated region
        $region13: #{tpu_custom_call.1} parent=11 // pred_check
          %p494 = pneg %p212
        $region14: #{tpu_custom_call.1} parent=11 // pred_check_branch
          %496 = sbr.rel (%p494) target = $region16
        $region15: #{tpu_custom_call.1} parent=11 // pred_region
          _
        $region16: #{tpu_custom_call.1} parent=11 // pred_fallthru
          _
        // Predicated region
        $region17: #{tpu_custom_call.1} parent=11 // pred_check
          %p497 = pneg %p233
        $region18: #{tpu_custom_call.1} parent=11 // pred_check_branch
          %499 = sbr.rel (%p497) target = $region20
        $region19: #{tpu_custom_call.1} parent=11 // pred_region
          _
        $region20: #{tpu_custom_call.1} parent=11 // pred_fallthru
          _
        // Predicated region
        $region21: #{tpu_custom_call.1} parent=11 // pred_check
          %p500 = pneg %p254
        $region22: #{tpu_custom_call.1} parent=11 // pred_check_branch
          %502 = sbr.rel (%p500) target = $region24
        $region23: #{tpu_custom_call.1} parent=11 // pred_region
          _
        $region24: #{tpu_custom_call.1} parent=11 // pred_fallthru
          _
        // Predicated region
        $region25: #{tpu_custom_call.1} parent=11 // pred_check
          %p503 = pneg %p275
        $region26: #{tpu_custom_call.1} parent=11 // pred_check_branch
          %505 = sbr.rel (%p503) target = $region28
        $region27: #{tpu_custom_call.1} parent=11 // pred_region
          _
        $region28: #{tpu_custom_call.1} parent=11 // pred_fallthru
          _
        // Predicated region
        $region29: #{tpu_custom_call.1} parent=11 // pred_check
          %p506 = pneg %p296
        $region30: #{tpu_custom_call.1} parent=11 // pred_check_branch
          %508 = sbr.rel (%p506) target = $region32
        $region31: #{tpu_custom_call.1} parent=11 // pred_region
          _
        $region32: #{tpu_custom_call.1} parent=11 // pred_fallthru
          _
        // Predicated region
        $region33: #{tpu_custom_call.1} parent=11 // pred_check
          %p509 = pneg %p317
        $region34: #{tpu_custom_call.1} parent=11 // pred_check_branch
          %511 = sbr.rel (%p509) target = $region36
        $region35: #{tpu_custom_call.1} parent=11 // pred_region
          _
        $region36: #{tpu_custom_call.1} parent=11 // pred_fallthru
          _
        // Predicated region
        $region37: #{tpu_custom_call.1} parent=11 // pred_check
          %p512 = pneg %p338
        $region38: #{tpu_custom_call.1} parent=11 // pred_check_branch
          %514 = sbr.rel (%p512) target = $region40
        $region39: #{tpu_custom_call.1} parent=11 // pred_region
          _
        $region40: #{tpu_custom_call.1} parent=11 // pred_fallthru
          _
        // Predicated region
        $region41: #{tpu_custom_call.1} parent=11 // pred_check
          %p515 = pneg %p359
        $region42: #{tpu_custom_call.1} parent=11 // pred_check_branch
          %517 = sbr.rel (%p515) target = $region44
        $region43: #{tpu_custom_call.1} parent=11 // pred_region
          _
        $region44: #{tpu_custom_call.1} parent=11 // pred_fallthru
          _
        // Predicated region
        $region45: #{tpu_custom_call.1} parent=11 // pred_check
          %p518 = pneg %p380
        $region46: #{tpu_custom_call.1} parent=11 // pred_check_branch
          %520 = sbr.rel (%p518) target = $region48
        $region47: #{tpu_custom_call.1} parent=11 // pred_region
          _
        $region48: #{tpu_custom_call.1} parent=11 // pred_fallthru
          _
        // Predicated region
        $region49: #{tpu_custom_call.1} parent=11 // pred_check
          %p521 = pneg %p401
        $region50: #{tpu_custom_call.1} parent=11 // pred_check_branch
          %523 = sbr.rel (%p521) target = $region52
        $region51: #{tpu_custom_call.1} parent=11 // pred_region
          _
        $region52: #{tpu_custom_call.1} parent=11 // pred_fallthru
          _
      $region12: #{tpu_custom_call.1} parent=5 // pred_fallthru
        _
      %p524 = scmp.lt.s32.totalorder %s35, 2
      // Predicated region
      $region53: #{tpu_custom_call.1} parent=5 // pred_check
        %p525 = pneg %p524
      $region54: #{tpu_custom_call.1} parent=5 // pred_check_branch
        %527 = sbr.rel (%p525) target = $region56
      $region55: #{tpu_custom_call.1} parent=5 // pred_region
        // Predicated region
        $region57: #{tpu_custom_call.1} parent=55 // pred_check
          %p528 = pneg %p55
        $region58: #{tpu_custom_call.1} parent=55 // pred_check_branch
          %530 = sbr.rel (%p528) target = $region60
        $region59: #{tpu_custom_call.1} parent=55 // pred_region
          %s531 = smul.u32 16, %s35
          %p532 = scmp.lt.s32.totalorder %s531, 31
          %s533 = scalar_select %p532, %s531, 31
          %s534 = smul.addr %s533, 8
          %s535 = scalar_lea.vmem %s0, %s534
          %s536 = smul.u32 16, %s35
        $region60: #{tpu_custom_call.1} parent=55 // pred_fallthru
          _
        // Predicated region
        $region61: #{tpu_custom_call.1} parent=55 // pred_check
          %p537 = pneg %p81
        $region62: #{tpu_custom_call.1} parent=55 // pred_check_branch
          %539 = sbr.rel (%p537) target = $region64
        $region63: #{tpu_custom_call.1} parent=55 // pred_region
          %p540 = scmp.lt.s32.totalorder %s35, 1
          %s541 = scalar_select %p540, %s35, 1
          %s542 = smul.addr %s541, 8
          %s543 = scalar_lea.vmem %s1, %s542
        $region64: #{tpu_custom_call.1} parent=55 // pred_fallthru
          _
        // Predicated region
        $region65: #{tpu_custom_call.1} parent=55 // pred_check
          %p544 = pneg %p107
        $region66: #{tpu_custom_call.1} parent=55 // pred_check_branch
          %546 = sbr.rel (%p544) target = $region68
        $region67: #{tpu_custom_call.1} parent=55 // pred_region
          %p547 = scmp.lt.s32.totalorder %s35, 1
          %s548 = scalar_select %p547, %s35, 1
          %s549 = smul.addr %s548, 8
          %s550 = scalar_lea.vmem %s2, %s549
        $region68: #{tpu_custom_call.1} parent=55 // pred_fallthru
          _
        // Predicated region
        $region69: #{tpu_custom_call.1} parent=55 // pred_check
          %p551 = pneg %p133
        $region70: #{tpu_custom_call.1} parent=55 // pred_check_branch
          %553 = sbr.rel (%p551) target = $region72
        $region71: #{tpu_custom_call.1} parent=55 // pred_region
          %p554 = scmp.lt.s32.totalorder %s35, 1
          %s555 = scalar_select %p554, %s35, 1
          %s556 = smul.addr %s555, 8
          %s557 = scalar_lea.vmem %s3, %s556
        $region72: #{tpu_custom_call.1} parent=55 // pred_fallthru
          _
        // Predicated region
        $region73: #{tpu_custom_call.1} parent=55 // pred_check
          %p558 = pneg %p159
        $region74: #{tpu_custom_call.1} parent=55 // pred_check_branch
          %560 = sbr.rel (%p558) target = $region76
        $region75: #{tpu_custom_call.1} parent=55 // pred_region
          %p561 = scmp.lt.s32.totalorder %s35, 1
          %s562 = scalar_select %p561, %s35, 1
          %s563 = smul.addr %s562, 8
          %s564 = scalar_lea.vmem %s4, %s563
        $region76: #{tpu_custom_call.1} parent=55 // pred_fallthru
          _
        // Predicated region
        $region77: #{tpu_custom_call.1} parent=55 // pred_check
          %p565 = pneg %p185
        $region78: #{tpu_custom_call.1} parent=55 // pred_check_branch
          %567 = sbr.rel (%p565) target = $region80
        $region79: #{tpu_custom_call.1} parent=55 // pred_region
          %p568 = scmp.lt.s32.totalorder %s35, 1
          %s569 = scalar_select %p568, %s35, 1
          %s570 = smul.addr %s569, 8
          %s571 = scalar_lea.vmem %s5, %s570
        $region80: #{tpu_custom_call.1} parent=55 // pred_fallthru
          _
      $region56: #{tpu_custom_call.1} parent=5 // pred_fallthru
        _
      %p572 = scmp.le.s32.totalorder 1, %s35
      %p573 = scmp.lt.s32.totalorder %s35, 3
      %p574 = pnand %p572, %p573
      %p575 = pneg %p574
      // Predicated region
      $region81: #{tpu_custom_call.1} parent=5 // pred_check
        _
      $region82: #{tpu_custom_call.1} parent=5 // pred_check_branch
        %577 = sbr.rel (%p574) target = $region84
      $region83: #{tpu_custom_call.1} parent=5 // pred_region
        %s578 = ssub.s32 %s35, 1
        %s579 = smul.u32 16, %s40
        %p580 = scmp.lt.s32.totalorder %s579, 31
        %s581 = scalar_select %p580, %s579, 31
        %s582 = smul.addr %s581, 8
        %s583 = scalar_lea.vmem %s0, %s582
        %p584 = pneg %p61
        %p585 = pneg %p58
        %p586 = scmp.lt.s32.totalorder %s40, 1
        %s587 = scalar_select %p586, %s40, 1
        %s588 = smul.addr %s587, 8
        %s589 = scalar_lea.vmem %s1, %s588
        %p590 = pneg %p87
        %p591 = pneg %p84
        %p592 = scmp.lt.s32.totalorder %s40, 1
        %s593 = scalar_select %p592, %s40, 1
        %s594 = smul.addr %s593, 8
        %s595 = scalar_lea.vmem %s2, %s594
        %p596 = pneg %p113
        %p597 = pneg %p110
        %p598 = scmp.lt.s32.totalorder %s40, 1
        %s599 = scalar_select %p598, %s40, 1
        %s600 = smul.addr %s599, 8
        %s601 = scalar_lea.vmem %s3, %s600
        %p602 = pneg %p139
        %p603 = pneg %p136
        %p604 = scmp.lt.s32.totalorder %s40, 1
        %s605 = scalar_select %p604, %s40, 1
        %s606 = smul.addr %s605, 8
        %s607 = scalar_lea.vmem %s4, %s606
        %p608 = pneg %p165
        %p609 = pneg %p162
        %p610 = scmp.lt.s32.totalorder %s40, 1
        %s611 = scalar_select %p610, %s40, 1
        %s612 = smul.addr %s611, 8
        %s613 = scalar_lea.vmem %s5, %s612
        %p614 = pneg %p191
        %p615 = pneg %p188
        %p616 = pneg %p212
        %p617 = pneg %p209
        %p618 = pneg %p233
        %p619 = pneg %p230
        %p620 = pneg %p254
        %p621 = pneg %p251
        %p622 = pneg %p275
        %p623 = pneg %p272
        %p624 = pneg %p296
        %p625 = pneg %p293
        %p626 = pneg %p317
        %p627 = pneg %p314
        %p628 = pneg %p338
        %p629 = pneg %p335
        %p630 = pneg %p359
        %p631 = pneg %p356
        %p632 = pneg %p380
        %p633 = pneg %p377
        %p634 = pneg %p401
        %p635 = pneg %p398
        %p636 = pneg %p427
        %p637 = pneg %p424
        %s638 = sand.u32 %s414, 1
        %s639 = scalar_lea.sflag [#allocation5], %s638
        %s640 = sand.u32 %s414, 1
        %s641 = smul.addr %s640, 8
        %s642 = scalar_lea.vmem [#allocation4], %s641
        %p643 = pneg %p453
        %p644 = pneg %p450
        %s645 = sand.u32 %s440, 1
        %s646 = scalar_lea.sflag [#allocation7], %s645
        %s647 = sand.u32 %s440, 1
        %s648 = smul.addr %s647, 8
        %s649 = scalar_lea.vmem [#allocation6], %s648
        %p650 = pneg %p479
        %p651 = pneg %p476
        %p652 = scmp.lt.s32.totalorder %s40, 1
        %s653 = scalar_select %p652, %s40, 1
        %s654 = smul.addr %s653, 8
        %s655 = scalar_lea.vmem %s18, %s654
        %s656 = smul.u32 16, %s40
        %p657 = scmp.lt.s32.totalorder %s656, 31
        %s658 = scalar_select %p657, %s656, 31
        %s659 = smul.addr %s658, 8
        %s660 = scalar_lea.vmem %s0, %s659
        %s661 = smul.u32 16, %s40
        %p662 = scmp.lt.s32.totalorder %s40, 1
        %s663 = scalar_select %p662, %s40, 1
        %s664 = smul.addr %s663, 8
        %s665 = scalar_lea.vmem %s1, %s664
        %p666 = scmp.lt.s32.totalorder %s40, 1
        %s667 = scalar_select %p666, %s40, 1
        %s668 = smul.addr %s667, 8
        %s669 = scalar_lea.vmem %s2, %s668
        %p670 = scmp.lt.s32.totalorder %s40, 1
        %s671 = scalar_select %p670, %s40, 1
        %s672 = smul.addr %s671, 8
        %s673 = scalar_lea.vmem %s3, %s672
        %p674 = scmp.lt.s32.totalorder %s40, 1
        %s675 = scalar_select %p674, %s40, 1
        %s676 = smul.addr %s675, 8
        %s677 = scalar_lea.vmem %s4, %s676
        %p678 = scmp.lt.s32.totalorder %s40, 1
        %s679 = scalar_select %p678, %s40, 1
        %s680 = smul.addr %s679, 8
        %s681 = scalar_lea.vmem %s5, %s680
        %p682 = scmp.lt.s32.totalorder %s40, 1
        %s683 = scalar_select %p682, %s40, 1
        %s684 = smul.addr %s683, 8
        %s685 = scalar_lea.vmem %s18, %s684
        %v686 = vld [vmem:[%s660] sm:$0xff]
        %v687 = vld [vmem:[%s660 + $0x8] sm:$0xff]
        %v688 = vld [vmem:[%s660 + $0x10] sm:$0xff]
        %v689 = vld [vmem:[%s660 + $0x18] sm:$0xff]
        %v690 = vld [vmem:[%s660 + $0x20] sm:$0xff]
        %v691 = vld [vmem:[%s660 + $0x28] sm:$0xff]
        %v692 = vld [vmem:[%s660 + $0x30] sm:$0xff]
        %v693 = vld [vmem:[%s660 + $0x38] sm:$0xff]
        %v694 = vld [vmem:[%s660 + $0x40] sm:$0xff]
        %v695 = vld [vmem:[%s660 + $0x48] sm:$0xff]
        %v696 = vld [vmem:[%s660 + $0x50] sm:$0xff]
        %v697 = vld [vmem:[%s660 + $0x58] sm:$0xff]
        %v698 = vld [vmem:[%s660 + $0x60] sm:$0xff]
        %v699 = vld [vmem:[%s660 + $0x68] sm:$0xff]
        %v700 = vld [vmem:[%s660 + $0x70] sm:$0xff]
        %v701 = vld [vmem:[%s660 + $0x78] sm:$0xff]
        %v702 = vld [vmem:[%s665] sm:$0xff]
        %v703 = vld [vmem:[%s669] sm:$0xff]
        %v704 = vld [vmem:[%s673] sm:$0xff]
        %v705 = vld [vmem:[%s677] sm:$0xff]
        %v706 = vld [vmem:[%s681] sm:$0xff]
        %v707 = vlaneseq
        %v708 = vshrl.u32 %v707, 7
        %v709 = vadd.s32 %v708, 8
        %v710 = vadd.s32 %v708, 16
        %v711 = vadd.s32 %v708, 24
        %v712 = vadd.s32 %v708, 32
        %v713 = vadd.s32 %v708, 40
        %v714 = vadd.s32 %v708, 48
        %v715 = vadd.s32 %v708, 56
        %v716 = vadd.s32 %v708, 64
        %v717 = vadd.s32 %v708, 72
        %v718 = vadd.s32 %v708, 80
        %v719 = vadd.s32 %v708, 88
        %v720 = vadd.s32 %v708, 96
        %v721 = vadd.s32 %v708, 104
        %v722 = vadd.s32 %v708, 112
        %v723 = vadd.s32 %v708, 120
        %v724 = vlaneseq
        %v725 = vand.u32 %v724, 127
        %v726 = vmul.u32 %v725, 16
        %vm727 = vcmp.ge.s32.totalorder %v708, %v726
        %vm728 = vcmp.ge.s32.totalorder %v709, %v726
        %vm729 = vcmp.ge.s32.totalorder %v710, %v726
        %vm730 = vcmp.ge.s32.totalorder %v711, %v726
        %vm731 = vcmp.ge.s32.totalorder %v712, %v726
        %vm732 = vcmp.ge.s32.totalorder %v713, %v726
        %vm733 = vcmp.ge.s32.totalorder %v714, %v726
        %vm734 = vcmp.ge.s32.totalorder %v715, %v726
        %vm735 = vcmp.ge.s32.totalorder %v716, %v726
        %vm736 = vcmp.ge.s32.totalorder %v717, %v726
        %vm737 = vcmp.ge.s32.totalorder %v718, %v726
        %vm738 = vcmp.ge.s32.totalorder %v719, %v726
        %vm739 = vcmp.ge.s32.totalorder %v720, %v726
        %vm740 = vcmp.ge.s32.totalorder %v721, %v726
        %vm741 = vcmp.ge.s32.totalorder %v722, %v726
        %vm742 = vcmp.ge.s32.totalorder %v723, %v726
        %v743 = vadd.s32 %v726, 16
        %vm744 = vcmp.lt.s32.totalorder %v708, %v743
        %vm745 = vcmp.lt.s32.totalorder %v709, %v743
        %vm746 = vcmp.lt.s32.totalorder %v710, %v743
        %vm747 = vcmp.lt.s32.totalorder %v711, %v743
        %vm748 = vcmp.lt.s32.totalorder %v712, %v743
        %vm749 = vcmp.lt.s32.totalorder %v713, %v743
        %vm750 = vcmp.lt.s32.totalorder %v714, %v743
        %vm751 = vcmp.lt.s32.totalorder %v715, %v743
        %vm752 = vcmp.lt.s32.totalorder %v716, %v743
        %vm753 = vcmp.lt.s32.totalorder %v717, %v743
        %vm754 = vcmp.lt.s32.totalorder %v718, %v743
        %vm755 = vcmp.lt.s32.totalorder %v719, %v743
        %vm756 = vcmp.lt.s32.totalorder %v720, %v743
        %vm757 = vcmp.lt.s32.totalorder %v721, %v743
        %vm758 = vcmp.lt.s32.totalorder %v722, %v743
        %vm759 = vcmp.lt.s32.totalorder %v723, %v743
        %vm760 = vmand %vm727, %vm744
        %vm761 = vmand %vm728, %vm745
        %vm762 = vmand %vm729, %vm746
        %vm763 = vmand %vm730, %vm747
        %vm764 = vmand %vm731, %vm748
        %vm765 = vmand %vm732, %vm749
        %vm766 = vmand %vm733, %vm750
        %vm767 = vmand %vm734, %vm751
        %vm768 = vmand %vm735, %vm752
        %vm769 = vmand %vm736, %vm753
        %vm770 = vmand %vm737, %vm754
        %vm771 = vmand %vm738, %vm755
        %vm772 = vmand %vm739, %vm756
        %vm773 = vmand %vm740, %vm757
        %vm774 = vmand %vm741, %vm758
        %vm775 = vmand %vm742, %vm759
        %v776 = vsel %vm760, 1, 0
        %v777 = vsel %vm761, 1, 0
        %v778 = vsel %vm762, 1, 0
        %v779 = vsel %vm763, 1, 0
        %v780 = vsel %vm764, 1, 0
        %v781 = vsel %vm765, 1, 0
        %v782 = vsel %vm766, 1, 0
        %v783 = vsel %vm767, 1, 0
        %v784 = vsel %vm768, 1, 0
        %v785 = vsel %vm769, 1, 0
        %v786 = vsel %vm770, 1, 0
        %v787 = vsel %vm771, 1, 0
        %v788 = vsel %vm772, 1, 0
        %v789 = vsel %vm773, 1, 0
        %v790 = vsel %vm774, 1, 0
        %v791 = vsel %vm775, 1, 0
        %v792 = vcvt.s32.f32 %v776
        %v793 = vcvt.s32.f32 %v777
        %v794 = vcvt.s32.f32 %v778
        %v795 = vcvt.s32.f32 %v779
        %v796 = vcvt.s32.f32 %v780
        %v797 = vcvt.s32.f32 %v781
        %v798 = vcvt.s32.f32 %v782
        %v799 = vcvt.s32.f32 %v783
        %v800 = vcvt.s32.f32 %v784
        %v801 = vcvt.s32.f32 %v785
        %v802 = vcvt.s32.f32 %v786
        %v803 = vcvt.s32.f32 %v787
        %v804 = vcvt.s32.f32 %v788
        %v805 = vcvt.s32.f32 %v789
        %v806 = vcvt.s32.f32 %v790
        %v807 = vcvt.s32.f32 %v791
        %v808 = vmul.u32 %v708, 16
        %vm809 = vcmp.ge.s32.totalorder %v725, %v808
        %v810 = vadd.s32 %v808, 16
        %vm811 = vcmp.lt.s32.totalorder %v725, %v810
        %vm812 = vmand %vm809, %vm811
        %v813 = vsel %vm812, 1, 0
        %v814 = vcvt.s32.f32 %v813
        %v815 = vsub.s32 %v708, %v726
        %v816 = vsub.s32 %v709, %v726
        %v817 = vsub.s32 %v710, %v726
        %v818 = vsub.s32 %v711, %v726
        %v819 = vsub.s32 %v712, %v726
        %v820 = vsub.s32 %v713, %v726
        %v821 = vsub.s32 %v714, %v726
        %v822 = vsub.s32 %v715, %v726
        %v823 = vsub.s32 %v716, %v726
        %v824 = vsub.s32 %v717, %v726
        %v825 = vsub.s32 %v718, %v726
        %v826 = vsub.s32 %v719, %v726
        %v827 = vsub.s32 %v720, %v726
        %v828 = vsub.s32 %v721, %v726
        %v829 = vsub.s32 %v722, %v726
        %v830 = vsub.s32 %v723, %v726
        %v831 = vcvt.s32.f32 %v815
        %v832 = vcvt.s32.f32 %v816
        %v833 = vcvt.s32.f32 %v817
        %v834 = vcvt.s32.f32 %v818
        %v835 = vcvt.s32.f32 %v819
        %v836 = vcvt.s32.f32 %v820
        %v837 = vcvt.s32.f32 %v821
        %v838 = vcvt.s32.f32 %v822
        %v839 = vcvt.s32.f32 %v823
        %v840 = vcvt.s32.f32 %v824
        %v841 = vcvt.s32.f32 %v825
        %v842 = vcvt.s32.f32 %v826
        %v843 = vcvt.s32.f32 %v827
        %v844 = vcvt.s32.f32 %v828
        %v845 = vcvt.s32.f32 %v829
        %v846 = vcvt.s32.f32 %v830
        %v847 = vmul.f32 %v792, %v831
        %v848 = vmul.f32 %v793, %v832
        %v849 = vmul.f32 %v794, %v833
        %v850 = vmul.f32 %v795, %v834
        %v851 = vmul.f32 %v796, %v835
        %v852 = vmul.f32 %v797, %v836
        %v853 = vmul.f32 %v798, %v837
        %v854 = vmul.f32 %v799, %v838
        %v855 = vmul.f32 %v800, %v839
        %v856 = vmul.f32 %v801, %v840
        %v857 = vmul.f32 %v802, %v841
        %v858 = vmul.f32 %v803, %v842
        %v859 = vmul.f32 %v804, %v843
        %v860 = vmul.f32 %v805, %v844
        %v861 = vmul.f32 %v806, %v845
        %v862 = vmul.f32 %v807, %v846
        %vm863 = vcmask 64512
        %v864 = vsel %vm863, %v847, 0.0
        %865 = vadd.xlane.f32.xlu0 %v864
        %v866 = vpop.xlane.xlu0 %865
        %v867 = vsel %vm863, %v848, 0.0
        %868 = vadd.xlane.f32.xlu0 %v867
        %v869 = vpop.xlane.xlu0 %868
        %v870 = vsel %vm863, %v849, 0.0
        %871 = vadd.xlane.f32.xlu0 %v870
        %v872 = vpop.xlane.xlu0 %871
        %v873 = vsel %vm863, %v850, 0.0
        %874 = vadd.xlane.f32.xlu0 %v873
        %v875 = vpop.xlane.xlu0 %874
        %v876 = vsel %vm863, %v851, 0.0
        %877 = vadd.xlane.f32.xlu0 %v876
        %v878 = vpop.xlane.xlu0 %877
        %v879 = vsel %vm863, %v852, 0.0
        %880 = vadd.xlane.f32.xlu0 %v879
        %v881 = vpop.xlane.xlu0 %880
        %v882 = vsel %vm863, %v853, 0.0
        %883 = vadd.xlane.f32.xlu0 %v882
        %v884 = vpop.xlane.xlu0 %883
        %v885 = vsel %vm863, %v854, 0.0
        %886 = vadd.xlane.f32.xlu0 %v885
        %v887 = vpop.xlane.xlu0 %886
        %v888 = vsel %vm863, %v855, 0.0
        %889 = vadd.xlane.f32.xlu0 %v888
        %v890 = vpop.xlane.xlu0 %889
        %v891 = vsel %vm863, %v856, 0.0
        %892 = vadd.xlane.f32.xlu0 %v891
        %v893 = vpop.xlane.xlu0 %892
        %v894 = vsel %vm863, %v857, 0.0
        %895 = vadd.xlane.f32.xlu0 %v894
        %v896 = vpop.xlane.xlu0 %895
        %v897 = vsel %vm863, %v858, 0.0
        %898 = vadd.xlane.f32.xlu0 %v897
        %v899 = vpop.xlane.xlu0 %898
        %v900 = vsel %vm863, %v859, 0.0
        %901 = vadd.xlane.f32.xlu0 %v900
        %v902 = vpop.xlane.xlu0 %901
        %v903 = vsel %vm863, %v860, 0.0
        %904 = vadd.xlane.f32.xlu0 %v903
        %v905 = vpop.xlane.xlu0 %904
        %v906 = vsel %vm863, %v861, 0.0
        %907 = vadd.xlane.f32.xlu0 %v906
        %v908 = vpop.xlane.xlu0 %907
        %v909 = vsel %vm863, %v862, 0.0
        %910 = vadd.xlane.f32.xlu0 %v909
        %v911 = vpop.xlane.xlu0 %910
        %v912 = vcvt.s32.f32 %v725
        %v913 = vld [vmem:[%s6] sm:$0xff]
        %v914 = vld [vmem:[%s6 + $0x8] sm:$0xff]
        %v915 = vld [vmem:[%s6 + $0x10] sm:$0xff]
        %v916 = vld [vmem:[%s6 + $0x18] sm:$0xff]
        %v917 = vld [vmem:[%s7] sm:$0x1]
        %v919 = vperm.slane %v917, 0
        %vm921 = vcmask 261120
        %v923 = vsel %vm921, %v686, 0
        %v926 = vsel %vm921, %v687, 0
        %v929 = vsel %vm921, %v688, 0
        %v932 = vsel %vm921, %v689, 0
        %v935 = vsel %vm921, %v690, 0
        %v938 = vsel %vm921, %v691, 0
        %v941 = vsel %vm921, %v692, 0
        %v944 = vsel %vm921, %v693, 0
        %v947 = vsel %vm921, %v694, 0
        %v950 = vsel %vm921, %v695, 0
        %v953 = vsel %vm921, %v696, 0
        %v956 = vsel %vm921, %v697, 0
        %v959 = vsel %vm921, %v698, 0
        %v962 = vsel %vm921, %v699, 0
        %v965 = vsel %vm921, %v700, 0
        %v968 = vsel %vm921, %v701, 0
        %970 = vmatpush.msra.mxu0 0.0
        %971 = vmatpush.msra.mxu0 0.0
        %972 = vmatpush.msra.mxu0 0.0
        %973 = vmatpush.msra.mxu0 0.0
        %974 = vmatpush.msra.mxu0 0.0
        %975 = vmatpush.msra.mxu0 0.0
        %976 = vmatpush.msra.mxu0 0.0
        %977 = vmatpush.msra.mxu0 0.0
        %978 = vmatpush.msra.mxu0 0.0
        %979 = vmatpush.msra.mxu0 0.0
        %980 = vmatpush.msra.mxu0 0.0
        %981 = vmatpush.msra.mxu0 0.0
        %982 = vmatpush.msra.mxu0 %v916
        %983 = vmatpush.msra.mxu0 %v915
        %984 = vmatpush.msra.mxu0 %v914
        %985 = vmatpush.msra.mxu0 %v913
        %986 = vmatmul.f32.gmra.mxu0 %v923
        %v987 = vpop.f32.mrf.mxu0
        %v988 = vadd.f32 %v919, %v987
        %989 = vmatmul.f32.gmra.mxu0 %v926
        %v990 = vpop.f32.mrf.mxu0
        %v991 = vadd.f32 %v919, %v990
        %992 = vmatmul.f32.gmra.mxu0 %v929
        %v993 = vpop.f32.mrf.mxu0
        %v994 = vadd.f32 %v919, %v993
        %995 = vmatmul.f32.gmra.mxu0 %v932
        %v996 = vpop.f32.mrf.mxu0
        %v997 = vadd.f32 %v919, %v996
        %998 = vmatmul.f32.gmra.mxu0 %v935
        %v999 = vpop.f32.mrf.mxu0
        %v1000 = vadd.f32 %v919, %v999
        %1001 = vmatmul.f32.gmra.mxu0 %v938
        %v1002 = vpop.f32.mrf.mxu0
        %v1003 = vadd.f32 %v919, %v1002
        %1004 = vmatmul.f32.gmra.mxu0 %v941
        %v1005 = vpop.f32.mrf.mxu0
        %v1006 = vadd.f32 %v919, %v1005
        %1007 = vmatmul.f32.gmra.mxu0 %v944
        %v1008 = vpop.f32.mrf.mxu0
        %v1009 = vadd.f32 %v919, %v1008
        %1010 = vmatmul.f32.gmra.mxu0 %v947
        %v1011 = vpop.f32.mrf.mxu0
        %v1012 = vadd.f32 %v919, %v1011
        %1013 = vmatmul.f32.gmra.mxu0 %v950
        %v1014 = vpop.f32.mrf.mxu0
        %v1015 = vadd.f32 %v919, %v1014
        %1016 = vmatmul.f32.gmra.mxu0 %v953
        %v1017 = vpop.f32.mrf.mxu0
        %v1018 = vadd.f32 %v919, %v1017
        %1019 = vmatmul.f32.gmra.mxu0 %v956
        %v1020 = vpop.f32.mrf.mxu0
        %v1021 = vadd.f32 %v919, %v1020
        %1022 = vmatmul.f32.gmra.mxu0 %v959
        %v1023 = vpop.f32.mrf.mxu0
        %v1024 = vadd.f32 %v919, %v1023
        %1025 = vmatmul.f32.gmra.mxu0 %v962
        %v1026 = vpop.f32.mrf.mxu0
        %v1027 = vadd.f32 %v919, %v1026
        %1028 = vmatmul.f32.gmra.mxu0 %v965
        %v1029 = vpop.f32.mrf.mxu0
        %v1030 = vadd.f32 %v919, %v1029
        %1031 = vmatmul.f32.gmra.mxu0 %v968
        %v1032 = vpop.f32.mrf.mxu0
        %v1033 = vadd.f32 %v919, %v1032
        %1034 = vdwg.mxu0
        %v1035 = vld [vmem:[%s8] sm:$0xff]
        %v1036 = vld [vmem:[%s8 + $0x8] sm:$0xff]
        %v1037 = vld [vmem:[%s8 + $0x10] sm:$0xff]
        %v1038 = vld [vmem:[%s8 + $0x18] sm:$0xff]
        %v1040 = vsel %vm921, %v702, 0
        %1042 = vmatpush.msra.mxu0 0.0
        %1043 = vmatpush.msra.mxu0 0.0
        %1044 = vmatpush.msra.mxu0 0.0
        %1045 = vmatpush.msra.mxu0 0.0
        %1046 = vmatpush.msra.mxu0 0.0
        %1047 = vmatpush.msra.mxu0 0.0
        %1048 = vmatpush.msra.mxu0 0.0
        %1049 = vmatpush.msra.mxu0 0.0
        %1050 = vmatpush.msra.mxu0 0.0
        %1051 = vmatpush.msra.mxu0 0.0
        %1052 = vmatpush.msra.mxu0 0.0
        %1053 = vmatpush.msra.mxu0 0.0
        %1054 = vmatpush.msra.mxu0 %v1038
        %1055 = vmatpush.msra.mxu0 %v1037
        %1056 = vmatpush.msra.mxu0 %v1036
        %1057 = vmatpush.msra.mxu0 %v1035
        %1058 = vmatmul.f32.gmra.mxu0 %v1040
        %v1059 = vpop.f32.mrf.mxu0
        %v1060 = vadd.f32 0.0, %v1059
        %1061 = vdwg.mxu0
        %v1063 = vsel %vm863, %v792, 0
        %v1066 = vsel %vm863, %v793, 0
        %v1069 = vsel %vm863, %v794, 0
        %v1072 = vsel %vm863, %v795, 0
        %v1075 = vsel %vm863, %v796, 0
        %v1078 = vsel %vm863, %v797, 0
        %v1081 = vsel %vm863, %v798, 0
        %v1084 = vsel %vm863, %v799, 0
        %v1087 = vsel %vm863, %v800, 0
        %v1090 = vsel %vm863, %v801, 0
        %v1093 = vsel %vm863, %v802, 0
        %v1096 = vsel %vm863, %v803, 0
        %v1099 = vsel %vm863, %v804, 0
        %v1102 = vsel %vm863, %v805, 0
        %v1105 = vsel %vm863, %v806, 0
        %v1108 = vsel %vm863, %v807, 0
        %1110 = vmatpush.msra.mxu0 0.0
        %1111 = vmatpush.msra.mxu0 0.0
        %1112 = vmatpush.msra.mxu0 0.0
        %1113 = vmatpush.msra.mxu0 0.0
        %1114 = vmatpush.msra.mxu0 0.0
        %1115 = vmatpush.msra.mxu0 0.0
        %1116 = vmatpush.msra.mxu0 0.0
        %1117 = vmatpush.msra.mxu0 0.0
        %1118 = vmatpush.msra.mxu0 0.0
        %1119 = vmatpush.msra.mxu0 0.0
        %1120 = vmatpush.msra.mxu0 0.0
        %1121 = vmatpush.msra.mxu0 0.0
        %1122 = vmatpush.msra.mxu0 0.0
        %1123 = vmatpush.msra.mxu0 0.0
        %1124 = vmatpush.msra.mxu0 0.0
        %1125 = vmatpush.msra.mxu0 %v1060
        %1126 = vmatmul.f32.gmra.mxu0 %v1063
        %v1127 = vpop.f32.mrf.mxu0
        %v1128 = vadd.f32 0.0, %v1127
        %1129 = vmatmul.f32.gmra.mxu0 %v1066
        %v1130 = vpop.f32.mrf.mxu0
        %v1131 = vadd.f32 0.0, %v1130
        %1132 = vmatmul.f32.gmra.mxu0 %v1069
        %v1133 = vpop.f32.mrf.mxu0
        %v1134 = vadd.f32 0.0, %v1133
        %1135 = vmatmul.f32.gmra.mxu0 %v1072
        %v1136 = vpop.f32.mrf.mxu0
        %v1137 = vadd.f32 0.0, %v1136
        %1138 = vmatmul.f32.gmra.mxu0 %v1075
        %v1139 = vpop.f32.mrf.mxu0
        %v1140 = vadd.f32 0.0, %v1139
        %1141 = vmatmul.f32.gmra.mxu0 %v1078
        %v1142 = vpop.f32.mrf.mxu0
        %v1143 = vadd.f32 0.0, %v1142
        %1144 = vmatmul.f32.gmra.mxu0 %v1081
        %v1145 = vpop.f32.mrf.mxu0
        %v1146 = vadd.f32 0.0, %v1145
        %1147 = vmatmul.f32.gmra.mxu0 %v1084
        %v1148 = vpop.f32.mrf.mxu0
        %v1149 = vadd.f32 0.0, %v1148
        %1150 = vmatmul.f32.gmra.mxu0 %v1087
        %v1151 = vpop.f32.mrf.mxu0
        %v1152 = vadd.f32 0.0, %v1151
        %1153 = vmatmul.f32.gmra.mxu0 %v1090
        %v1154 = vpop.f32.mrf.mxu0
        %v1155 = vadd.f32 0.0, %v1154
        %1156 = vmatmul.f32.gmra.mxu0 %v1093
        %v1157 = vpop.f32.mrf.mxu0
        %v1158 = vadd.f32 0.0, %v1157
        %1159 = vmatmul.f32.gmra.mxu0 %v1096
        %v1160 = vpop.f32.mrf.mxu0
        %v1161 = vadd.f32 0.0, %v1160
        %1162 = vmatmul.f32.gmra.mxu0 %v1099
        %v1163 = vpop.f32.mrf.mxu0
        %v1164 = vadd.f32 0.0, %v1163
        %1165 = vmatmul.f32.gmra.mxu0 %v1102
        %v1166 = vpop.f32.mrf.mxu0
        %v1167 = vadd.f32 0.0, %v1166
        %1168 = vmatmul.f32.gmra.mxu0 %v1105
        %v1169 = vpop.f32.mrf.mxu0
        %v1170 = vadd.f32 0.0, %v1169
        %1171 = vmatmul.f32.gmra.mxu0 %v1108
        %v1172 = vpop.f32.mrf.mxu0
        %v1173 = vadd.f32 0.0, %v1172
        %1174 = vdwg.mxu0
        %1175 = vmatpush.msra.mxu0 0.0
        %1176 = vmatpush.msra.mxu0 0.0
        %1177 = vmatpush.msra.mxu0 0.0
        %1178 = vmatpush.msra.mxu0 0.0
        %1179 = vmatpush.msra.mxu0 0.0
        %1180 = vmatpush.msra.mxu0 0.0
        %1181 = vmatpush.msra.mxu0 0.0
        %1182 = vmatpush.msra.mxu0 0.0
        %1183 = vmatpush.msra.mxu0 0.0
        %1184 = vmatpush.msra.mxu0 0.0
        %1185 = vmatpush.msra.mxu0 0.0
        %1186 = vmatpush.msra.mxu0 0.0
        %1187 = vmatpush.msra.mxu0 0.0
        %1188 = vmatpush.msra.mxu0 0.0
        %1189 = vmatpush.msra.mxu0 0.0
        %1190 = vmatpush.msra.mxu0 %v703
        %1191 = vmatmul.f32.gmra.mxu0 %v1063
        %v1192 = vpop.f32.mrf.mxu0
        %v1193 = vadd.f32 0.0, %v1192
        %1194 = vmatmul.f32.gmra.mxu0 %v1066
        %v1195 = vpop.f32.mrf.mxu0
        %v1196 = vadd.f32 0.0, %v1195
        %1197 = vmatmul.f32.gmra.mxu0 %v1069
        %v1198 = vpop.f32.mrf.mxu0
        %v1199 = vadd.f32 0.0, %v1198
        %1200 = vmatmul.f32.gmra.mxu0 %v1072
        %v1201 = vpop.f32.mrf.mxu0
        %v1202 = vadd.f32 0.0, %v1201
        %1203 = vmatmul.f32.gmra.mxu0 %v1075
        %v1204 = vpop.f32.mrf.mxu0
        %v1205 = vadd.f32 0.0, %v1204
        %1206 = vmatmul.f32.gmra.mxu0 %v1078
        %v1207 = vpop.f32.mrf.mxu0
        %v1208 = vadd.f32 0.0, %v1207
        %1209 = vmatmul.f32.gmra.mxu0 %v1081
        %v1210 = vpop.f32.mrf.mxu0
        %v1211 = vadd.f32 0.0, %v1210
        %1212 = vmatmul.f32.gmra.mxu0 %v1084
        %v1213 = vpop.f32.mrf.mxu0
        %v1214 = vadd.f32 0.0, %v1213
        %1215 = vmatmul.f32.gmra.mxu0 %v1087
        %v1216 = vpop.f32.mrf.mxu0
        %v1217 = vadd.f32 0.0, %v1216
        %1218 = vmatmul.f32.gmra.mxu0 %v1090
        %v1219 = vpop.f32.mrf.mxu0
        %v1220 = vadd.f32 0.0, %v1219
        %1221 = vmatmul.f32.gmra.mxu0 %v1093
        %v1222 = vpop.f32.mrf.mxu0
        %v1223 = vadd.f32 0.0, %v1222
        %1224 = vmatmul.f32.gmra.mxu0 %v1096
        %v1225 = vpop.f32.mrf.mxu0
        %v1226 = vadd.f32 0.0, %v1225
        %1227 = vmatmul.f32.gmra.mxu0 %v1099
        %v1228 = vpop.f32.mrf.mxu0
        %v1229 = vadd.f32 0.0, %v1228
        %1230 = vmatmul.f32.gmra.mxu0 %v1102
        %v1231 = vpop.f32.mrf.mxu0
        %v1232 = vadd.f32 0.0, %v1231
        %1233 = vmatmul.f32.gmra.mxu0 %v1105
        %v1234 = vpop.f32.mrf.mxu0
        %v1235 = vadd.f32 0.0, %v1234
        %1236 = vmatmul.f32.gmra.mxu0 %v1108
        %v1237 = vpop.f32.mrf.mxu0
        %v1238 = vadd.f32 0.0, %v1237
        %1239 = vdwg.mxu0
        %v1240 = vld [vmem:[%s9] sm:$0x1f]
        %v1241 = vadd.f32 %v866, -2.0
        %v1242 = vadd.f32 %v869, -2.0
        %v1243 = vadd.f32 %v872, -2.0
        %v1244 = vadd.f32 %v875, -2.0
        %v1245 = vadd.f32 %v878, -2.0
        %v1246 = vadd.f32 %v881, -2.0
        %v1247 = vadd.f32 %v884, -2.0
        %v1248 = vadd.f32 %v887, -2.0
        %v1249 = vadd.f32 %v890, -2.0
        %v1250 = vadd.f32 %v893, -2.0
        %v1251 = vadd.f32 %v896, -2.0
        %v1252 = vadd.f32 %v899, -2.0
        %v1253 = vadd.f32 %v902, -2.0
        %v1254 = vadd.f32 %v905, -2.0
        %v1255 = vadd.f32 %v908, -2.0
        %v1256 = vadd.f32 %v911, -2.0
        %vm1257 = vcmp.eq.f32.partialorder %v912, %v1241
        %vm1258 = vcmp.eq.f32.partialorder %v912, %v1242
        %vm1259 = vcmp.eq.f32.partialorder %v912, %v1243
        %vm1260 = vcmp.eq.f32.partialorder %v912, %v1244
        %vm1261 = vcmp.eq.f32.partialorder %v912, %v1245
        %vm1262 = vcmp.eq.f32.partialorder %v912, %v1246
        %vm1263 = vcmp.eq.f32.partialorder %v912, %v1247
        %vm1264 = vcmp.eq.f32.partialorder %v912, %v1248
        %vm1265 = vcmp.eq.f32.partialorder %v912, %v1249
        %vm1266 = vcmp.eq.f32.partialorder %v912, %v1250
        %vm1267 = vcmp.eq.f32.partialorder %v912, %v1251
        %vm1268 = vcmp.eq.f32.partialorder %v912, %v1252
        %vm1269 = vcmp.eq.f32.partialorder %v912, %v1253
        %vm1270 = vcmp.eq.f32.partialorder %v912, %v1254
        %vm1271 = vcmp.eq.f32.partialorder %v912, %v1255
        %vm1272 = vcmp.eq.f32.partialorder %v912, %v1256
        %v1273 = vsel %vm1257, 1, 0
        %v1274 = vsel %vm1258, 1, 0
        %v1275 = vsel %vm1259, 1, 0
        %v1276 = vsel %vm1260, 1, 0
        %v1277 = vsel %vm1261, 1, 0
        %v1278 = vsel %vm1262, 1, 0
        %v1279 = vsel %vm1263, 1, 0
        %v1280 = vsel %vm1264, 1, 0
        %v1281 = vsel %vm1265, 1, 0
        %v1282 = vsel %vm1266, 1, 0
        %v1283 = vsel %vm1267, 1, 0
        %v1284 = vsel %vm1268, 1, 0
        %v1285 = vsel %vm1269, 1, 0
        %v1286 = vsel %vm1270, 1, 0
        %v1287 = vsel %vm1271, 1, 0
        %v1288 = vsel %vm1272, 1, 0
        %v1289 = vcvt.s32.f32 %v1273
        %v1290 = vcvt.s32.f32 %v1274
        %v1291 = vcvt.s32.f32 %v1275
        %v1292 = vcvt.s32.f32 %v1276
        %v1293 = vcvt.s32.f32 %v1277
        %v1294 = vcvt.s32.f32 %v1278
        %v1295 = vcvt.s32.f32 %v1279
        %v1296 = vcvt.s32.f32 %v1280
        %v1297 = vcvt.s32.f32 %v1281
        %v1298 = vcvt.s32.f32 %v1282
        %v1299 = vcvt.s32.f32 %v1283
        %v1300 = vcvt.s32.f32 %v1284
        %v1301 = vcvt.s32.f32 %v1285
        %v1302 = vcvt.s32.f32 %v1286
        %v1303 = vcvt.s32.f32 %v1287
        %v1304 = vcvt.s32.f32 %v1288
        %v1305 = vmul.f32 %v1193, %v1289
        %v1306 = vmul.f32 %v1196, %v1290
        %v1307 = vmul.f32 %v1199, %v1291
        %v1308 = vmul.f32 %v1202, %v1292
        %v1309 = vmul.f32 %v1205, %v1293
        %v1310 = vmul.f32 %v1208, %v1294
        %v1311 = vmul.f32 %v1211, %v1295
        %v1312 = vmul.f32 %v1214, %v1296
        %v1313 = vmul.f32 %v1217, %v1297
        %v1314 = vmul.f32 %v1220, %v1298
        %v1315 = vmul.f32 %v1223, %v1299
        %v1316 = vmul.f32 %v1226, %v1300
        %v1317 = vmul.f32 %v1229, %v1301
        %v1318 = vmul.f32 %v1232, %v1302
        %v1319 = vmul.f32 %v1235, %v1303
        %v1320 = vmul.f32 %v1238, %v1304
        %vm1321 = vcmask 130048
        %v1322 = vsel %vm1321, %v1305, 0.0
        %1323 = vadd.xlane.f32.xlu0 %v1322
        %v1324 = vpop.xlane.xlu0 %1323
        %v1325 = vsel %vm1321, %v1306, 0.0
        %1326 = vadd.xlane.f32.xlu0 %v1325
        %v1327 = vpop.xlane.xlu0 %1326
        %v1328 = vsel %vm1321, %v1307, 0.0
        %1329 = vadd.xlane.f32.xlu0 %v1328
        %v1330 = vpop.xlane.xlu0 %1329
        %v1331 = vsel %vm1321, %v1308, 0.0
        %1332 = vadd.xlane.f32.xlu0 %v1331
        %v1333 = vpop.xlane.xlu0 %1332
        %v1334 = vsel %vm1321, %v1309, 0.0
        %1335 = vadd.xlane.f32.xlu0 %v1334
        %v1336 = vpop.xlane.xlu0 %1335
        %v1337 = vsel %vm1321, %v1310, 0.0
        %1338 = vadd.xlane.f32.xlu0 %v1337
        %v1339 = vpop.xlane.xlu0 %1338
        %v1340 = vsel %vm1321, %v1311, 0.0
        %1341 = vadd.xlane.f32.xlu0 %v1340
        %v1342 = vpop.xlane.xlu0 %1341
        %v1343 = vsel %vm1321, %v1312, 0.0
        %1344 = vadd.xlane.f32.xlu0 %v1343
        %v1345 = vpop.xlane.xlu0 %1344
        %v1346 = vsel %vm1321, %v1313, 0.0
        %1347 = vadd.xlane.f32.xlu0 %v1346
        %v1348 = vpop.xlane.xlu0 %1347
        %v1349 = vsel %vm1321, %v1314, 0.0
        %1350 = vadd.xlane.f32.xlu0 %v1349
        %v1351 = vpop.xlane.xlu0 %1350
        %v1352 = vsel %vm1321, %v1315, 0.0
        %1353 = vadd.xlane.f32.xlu0 %v1352
        %v1354 = vpop.xlane.xlu0 %1353
        %v1355 = vsel %vm1321, %v1316, 0.0
        %1356 = vadd.xlane.f32.xlu0 %v1355
        %v1357 = vpop.xlane.xlu0 %1356
        %v1358 = vsel %vm1321, %v1317, 0.0
        %1359 = vadd.xlane.f32.xlu0 %v1358
        %v1360 = vpop.xlane.xlu0 %1359
        %v1361 = vsel %vm1321, %v1318, 0.0
        %1362 = vadd.xlane.f32.xlu0 %v1361
        %v1363 = vpop.xlane.xlu0 %1362
        %v1364 = vsel %vm1321, %v1319, 0.0
        %1365 = vadd.xlane.f32.xlu0 %v1364
        %v1366 = vpop.xlane.xlu0 %1365
        %v1367 = vsel %vm1321, %v1320, 0.0
        %1368 = vadd.xlane.f32.xlu0 %v1367
        %v1369 = vpop.xlane.xlu0 %1368
        %v1370 = vperm.slane %v1240, 0
        %v1371 = vmul.f32 %v1324, %v1370
        %v1372 = vmul.f32 %v1327, %v1370
        %v1373 = vmul.f32 %v1330, %v1370
        %v1374 = vmul.f32 %v1333, %v1370
        %v1375 = vmul.f32 %v1336, %v1370
        %v1376 = vmul.f32 %v1339, %v1370
        %v1377 = vmul.f32 %v1342, %v1370
        %v1378 = vmul.f32 %v1345, %v1370
        %v1379 = vmul.f32 %v1348, %v1370
        %v1380 = vmul.f32 %v1351, %v1370
        %v1381 = vmul.f32 %v1354, %v1370
        %v1382 = vmul.f32 %v1357, %v1370
        %v1383 = vmul.f32 %v1360, %v1370
        %v1384 = vmul.f32 %v1363, %v1370
        %v1385 = vmul.f32 %v1366, %v1370
        %v1386 = vmul.f32 %v1369, %v1370
        %v1387 = vadd.f32 %v1371, 0.0
        %v1388 = vadd.f32 %v1372, 0.0
        %v1389 = vadd.f32 %v1373, 0.0
        %v1390 = vadd.f32 %v1374, 0.0
        %v1391 = vadd.f32 %v1375, 0.0
        %v1392 = vadd.f32 %v1376, 0.0
        %v1393 = vadd.f32 %v1377, 0.0
        %v1394 = vadd.f32 %v1378, 0.0
        %v1395 = vadd.f32 %v1379, 0.0
        %v1396 = vadd.f32 %v1380, 0.0
        %v1397 = vadd.f32 %v1381, 0.0
        %v1398 = vadd.f32 %v1382, 0.0
        %v1399 = vadd.f32 %v1383, 0.0
        %v1400 = vadd.f32 %v1384, 0.0
        %v1401 = vadd.f32 %v1385, 0.0
        %v1402 = vadd.f32 %v1386, 0.0
        %v1403 = vadd.f32 %v866, -1.0
        %v1404 = vadd.f32 %v869, -1.0
        %v1405 = vadd.f32 %v872, -1.0
        %v1406 = vadd.f32 %v875, -1.0
        %v1407 = vadd.f32 %v878, -1.0
        %v1408 = vadd.f32 %v881, -1.0
        %v1409 = vadd.f32 %v884, -1.0
        %v1410 = vadd.f32 %v887, -1.0
        %v1411 = vadd.f32 %v890, -1.0
        %v1412 = vadd.f32 %v893, -1.0
        %v1413 = vadd.f32 %v896, -1.0
        %v1414 = vadd.f32 %v899, -1.0
        %v1415 = vadd.f32 %v902, -1.0
        %v1416 = vadd.f32 %v905, -1.0
        %v1417 = vadd.f32 %v908, -1.0
        %v1418 = vadd.f32 %v911, -1.0
        %vm1419 = vcmp.eq.f32.partialorder %v912, %v1403
        %vm1420 = vcmp.eq.f32.partialorder %v912, %v1404
        %vm1421 = vcmp.eq.f32.partialorder %v912, %v1405
        %vm1422 = vcmp.eq.f32.partialorder %v912, %v1406
        %vm1423 = vcmp.eq.f32.partialorder %v912, %v1407
        %vm1424 = vcmp.eq.f32.partialorder %v912, %v1408
        %vm1425 = vcmp.eq.f32.partialorder %v912, %v1409
        %vm1426 = vcmp.eq.f32.partialorder %v912, %v1410
        %vm1427 = vcmp.eq.f32.partialorder %v912, %v1411
        %vm1428 = vcmp.eq.f32.partialorder %v912, %v1412
        %vm1429 = vcmp.eq.f32.partialorder %v912, %v1413
        %vm1430 = vcmp.eq.f32.partialorder %v912, %v1414
        %vm1431 = vcmp.eq.f32.partialorder %v912, %v1415
        %vm1432 = vcmp.eq.f32.partialorder %v912, %v1416
        %vm1433 = vcmp.eq.f32.partialorder %v912, %v1417
        %vm1434 = vcmp.eq.f32.partialorder %v912, %v1418
        %v1435 = vsel %vm1419, 1, 0
        %v1436 = vsel %vm1420, 1, 0
        %v1437 = vsel %vm1421, 1, 0
        %v1438 = vsel %vm1422, 1, 0
        %v1439 = vsel %vm1423, 1, 0
        %v1440 = vsel %vm1424, 1, 0
        %v1441 = vsel %vm1425, 1, 0
        %v1442 = vsel %vm1426, 1, 0
        %v1443 = vsel %vm1427, 1, 0
        %v1444 = vsel %vm1428, 1, 0
        %v1445 = vsel %vm1429, 1, 0
        %v1446 = vsel %vm1430, 1, 0
        %v1447 = vsel %vm1431, 1, 0
        %v1448 = vsel %vm1432, 1, 0
        %v1449 = vsel %vm1433, 1, 0
        %v1450 = vsel %vm1434, 1, 0
        %v1451 = vcvt.s32.f32 %v1435
        %v1452 = vcvt.s32.f32 %v1436
        %v1453 = vcvt.s32.f32 %v1437
        %v1454 = vcvt.s32.f32 %v1438
        %v1455 = vcvt.s32.f32 %v1439
        %v1456 = vcvt.s32.f32 %v1440
        %v1457 = vcvt.s32.f32 %v1441
        %v1458 = vcvt.s32.f32 %v1442
        %v1459 = vcvt.s32.f32 %v1443
        %v1460 = vcvt.s32.f32 %v1444
        %v1461 = vcvt.s32.f32 %v1445
        %v1462 = vcvt.s32.f32 %v1446
        %v1463 = vcvt.s32.f32 %v1447
        %v1464 = vcvt.s32.f32 %v1448
        %v1465 = vcvt.s32.f32 %v1449
        %v1466 = vcvt.s32.f32 %v1450
        %v1467 = vmul.f32 %v1193, %v1451
        %v1468 = vmul.f32 %v1196, %v1452
        %v1469 = vmul.f32 %v1199, %v1453
        %v1470 = vmul.f32 %v1202, %v1454
        %v1471 = vmul.f32 %v1205, %v1455
        %v1472 = vmul.f32 %v1208, %v1456
        %v1473 = vmul.f32 %v1211, %v1457
        %v1474 = vmul.f32 %v1214, %v1458
        %v1475 = vmul.f32 %v1217, %v1459
        %v1476 = vmul.f32 %v1220, %v1460
        %v1477 = vmul.f32 %v1223, %v1461
        %v1478 = vmul.f32 %v1226, %v1462
        %v1479 = vmul.f32 %v1229, %v1463
        %v1480 = vmul.f32 %v1232, %v1464
        %v1481 = vmul.f32 %v1235, %v1465
        %v1482 = vmul.f32 %v1238, %v1466
        %v1483 = vsel %vm1321, %v1467, 0.0
        %1484 = vadd.xlane.f32.xlu0 %v1483
        %v1485 = vpop.xlane.xlu0 %1484
        %v1486 = vsel %vm1321, %v1468, 0.0
        %1487 = vadd.xlane.f32.xlu0 %v1486
        %v1488 = vpop.xlane.xlu0 %1487
        %v1489 = vsel %vm1321, %v1469, 0.0
        %1490 = vadd.xlane.f32.xlu0 %v1489
        %v1491 = vpop.xlane.xlu0 %1490
        %v1492 = vsel %vm1321, %v1470, 0.0
        %1493 = vadd.xlane.f32.xlu0 %v1492
        %v1494 = vpop.xlane.xlu0 %1493
        %v1495 = vsel %vm1321, %v1471, 0.0
        %1496 = vadd.xlane.f32.xlu0 %v1495
        %v1497 = vpop.xlane.xlu0 %1496
        %v1498 = vsel %vm1321, %v1472, 0.0
        %1499 = vadd.xlane.f32.xlu0 %v1498
        %v1500 = vpop.xlane.xlu0 %1499
        %v1501 = vsel %vm1321, %v1473, 0.0
        %1502 = vadd.xlane.f32.xlu0 %v1501
        %v1503 = vpop.xlane.xlu0 %1502
        %v1504 = vsel %vm1321, %v1474, 0.0
        %1505 = vadd.xlane.f32.xlu0 %v1504
        %v1506 = vpop.xlane.xlu0 %1505
        %v1507 = vsel %vm1321, %v1475, 0.0
        %1508 = vadd.xlane.f32.xlu0 %v1507
        %v1509 = vpop.xlane.xlu0 %1508
        %v1510 = vsel %vm1321, %v1476, 0.0
        %1511 = vadd.xlane.f32.xlu0 %v1510
        %v1512 = vpop.xlane.xlu0 %1511
        %v1513 = vsel %vm1321, %v1477, 0.0
        %1514 = vadd.xlane.f32.xlu0 %v1513
        %v1515 = vpop.xlane.xlu0 %1514
        %v1516 = vsel %vm1321, %v1478, 0.0
        %1517 = vadd.xlane.f32.xlu0 %v1516
        %v1518 = vpop.xlane.xlu0 %1517
        %v1519 = vsel %vm1321, %v1479, 0.0
        %1520 = vadd.xlane.f32.xlu0 %v1519
        %v1521 = vpop.xlane.xlu0 %1520
        %v1522 = vsel %vm1321, %v1480, 0.0
        %1523 = vadd.xlane.f32.xlu0 %v1522
        %v1524 = vpop.xlane.xlu0 %1523
        %v1525 = vsel %vm1321, %v1481, 0.0
        %1526 = vadd.xlane.f32.xlu0 %v1525
        %v1527 = vpop.xlane.xlu0 %1526
        %v1528 = vsel %vm1321, %v1482, 0.0
        %1529 = vadd.xlane.f32.xlu0 %v1528
        %v1530 = vpop.xlane.xlu0 %1529
        %v1531 = vperm.slane %v1240, 1
        %v1532 = vmul.f32 %v1485, %v1531
        %v1533 = vmul.f32 %v1488, %v1531
        %v1534 = vmul.f32 %v1491, %v1531
        %v1535 = vmul.f32 %v1494, %v1531
        %v1536 = vmul.f32 %v1497, %v1531
        %v1537 = vmul.f32 %v1500, %v1531
        %v1538 = vmul.f32 %v1503, %v1531
        %v1539 = vmul.f32 %v1506, %v1531
        %v1540 = vmul.f32 %v1509, %v1531
        %v1541 = vmul.f32 %v1512, %v1531
        %v1542 = vmul.f32 %v1515, %v1531
        %v1543 = vmul.f32 %v1518, %v1531
        %v1544 = vmul.f32 %v1521, %v1531
        %v1545 = vmul.f32 %v1524, %v1531
        %v1546 = vmul.f32 %v1527, %v1531
        %v1547 = vmul.f32 %v1530, %v1531
        %v1548 = vadd.f32 %v1387, %v1532
        %v1549 = vadd.f32 %v1388, %v1533
        %v1550 = vadd.f32 %v1389, %v1534
        %v1551 = vadd.f32 %v1390, %v1535
        %v1552 = vadd.f32 %v1391, %v1536
        %v1553 = vadd.f32 %v1392, %v1537
        %v1554 = vadd.f32 %v1393, %v1538
        %v1555 = vadd.f32 %v1394, %v1539
        %v1556 = vadd.f32 %v1395, %v1540
        %v1557 = vadd.f32 %v1396, %v1541
        %v1558 = vadd.f32 %v1397, %v1542
        %v1559 = vadd.f32 %v1398, %v1543
        %v1560 = vadd.f32 %v1399, %v1544
        %v1561 = vadd.f32 %v1400, %v1545
        %v1562 = vadd.f32 %v1401, %v1546
        %v1563 = vadd.f32 %v1402, %v1547
        %v1564 = vadd.f32 %v866, 0.0
        %v1565 = vadd.f32 %v869, 0.0
        %v1566 = vadd.f32 %v872, 0.0
        %v1567 = vadd.f32 %v875, 0.0
        %v1568 = vadd.f32 %v878, 0.0
        %v1569 = vadd.f32 %v881, 0.0
        %v1570 = vadd.f32 %v884, 0.0
        %v1571 = vadd.f32 %v887, 0.0
        %v1572 = vadd.f32 %v890, 0.0
        %v1573 = vadd.f32 %v893, 0.0
        %v1574 = vadd.f32 %v896, 0.0
        %v1575 = vadd.f32 %v899, 0.0
        %v1576 = vadd.f32 %v902, 0.0
        %v1577 = vadd.f32 %v905, 0.0
        %v1578 = vadd.f32 %v908, 0.0
        %v1579 = vadd.f32 %v911, 0.0
        %vm1580 = vcmp.eq.f32.partialorder %v912, %v1564
        %vm1581 = vcmp.eq.f32.partialorder %v912, %v1565
        %vm1582 = vcmp.eq.f32.partialorder %v912, %v1566
        %vm1583 = vcmp.eq.f32.partialorder %v912, %v1567
        %vm1584 = vcmp.eq.f32.partialorder %v912, %v1568
        %vm1585 = vcmp.eq.f32.partialorder %v912, %v1569
        %vm1586 = vcmp.eq.f32.partialorder %v912, %v1570
        %vm1587 = vcmp.eq.f32.partialorder %v912, %v1571
        %vm1588 = vcmp.eq.f32.partialorder %v912, %v1572
        %vm1589 = vcmp.eq.f32.partialorder %v912, %v1573
        %vm1590 = vcmp.eq.f32.partialorder %v912, %v1574
        %vm1591 = vcmp.eq.f32.partialorder %v912, %v1575
        %vm1592 = vcmp.eq.f32.partialorder %v912, %v1576
        %vm1593 = vcmp.eq.f32.partialorder %v912, %v1577
        %vm1594 = vcmp.eq.f32.partialorder %v912, %v1578
        %vm1595 = vcmp.eq.f32.partialorder %v912, %v1579
        %v1596 = vsel %vm1580, 1, 0
        %v1597 = vsel %vm1581, 1, 0
        %v1598 = vsel %vm1582, 1, 0
        %v1599 = vsel %vm1583, 1, 0
        %v1600 = vsel %vm1584, 1, 0
        %v1601 = vsel %vm1585, 1, 0
        %v1602 = vsel %vm1586, 1, 0
        %v1603 = vsel %vm1587, 1, 0
        %v1604 = vsel %vm1588, 1, 0
        %v1605 = vsel %vm1589, 1, 0
        %v1606 = vsel %vm1590, 1, 0
        %v1607 = vsel %vm1591, 1, 0
        %v1608 = vsel %vm1592, 1, 0
        %v1609 = vsel %vm1593, 1, 0
        %v1610 = vsel %vm1594, 1, 0
        %v1611 = vsel %vm1595, 1, 0
        %v1612 = vcvt.s32.f32 %v1596
        %v1613 = vcvt.s32.f32 %v1597
        %v1614 = vcvt.s32.f32 %v1598
        %v1615 = vcvt.s32.f32 %v1599
        %v1616 = vcvt.s32.f32 %v1600
        %v1617 = vcvt.s32.f32 %v1601
        %v1618 = vcvt.s32.f32 %v1602
        %v1619 = vcvt.s32.f32 %v1603
        %v1620 = vcvt.s32.f32 %v1604
        %v1621 = vcvt.s32.f32 %v1605
        %v1622 = vcvt.s32.f32 %v1606
        %v1623 = vcvt.s32.f32 %v1607
        %v1624 = vcvt.s32.f32 %v1608
        %v1625 = vcvt.s32.f32 %v1609
        %v1626 = vcvt.s32.f32 %v1610
        %v1627 = vcvt.s32.f32 %v1611
        %v1628 = vmul.f32 %v1193, %v1612
        %v1629 = vmul.f32 %v1196, %v1613
        %v1630 = vmul.f32 %v1199, %v1614
        %v1631 = vmul.f32 %v1202, %v1615
        %v1632 = vmul.f32 %v1205, %v1616
        %v1633 = vmul.f32 %v1208, %v1617
        %v1634 = vmul.f32 %v1211, %v1618
        %v1635 = vmul.f32 %v1214, %v1619
        %v1636 = vmul.f32 %v1217, %v1620
        %v1637 = vmul.f32 %v1220, %v1621
        %v1638 = vmul.f32 %v1223, %v1622
        %v1639 = vmul.f32 %v1226, %v1623
        %v1640 = vmul.f32 %v1229, %v1624
        %v1641 = vmul.f32 %v1232, %v1625
        %v1642 = vmul.f32 %v1235, %v1626
        %v1643 = vmul.f32 %v1238, %v1627
        %v1644 = vsel %vm1321, %v1628, 0.0
        %1645 = vadd.xlane.f32.xlu0 %v1644
        %v1646 = vpop.xlane.xlu0 %1645
        %v1647 = vsel %vm1321, %v1629, 0.0
        %1648 = vadd.xlane.f32.xlu0 %v1647
        %v1649 = vpop.xlane.xlu0 %1648
        %v1650 = vsel %vm1321, %v1630, 0.0
        %1651 = vadd.xlane.f32.xlu0 %v1650
        %v1652 = vpop.xlane.xlu0 %1651
        %v1653 = vsel %vm1321, %v1631, 0.0
        %1654 = vadd.xlane.f32.xlu0 %v1653
        %v1655 = vpop.xlane.xlu0 %1654
        %v1656 = vsel %vm1321, %v1632, 0.0
        %1657 = vadd.xlane.f32.xlu0 %v1656
        %v1658 = vpop.xlane.xlu0 %1657
        %v1659 = vsel %vm1321, %v1633, 0.0
        %1660 = vadd.xlane.f32.xlu0 %v1659
        %v1661 = vpop.xlane.xlu0 %1660
        %v1662 = vsel %vm1321, %v1634, 0.0
        %1663 = vadd.xlane.f32.xlu0 %v1662
        %v1664 = vpop.xlane.xlu0 %1663
        %v1665 = vsel %vm1321, %v1635, 0.0
        %1666 = vadd.xlane.f32.xlu0 %v1665
        %v1667 = vpop.xlane.xlu0 %1666
        %v1668 = vsel %vm1321, %v1636, 0.0
        %1669 = vadd.xlane.f32.xlu0 %v1668
        %v1670 = vpop.xlane.xlu0 %1669
        %v1671 = vsel %vm1321, %v1637, 0.0
        %1672 = vadd.xlane.f32.xlu0 %v1671
        %v1673 = vpop.xlane.xlu0 %1672
        %v1674 = vsel %vm1321, %v1638, 0.0
        %1675 = vadd.xlane.f32.xlu0 %v1674
        %v1676 = vpop.xlane.xlu0 %1675
        %v1677 = vsel %vm1321, %v1639, 0.0
        %1678 = vadd.xlane.f32.xlu0 %v1677
        %v1679 = vpop.xlane.xlu0 %1678
        %v1680 = vsel %vm1321, %v1640, 0.0
        %1681 = vadd.xlane.f32.xlu0 %v1680
        %v1682 = vpop.xlane.xlu0 %1681
        %v1683 = vsel %vm1321, %v1641, 0.0
        %1684 = vadd.xlane.f32.xlu0 %v1683
        %v1685 = vpop.xlane.xlu0 %1684
        %v1686 = vsel %vm1321, %v1642, 0.0
        %1687 = vadd.xlane.f32.xlu0 %v1686
        %v1688 = vpop.xlane.xlu0 %1687
        %v1689 = vsel %vm1321, %v1643, 0.0
        %1690 = vadd.xlane.f32.xlu0 %v1689
        %v1691 = vpop.xlane.xlu0 %1690
        %v1692 = vperm.slane %v1240, 2
        %v1693 = vmul.f32 %v1646, %v1692
        %v1694 = vmul.f32 %v1649, %v1692
        %v1695 = vmul.f32 %v1652, %v1692
        %v1696 = vmul.f32 %v1655, %v1692
        %v1697 = vmul.f32 %v1658, %v1692
        %v1698 = vmul.f32 %v1661, %v1692
        %v1699 = vmul.f32 %v1664, %v1692
        %v1700 = vmul.f32 %v1667, %v1692
        %v1701 = vmul.f32 %v1670, %v1692
        %v1702 = vmul.f32 %v1673, %v1692
        %v1703 = vmul.f32 %v1676, %v1692
        %v1704 = vmul.f32 %v1679, %v1692
        %v1705 = vmul.f32 %v1682, %v1692
        %v1706 = vmul.f32 %v1685, %v1692
        %v1707 = vmul.f32 %v1688, %v1692
        %v1708 = vmul.f32 %v1691, %v1692
        %v1709 = vadd.f32 %v1548, %v1693
        %v1710 = vadd.f32 %v1549, %v1694
        %v1711 = vadd.f32 %v1550, %v1695
        %v1712 = vadd.f32 %v1551, %v1696
        %v1713 = vadd.f32 %v1552, %v1697
        %v1714 = vadd.f32 %v1553, %v1698
        %v1715 = vadd.f32 %v1554, %v1699
        %v1716 = vadd.f32 %v1555, %v1700
        %v1717 = vadd.f32 %v1556, %v1701
        %v1718 = vadd.f32 %v1557, %v1702
        %v1719 = vadd.f32 %v1558, %v1703
        %v1720 = vadd.f32 %v1559, %v1704
        %v1721 = vadd.f32 %v1560, %v1705
        %v1722 = vadd.f32 %v1561, %v1706
        %v1723 = vadd.f32 %v1562, %v1707
        %v1724 = vadd.f32 %v1563, %v1708
        %v1725 = vadd.f32 %v866, 1.0
        %v1726 = vadd.f32 %v869, 1.0
        %v1727 = vadd.f32 %v872, 1.0
        %v1728 = vadd.f32 %v875, 1.0
        %v1729 = vadd.f32 %v878, 1.0
        %v1730 = vadd.f32 %v881, 1.0
        %v1731 = vadd.f32 %v884, 1.0
        %v1732 = vadd.f32 %v887, 1.0
        %v1733 = vadd.f32 %v890, 1.0
        %v1734 = vadd.f32 %v893, 1.0
        %v1735 = vadd.f32 %v896, 1.0
        %v1736 = vadd.f32 %v899, 1.0
        %v1737 = vadd.f32 %v902, 1.0
        %v1738 = vadd.f32 %v905, 1.0
        %v1739 = vadd.f32 %v908, 1.0
        %v1740 = vadd.f32 %v911, 1.0
        %vm1741 = vcmp.eq.f32.partialorder %v912, %v1725
        %vm1742 = vcmp.eq.f32.partialorder %v912, %v1726
        %vm1743 = vcmp.eq.f32.partialorder %v912, %v1727
        %vm1744 = vcmp.eq.f32.partialorder %v912, %v1728
        %vm1745 = vcmp.eq.f32.partialorder %v912, %v1729
        %vm1746 = vcmp.eq.f32.partialorder %v912, %v1730
        %vm1747 = vcmp.eq.f32.partialorder %v912, %v1731
        %vm1748 = vcmp.eq.f32.partialorder %v912, %v1732
        %vm1749 = vcmp.eq.f32.partialorder %v912, %v1733
        %vm1750 = vcmp.eq.f32.partialorder %v912, %v1734
        %vm1751 = vcmp.eq.f32.partialorder %v912, %v1735
        %vm1752 = vcmp.eq.f32.partialorder %v912, %v1736
        %vm1753 = vcmp.eq.f32.partialorder %v912, %v1737
        %vm1754 = vcmp.eq.f32.partialorder %v912, %v1738
        %vm1755 = vcmp.eq.f32.partialorder %v912, %v1739
        %vm1756 = vcmp.eq.f32.partialorder %v912, %v1740
        %v1757 = vsel %vm1741, 1, 0
        %v1758 = vsel %vm1742, 1, 0
        %v1759 = vsel %vm1743, 1, 0
        %v1760 = vsel %vm1744, 1, 0
        %v1761 = vsel %vm1745, 1, 0
        %v1762 = vsel %vm1746, 1, 0
        %v1763 = vsel %vm1747, 1, 0
        %v1764 = vsel %vm1748, 1, 0
        %v1765 = vsel %vm1749, 1, 0
        %v1766 = vsel %vm1750, 1, 0
        %v1767 = vsel %vm1751, 1, 0
        %v1768 = vsel %vm1752, 1, 0
        %v1769 = vsel %vm1753, 1, 0
        %v1770 = vsel %vm1754, 1, 0
        %v1771 = vsel %vm1755, 1, 0
        %v1772 = vsel %vm1756, 1, 0
        %v1773 = vcvt.s32.f32 %v1757
        %v1774 = vcvt.s32.f32 %v1758
        %v1775 = vcvt.s32.f32 %v1759
        %v1776 = vcvt.s32.f32 %v1760
        %v1777 = vcvt.s32.f32 %v1761
        %v1778 = vcvt.s32.f32 %v1762
        %v1779 = vcvt.s32.f32 %v1763
        %v1780 = vcvt.s32.f32 %v1764
        %v1781 = vcvt.s32.f32 %v1765
        %v1782 = vcvt.s32.f32 %v1766
        %v1783 = vcvt.s32.f32 %v1767
        %v1784 = vcvt.s32.f32 %v1768
        %v1785 = vcvt.s32.f32 %v1769
        %v1786 = vcvt.s32.f32 %v1770
        %v1787 = vcvt.s32.f32 %v1771
        %v1788 = vcvt.s32.f32 %v1772
        %v1789 = vmul.f32 %v1193, %v1773
        %v1790 = vmul.f32 %v1196, %v1774
        %v1791 = vmul.f32 %v1199, %v1775
        %v1792 = vmul.f32 %v1202, %v1776
        %v1793 = vmul.f32 %v1205, %v1777
        %v1794 = vmul.f32 %v1208, %v1778
        %v1795 = vmul.f32 %v1211, %v1779
        %v1796 = vmul.f32 %v1214, %v1780
        %v1797 = vmul.f32 %v1217, %v1781
        %v1798 = vmul.f32 %v1220, %v1782
        %v1799 = vmul.f32 %v1223, %v1783
        %v1800 = vmul.f32 %v1226, %v1784
        %v1801 = vmul.f32 %v1229, %v1785
        %v1802 = vmul.f32 %v1232, %v1786
        %v1803 = vmul.f32 %v1235, %v1787
        %v1804 = vmul.f32 %v1238, %v1788
        %v1805 = vsel %vm1321, %v1789, 0.0
        %1806 = vadd.xlane.f32.xlu0 %v1805
        %v1807 = vpop.xlane.xlu0 %1806
        %v1808 = vsel %vm1321, %v1790, 0.0
        %1809 = vadd.xlane.f32.xlu0 %v1808
        %v1810 = vpop.xlane.xlu0 %1809
        %v1811 = vsel %vm1321, %v1791, 0.0
        %1812 = vadd.xlane.f32.xlu0 %v1811
        %v1813 = vpop.xlane.xlu0 %1812
        %v1814 = vsel %vm1321, %v1792, 0.0
        %1815 = vadd.xlane.f32.xlu0 %v1814
        %v1816 = vpop.xlane.xlu0 %1815
        %v1817 = vsel %vm1321, %v1793, 0.0
        %1818 = vadd.xlane.f32.xlu0 %v1817
        %v1819 = vpop.xlane.xlu0 %1818
        %v1820 = vsel %vm1321, %v1794, 0.0
        %1821 = vadd.xlane.f32.xlu0 %v1820
        %v1822 = vpop.xlane.xlu0 %1821
        %v1823 = vsel %vm1321, %v1795, 0.0
        %1824 = vadd.xlane.f32.xlu0 %v1823
        %v1825 = vpop.xlane.xlu0 %1824
        %v1826 = vsel %vm1321, %v1796, 0.0
        %1827 = vadd.xlane.f32.xlu0 %v1826
        %v1828 = vpop.xlane.xlu0 %1827
        %v1829 = vsel %vm1321, %v1797, 0.0
        %1830 = vadd.xlane.f32.xlu0 %v1829
        %v1831 = vpop.xlane.xlu0 %1830
        %v1832 = vsel %vm1321, %v1798, 0.0
        %1833 = vadd.xlane.f32.xlu0 %v1832
        %v1834 = vpop.xlane.xlu0 %1833
        %v1835 = vsel %vm1321, %v1799, 0.0
        %1836 = vadd.xlane.f32.xlu0 %v1835
        %v1837 = vpop.xlane.xlu0 %1836
        %v1838 = vsel %vm1321, %v1800, 0.0
        %1839 = vadd.xlane.f32.xlu0 %v1838
        %v1840 = vpop.xlane.xlu0 %1839
        %v1841 = vsel %vm1321, %v1801, 0.0
        %1842 = vadd.xlane.f32.xlu0 %v1841
        %v1843 = vpop.xlane.xlu0 %1842
        %v1844 = vsel %vm1321, %v1802, 0.0
        %1845 = vadd.xlane.f32.xlu0 %v1844
        %v1846 = vpop.xlane.xlu0 %1845
        %v1847 = vsel %vm1321, %v1803, 0.0
        %1848 = vadd.xlane.f32.xlu0 %v1847
        %v1849 = vpop.xlane.xlu0 %1848
        %v1850 = vsel %vm1321, %v1804, 0.0
        %1851 = vadd.xlane.f32.xlu0 %v1850
        %v1852 = vpop.xlane.xlu0 %1851
        %v1853 = vperm.slane %v1240, 3
        %v1854 = vmul.f32 %v1807, %v1853
        %v1855 = vmul.f32 %v1810, %v1853
        %v1856 = vmul.f32 %v1813, %v1853
        %v1857 = vmul.f32 %v1816, %v1853
        %v1858 = vmul.f32 %v1819, %v1853
        %v1859 = vmul.f32 %v1822, %v1853
        %v1860 = vmul.f32 %v1825, %v1853
        %v1861 = vmul.f32 %v1828, %v1853
        %v1862 = vmul.f32 %v1831, %v1853
        %v1863 = vmul.f32 %v1834, %v1853
        %v1864 = vmul.f32 %v1837, %v1853
        %v1865 = vmul.f32 %v1840, %v1853
        %v1866 = vmul.f32 %v1843, %v1853
        %v1867 = vmul.f32 %v1846, %v1853
        %v1868 = vmul.f32 %v1849, %v1853
        %v1869 = vmul.f32 %v1852, %v1853
        %v1870 = vadd.f32 %v1709, %v1854
        %v1871 = vadd.f32 %v1710, %v1855
        %v1872 = vadd.f32 %v1711, %v1856
        %v1873 = vadd.f32 %v1712, %v1857
        %v1874 = vadd.f32 %v1713, %v1858
        %v1875 = vadd.f32 %v1714, %v1859
        %v1876 = vadd.f32 %v1715, %v1860
        %v1877 = vadd.f32 %v1716, %v1861
        %v1878 = vadd.f32 %v1717, %v1862
        %v1879 = vadd.f32 %v1718, %v1863
        %v1880 = vadd.f32 %v1719, %v1864
        %v1881 = vadd.f32 %v1720, %v1865
        %v1882 = vadd.f32 %v1721, %v1866
        %v1883 = vadd.f32 %v1722, %v1867
        %v1884 = vadd.f32 %v1723, %v1868
        %v1885 = vadd.f32 %v1724, %v1869
        %v1886 = vadd.f32 %v866, 2.0
        %v1887 = vadd.f32 %v869, 2.0
        %v1888 = vadd.f32 %v872, 2.0
        %v1889 = vadd.f32 %v875, 2.0
        %v1890 = vadd.f32 %v878, 2.0
        %v1891 = vadd.f32 %v881, 2.0
        %v1892 = vadd.f32 %v884, 2.0
        %v1893 = vadd.f32 %v887, 2.0
        %v1894 = vadd.f32 %v890, 2.0
        %v1895 = vadd.f32 %v893, 2.0
        %v1896 = vadd.f32 %v896, 2.0
        %v1897 = vadd.f32 %v899, 2.0
        %v1898 = vadd.f32 %v902, 2.0
        %v1899 = vadd.f32 %v905, 2.0
        %v1900 = vadd.f32 %v908, 2.0
        %v1901 = vadd.f32 %v911, 2.0
        %vm1902 = vcmp.eq.f32.partialorder %v912, %v1886
        %vm1903 = vcmp.eq.f32.partialorder %v912, %v1887
        %vm1904 = vcmp.eq.f32.partialorder %v912, %v1888
        %vm1905 = vcmp.eq.f32.partialorder %v912, %v1889
        %vm1906 = vcmp.eq.f32.partialorder %v912, %v1890
        %vm1907 = vcmp.eq.f32.partialorder %v912, %v1891
        %vm1908 = vcmp.eq.f32.partialorder %v912, %v1892
        %vm1909 = vcmp.eq.f32.partialorder %v912, %v1893
        %vm1910 = vcmp.eq.f32.partialorder %v912, %v1894
        %vm1911 = vcmp.eq.f32.partialorder %v912, %v1895
        %vm1912 = vcmp.eq.f32.partialorder %v912, %v1896
        %vm1913 = vcmp.eq.f32.partialorder %v912, %v1897
        %vm1914 = vcmp.eq.f32.partialorder %v912, %v1898
        %vm1915 = vcmp.eq.f32.partialorder %v912, %v1899
        %vm1916 = vcmp.eq.f32.partialorder %v912, %v1900
        %vm1917 = vcmp.eq.f32.partialorder %v912, %v1901
        %v1918 = vsel %vm1902, 1, 0
        %v1919 = vsel %vm1903, 1, 0
        %v1920 = vsel %vm1904, 1, 0
        %v1921 = vsel %vm1905, 1, 0
        %v1922 = vsel %vm1906, 1, 0
        %v1923 = vsel %vm1907, 1, 0
        %v1924 = vsel %vm1908, 1, 0
        %v1925 = vsel %vm1909, 1, 0
        %v1926 = vsel %vm1910, 1, 0
        %v1927 = vsel %vm1911, 1, 0
        %v1928 = vsel %vm1912, 1, 0
        %v1929 = vsel %vm1913, 1, 0
        %v1930 = vsel %vm1914, 1, 0
        %v1931 = vsel %vm1915, 1, 0
        %v1932 = vsel %vm1916, 1, 0
        %v1933 = vsel %vm1917, 1, 0
        %v1934 = vcvt.s32.f32 %v1918
        %v1935 = vcvt.s32.f32 %v1919
        %v1936 = vcvt.s32.f32 %v1920
        %v1937 = vcvt.s32.f32 %v1921
        %v1938 = vcvt.s32.f32 %v1922
        %v1939 = vcvt.s32.f32 %v1923
        %v1940 = vcvt.s32.f32 %v1924
        %v1941 = vcvt.s32.f32 %v1925
        %v1942 = vcvt.s32.f32 %v1926
        %v1943 = vcvt.s32.f32 %v1927
        %v1944 = vcvt.s32.f32 %v1928
        %v1945 = vcvt.s32.f32 %v1929
        %v1946 = vcvt.s32.f32 %v1930
        %v1947 = vcvt.s32.f32 %v1931
        %v1948 = vcvt.s32.f32 %v1932
        %v1949 = vcvt.s32.f32 %v1933
        %v1950 = vmul.f32 %v1193, %v1934
        %v1951 = vmul.f32 %v1196, %v1935
        %v1952 = vmul.f32 %v1199, %v1936
        %v1953 = vmul.f32 %v1202, %v1937
        %v1954 = vmul.f32 %v1205, %v1938
        %v1955 = vmul.f32 %v1208, %v1939
        %v1956 = vmul.f32 %v1211, %v1940
        %v1957 = vmul.f32 %v1214, %v1941
        %v1958 = vmul.f32 %v1217, %v1942
        %v1959 = vmul.f32 %v1220, %v1943
        %v1960 = vmul.f32 %v1223, %v1944
        %v1961 = vmul.f32 %v1226, %v1945
        %v1962 = vmul.f32 %v1229, %v1946
        %v1963 = vmul.f32 %v1232, %v1947
        %v1964 = vmul.f32 %v1235, %v1948
        %v1965 = vmul.f32 %v1238, %v1949
        %v1966 = vsel %vm1321, %v1950, 0.0
        %1967 = vadd.xlane.f32.xlu0 %v1966
        %v1968 = vpop.xlane.xlu0 %1967
        %v1969 = vsel %vm1321, %v1951, 0.0
        %1970 = vadd.xlane.f32.xlu0 %v1969
        %v1971 = vpop.xlane.xlu0 %1970
        %v1972 = vsel %vm1321, %v1952, 0.0
        %1973 = vadd.xlane.f32.xlu0 %v1972
        %v1974 = vpop.xlane.xlu0 %1973
        %v1975 = vsel %vm1321, %v1953, 0.0
        %1976 = vadd.xlane.f32.xlu0 %v1975
        %v1977 = vpop.xlane.xlu0 %1976
        %v1978 = vsel %vm1321, %v1954, 0.0
        %1979 = vadd.xlane.f32.xlu0 %v1978
        %v1980 = vpop.xlane.xlu0 %1979
        %v1981 = vsel %vm1321, %v1955, 0.0
        %1982 = vadd.xlane.f32.xlu0 %v1981
        %v1983 = vpop.xlane.xlu0 %1982
        %v1984 = vsel %vm1321, %v1956, 0.0
        %1985 = vadd.xlane.f32.xlu0 %v1984
        %v1986 = vpop.xlane.xlu0 %1985
        %v1987 = vsel %vm1321, %v1957, 0.0
        %1988 = vadd.xlane.f32.xlu0 %v1987
        %v1989 = vpop.xlane.xlu0 %1988
        %v1990 = vsel %vm1321, %v1958, 0.0
        %1991 = vadd.xlane.f32.xlu0 %v1990
        %v1992 = vpop.xlane.xlu0 %1991
        %v1993 = vsel %vm1321, %v1959, 0.0
        %1994 = vadd.xlane.f32.xlu0 %v1993
        %v1995 = vpop.xlane.xlu0 %1994
        %v1996 = vsel %vm1321, %v1960, 0.0
        %1997 = vadd.xlane.f32.xlu0 %v1996
        %v1998 = vpop.xlane.xlu0 %1997
        %v1999 = vsel %vm1321, %v1961, 0.0
        %2000 = vadd.xlane.f32.xlu0 %v1999
        %v2001 = vpop.xlane.xlu0 %2000
        %v2002 = vsel %vm1321, %v1962, 0.0
        %2003 = vadd.xlane.f32.xlu0 %v2002
        %v2004 = vpop.xlane.xlu0 %2003
        %v2005 = vsel %vm1321, %v1963, 0.0
        %2006 = vadd.xlane.f32.xlu0 %v2005
        %v2007 = vpop.xlane.xlu0 %2006
        %v2008 = vsel %vm1321, %v1964, 0.0
        %2009 = vadd.xlane.f32.xlu0 %v2008
        %v2010 = vpop.xlane.xlu0 %2009
        %v2011 = vsel %vm1321, %v1965, 0.0
        %2012 = vadd.xlane.f32.xlu0 %v2011
        %v2013 = vpop.xlane.xlu0 %2012
        %v2014 = vperm.slane %v1240, 4
        %v2015 = vmul.f32 %v1968, %v2014
        %v2016 = vmul.f32 %v1971, %v2014
        %v2017 = vmul.f32 %v1974, %v2014
        %v2018 = vmul.f32 %v1977, %v2014
        %v2019 = vmul.f32 %v1980, %v2014
        %v2020 = vmul.f32 %v1983, %v2014
        %v2021 = vmul.f32 %v1986, %v2014
        %v2022 = vmul.f32 %v1989, %v2014
        %v2023 = vmul.f32 %v1992, %v2014
        %v2024 = vmul.f32 %v1995, %v2014
        %v2025 = vmul.f32 %v1998, %v2014
        %v2026 = vmul.f32 %v2001, %v2014
        %v2027 = vmul.f32 %v2004, %v2014
        %v2028 = vmul.f32 %v2007, %v2014
        %v2029 = vmul.f32 %v2010, %v2014
        %v2030 = vmul.f32 %v2013, %v2014
        %v2031 = vadd.f32 %v1870, %v2015
        %v2032 = vadd.f32 %v1871, %v2016
        %v2033 = vadd.f32 %v1872, %v2017
        %v2034 = vadd.f32 %v1873, %v2018
        %v2035 = vadd.f32 %v1874, %v2019
        %v2036 = vadd.f32 %v1875, %v2020
        %v2037 = vadd.f32 %v1876, %v2021
        %v2038 = vadd.f32 %v1877, %v2022
        %v2039 = vadd.f32 %v1878, %v2023
        %v2040 = vadd.f32 %v1879, %v2024
        %v2041 = vadd.f32 %v1880, %v2025
        %v2042 = vadd.f32 %v1881, %v2026
        %v2043 = vadd.f32 %v1882, %v2027
        %v2044 = vadd.f32 %v1883, %v2028
        %v2045 = vadd.f32 %v1884, %v2029
        %v2046 = vadd.f32 %v1885, %v2030
        %v2047 = vadd.f32 %v988, %v1128
        %v2048 = vadd.f32 %v991, %v1131
        %v2049 = vadd.f32 %v994, %v1134
        %v2050 = vadd.f32 %v997, %v1137
        %v2051 = vadd.f32 %v1000, %v1140
        %v2052 = vadd.f32 %v1003, %v1143
        %v2053 = vadd.f32 %v1006, %v1146
        %v2054 = vadd.f32 %v1009, %v1149
        %v2055 = vadd.f32 %v1012, %v1152
        %v2056 = vadd.f32 %v1015, %v1155
        %v2057 = vadd.f32 %v1018, %v1158
        %v2058 = vadd.f32 %v1021, %v1161
        %v2059 = vadd.f32 %v1024, %v1164
        %v2060 = vadd.f32 %v1027, %v1167
        %v2061 = vadd.f32 %v1030, %v1170
        %v2062 = vadd.f32 %v1033, %v1173
        %v2063 = vadd.f32 %v2047, %v2031
        %v2064 = vadd.f32 %v2048, %v2032
        %v2065 = vadd.f32 %v2049, %v2033
        %v2066 = vadd.f32 %v2050, %v2034
        %v2067 = vadd.f32 %v2051, %v2035
        %v2068 = vadd.f32 %v2052, %v2036
        %v2069 = vadd.f32 %v2053, %v2037
        %v2070 = vadd.f32 %v2054, %v2038
        %v2071 = vadd.f32 %v2055, %v2039
        %v2072 = vadd.f32 %v2056, %v2040
        %v2073 = vadd.f32 %v2057, %v2041
        %v2074 = vadd.f32 %v2058, %v2042
        %v2075 = vadd.f32 %v2059, %v2043
        %v2076 = vadd.f32 %v2060, %v2044
        %v2077 = vadd.f32 %v2061, %v2045
        %v2078 = vadd.f32 %v2062, %v2046
        %v2079 = vtanh.pop %v2063
        %v2080 = vtanh.pop %v2064
        %v2081 = vtanh.pop %v2065
        %v2082 = vtanh.pop %v2066
        %v2083 = vtanh.pop %v2067
        %v2084 = vtanh.pop %v2068
        %v2085 = vtanh.pop %v2069
        %v2086 = vtanh.pop %v2070
        %v2087 = vtanh.pop %v2071
        %v2088 = vtanh.pop %v2072
        %v2089 = vtanh.pop %v2073
        %v2090 = vtanh.pop %v2074
        %v2091 = vtanh.pop %v2075
        %v2092 = vtanh.pop %v2076
        %v2093 = vtanh.pop %v2077
        %v2094 = vtanh.pop %v2078
        %v2095 = vld [vmem:[%s10] sm:$0x1]
        %v2097 = vperm.slane %v2095, 0
        %v2099 = vmul.f32 %v2079, %v2097
        %v2100 = vmul.f32 %v2080, %v2097
        %v2101 = vmul.f32 %v2081, %v2097
        %v2102 = vmul.f32 %v2082, %v2097
        %v2103 = vmul.f32 %v2083, %v2097
        %v2104 = vmul.f32 %v2084, %v2097
        %v2105 = vmul.f32 %v2085, %v2097
        %v2106 = vmul.f32 %v2086, %v2097
        %v2107 = vmul.f32 %v2087, %v2097
        %v2108 = vmul.f32 %v2088, %v2097
        %v2109 = vmul.f32 %v2089, %v2097
        %v2110 = vmul.f32 %v2090, %v2097
        %v2111 = vmul.f32 %v2091, %v2097
        %v2112 = vmul.f32 %v2092, %v2097
        %v2113 = vmul.f32 %v2093, %v2097
        %v2114 = vmul.f32 %v2094, %v2097
        %v2115 = vsel %vm921, %v2099, 0.0
        %2116 = vadd.xlane.f32.xlu0 %v2115
        %v2117 = vpop.xlane.xlu0 %2116
        %v2118 = vsel %vm921, %v2100, 0.0
        %2119 = vadd.xlane.f32.xlu0 %v2118
        %v2120 = vpop.xlane.xlu0 %2119
        %v2121 = vsel %vm921, %v2101, 0.0
        %2122 = vadd.xlane.f32.xlu0 %v2121
        %v2123 = vpop.xlane.xlu0 %2122
        %v2124 = vsel %vm921, %v2102, 0.0
        %2125 = vadd.xlane.f32.xlu0 %v2124
        %v2126 = vpop.xlane.xlu0 %2125
        %v2127 = vsel %vm921, %v2103, 0.0
        %2128 = vadd.xlane.f32.xlu0 %v2127
        %v2129 = vpop.xlane.xlu0 %2128
        %v2130 = vsel %vm921, %v2104, 0.0
        %2131 = vadd.xlane.f32.xlu0 %v2130
        %v2132 = vpop.xlane.xlu0 %2131
        %v2133 = vsel %vm921, %v2105, 0.0
        %2134 = vadd.xlane.f32.xlu0 %v2133
        %v2135 = vpop.xlane.xlu0 %2134
        %v2136 = vsel %vm921, %v2106, 0.0
        %2137 = vadd.xlane.f32.xlu0 %v2136
        %v2138 = vpop.xlane.xlu0 %2137
        %v2139 = vsel %vm921, %v2107, 0.0
        %2140 = vadd.xlane.f32.xlu0 %v2139
        %v2141 = vpop.xlane.xlu0 %2140
        %v2142 = vsel %vm921, %v2108, 0.0
        %2143 = vadd.xlane.f32.xlu0 %v2142
        %v2144 = vpop.xlane.xlu0 %2143
        %v2145 = vsel %vm921, %v2109, 0.0
        %2146 = vadd.xlane.f32.xlu0 %v2145
        %v2147 = vpop.xlane.xlu0 %2146
        %v2148 = vsel %vm921, %v2110, 0.0
        %2149 = vadd.xlane.f32.xlu0 %v2148
        %v2150 = vpop.xlane.xlu0 %2149
        %v2151 = vsel %vm921, %v2111, 0.0
        %2152 = vadd.xlane.f32.xlu0 %v2151
        %v2153 = vpop.xlane.xlu0 %2152
        %v2154 = vsel %vm921, %v2112, 0.0
        %2155 = vadd.xlane.f32.xlu0 %v2154
        %v2156 = vpop.xlane.xlu0 %2155
        %v2157 = vsel %vm921, %v2113, 0.0
        %2158 = vadd.xlane.f32.xlu0 %v2157
        %v2159 = vpop.xlane.xlu0 %2158
        %v2160 = vsel %vm921, %v2114, 0.0
        %2161 = vadd.xlane.f32.xlu0 %v2160
        %v2162 = vpop.xlane.xlu0 %2161
        %v2163 = vld [vmem:[#allocation2] sm:$0x1]
        %v2165 = vperm.slane %v2163, 0
        %v2167 = vadd.f32 %v2117, %v2165
        %v2168 = vadd.f32 %v2120, %v2165
        %v2169 = vadd.f32 %v2123, %v2165
        %v2170 = vadd.f32 %v2126, %v2165
        %v2171 = vadd.f32 %v2129, %v2165
        %v2172 = vadd.f32 %v2132, %v2165
        %v2173 = vadd.f32 %v2135, %v2165
        %v2174 = vadd.f32 %v2138, %v2165
        %v2175 = vadd.f32 %v2141, %v2165
        %v2176 = vadd.f32 %v2144, %v2165
        %v2177 = vadd.f32 %v2147, %v2165
        %v2178 = vadd.f32 %v2150, %v2165
        %v2179 = vadd.f32 %v2153, %v2165
        %v2180 = vadd.f32 %v2156, %v2165
        %v2181 = vadd.f32 %v2159, %v2165
        %v2182 = vadd.f32 %v2162, %v2165
        %2184 = vset.pattern.permute.xlu0 0
        %2185 = vperm.xlu0 %2184, %v2167
        %v2186 = vpop.permute.xlu0 %2185
        %2189 = vset.pattern.permute.xlu0 0
        %2190 = vperm.xlu0 %2189, %v2168
        %v2191 = vpop.permute.xlu0 %2190
        %2194 = vset.pattern.permute.xlu0 0
        %2195 = vperm.xlu0 %2194, %v2169
        %v2196 = vpop.permute.xlu0 %2195
        %2199 = vset.pattern.permute.xlu0 0
        %2200 = vperm.xlu0 %2199, %v2170
        %v2201 = vpop.permute.xlu0 %2200
        %2204 = vset.pattern.permute.xlu0 0
        %2205 = vperm.xlu0 %2204, %v2171
        %v2206 = vpop.permute.xlu0 %2205
        %2209 = vset.pattern.permute.xlu0 0
        %2210 = vperm.xlu0 %2209, %v2172
        %v2211 = vpop.permute.xlu0 %2210
        %2214 = vset.pattern.permute.xlu0 0
        %2215 = vperm.xlu0 %2214, %v2173
        %v2216 = vpop.permute.xlu0 %2215
        %2219 = vset.pattern.permute.xlu0 0
        %2220 = vperm.xlu0 %2219, %v2174
        %v2221 = vpop.permute.xlu0 %2220
        %2224 = vset.pattern.permute.xlu0 0
        %2225 = vperm.xlu0 %2224, %v2175
        %v2226 = vpop.permute.xlu0 %2225
        %2229 = vset.pattern.permute.xlu0 0
        %2230 = vperm.xlu0 %2229, %v2176
        %v2231 = vpop.permute.xlu0 %2230
        %2234 = vset.pattern.permute.xlu0 0
        %2235 = vperm.xlu0 %2234, %v2177
        %v2236 = vpop.permute.xlu0 %2235
        %2239 = vset.pattern.permute.xlu0 0
        %2240 = vperm.xlu0 %2239, %v2178
        %v2241 = vpop.permute.xlu0 %2240
        %2244 = vset.pattern.permute.xlu0 0
        %2245 = vperm.xlu0 %2244, %v2179
        %v2246 = vpop.permute.xlu0 %2245
        %2249 = vset.pattern.permute.xlu0 0
        %2250 = vperm.xlu0 %2249, %v2180
        %v2251 = vpop.permute.xlu0 %2250
        %2254 = vset.pattern.permute.xlu0 0
        %2255 = vperm.xlu0 %2254, %v2181
        %v2256 = vpop.permute.xlu0 %2255
        %2259 = vset.pattern.permute.xlu0 0
        %2260 = vperm.xlu0 %2259, %v2182
        %v2261 = vpop.permute.xlu0 %2260
        %v2263 = vmul.f32 %v2186, %v1612
        %v2264 = vmul.f32 %v2191, %v1613
        %v2265 = vmul.f32 %v2196, %v1614
        %v2266 = vmul.f32 %v2201, %v1615
        %v2267 = vmul.f32 %v2206, %v1616
        %v2268 = vmul.f32 %v2211, %v1617
        %v2269 = vmul.f32 %v2216, %v1618
        %v2270 = vmul.f32 %v2221, %v1619
        %v2271 = vmul.f32 %v2226, %v1620
        %v2272 = vmul.f32 %v2231, %v1621
        %v2273 = vmul.f32 %v2236, %v1622
        %v2274 = vmul.f32 %v2241, %v1623
        %v2275 = vmul.f32 %v2246, %v1624
        %v2276 = vmul.f32 %v2251, %v1625
        %v2277 = vmul.f32 %v2256, %v1626
        %v2278 = vmul.f32 %v2261, %v1627
        %2279 = vmatpush.msra.mxu0 %v2278
        %2280 = vmatpush.msra.mxu0 %v2277
        %2281 = vmatpush.msra.mxu0 %v2276
        %2282 = vmatpush.msra.mxu0 %v2275
        %2283 = vmatpush.msra.mxu0 %v2274
        %2284 = vmatpush.msra.mxu0 %v2273
        %2285 = vmatpush.msra.mxu0 %v2272
        %2286 = vmatpush.msra.mxu0 %v2271
        %2287 = vmatpush.msra.mxu0 %v2270
        %2288 = vmatpush.msra.mxu0 %v2269
        %2289 = vmatpush.msra.mxu0 %v2268
        %2290 = vmatpush.msra.mxu0 %v2267
        %2291 = vmatpush.msra.mxu0 %v2266
        %2292 = vmatpush.msra.mxu0 %v2265
        %2293 = vmatpush.msra.mxu0 %v2264
        %2294 = vmatpush.msra.mxu0 %v2263
        %2295 = vmatmul.f32.gmra.mxu0 %v814
        %v2296 = vpop.f32.mrf.mxu0
        %v2297 = vadd.f32 0.0, %v2296
        %2298 = vdwg.mxu0
        %2299 = vset.pattern.permute.xlu0 0
        %2300 = vperm.xlu0 %2299, %v705
        %v2301 = vpop.permute.xlu0 %2300
        %vm2302 = vcmp.ge.s32.totalorder %v725, %v2301
        %v2303 = vsel %vm2302, -inf, %v2297
        %v2304 = vsel %vm1321, %v2303, -inf
        %2305 = vmax.xlane.f32.xlu0 %v2304
        %v2306 = vpop.xlane.xlu0 %2305
        %v2307 = vsub.f32 %v2303, %v2306
        %v2308 = vmul.f32 %v2307, 1.442695
        %v2309 = vpow.pop %v2308
        %v2310 = vsel %vm1321, %v2309, 0.0
        %2311 = vadd.xlane.f32.xlu0 %v2310
        %v2312 = vpop.xlane.xlu0 %2311
        %v2313 = vrcp.pop %v2312
        %v2314 = vmul.f32 %v2312, %v2313
        %v2315 = vsub.f32 1.0, %v2314
        %v2316 = vmul.f32 %v2313, %v2315
        %v2317 = vadd.f32 %v2313, %v2316
        %vm2318 = vweird.f32 %v2312
        %vm2319 = vweird.f32 %v2313
        %vm2320 = vmor %vm2318, %vm2319
        %v2321 = vsel %vm2320, %v2313, %v2317
        %v2322 = vand.u32 2147483647, %v2312
        %vm2323 = vcmp.eq.f32.partialorder %v2322, 8.507059e+37
        %v2324 = vand.u32 %v2312, 2147483648
        %v2325 = vor.u32 1.1754944e-38, %v2324
        %v2326 = vsel %vm2323, %v2325, %v2321
        %v2327 = vmul.f32 %v2309, %v2326
        %v2328 = vadd.s32 %v708, 1
        %v2329 = vadd.s32 %v709, 1
        %vm2330 = vcmp.eq.s32.totalorder %v725, %v2328
        %vm2331 = vcmp.eq.s32.totalorder %v725, %v2329
        %v2332 = vsel %vm2330, 1, 0
        %v2333 = vsel %vm2331, 1, 0
        %v2334 = vcvt.s32.f32 %v2332
        %v2335 = vcvt.s32.f32 %v2333
        %v2337 = vsel %vm1321, %v703, 0
        %2339 = vmatpush.msra.mxu0 0.0
        %2340 = vmatpush.msra.mxu0 0.0
        %2341 = vmatpush.msra.mxu0 0.0
        %2342 = vmatpush.msra.mxu0 0.0
        %2343 = vmatpush.msra.mxu0 0.0
        %2344 = vmatpush.msra.mxu0 0.0
        %2345 = vmatpush.msra.mxu0 0.0
        %2346 = vmatpush.msra.mxu0 0.0
        %2347 = vmatpush.msra.mxu0 0.0
        %2348 = vmatpush.msra.mxu0 0.0
        %2349 = vmatpush.msra.mxu0 0.0
        %2350 = vmatpush.msra.mxu0 0.0
        %2351 = vmatpush.msra.mxu0 0.0
        %2352 = vmatpush.msra.mxu0 0.0
        %2353 = vmatpush.msra.mxu0 %v2335
        %2354 = vmatpush.msra.mxu0 %v2334
        %2355 = vmatmul.f32.gmra.mxu0 %v2337
        %v2356 = vpop.f32.mrf.mxu0
        %v2357 = vadd.f32 0.0, %v2356
        %2358 = vdwg.mxu0
        %2360 = vset.pattern.permute.xlu0 0
        %2361 = vperm.xlu0 %2360, %v706
        %v2362 = vpop.permute.xlu0 %2361
        %v2364 = vmul.f32 %v2362, %v703
        %v2365 = vsub.f32 1.0, %v706
        %2367 = vset.pattern.permute.xlu0 0
        %2368 = vperm.xlu0 %2367, %v2365
        %v2369 = vpop.permute.xlu0 %2368
        %v2371 = vmul.f32 %v2369, %v2357
        %v2372 = vadd.f32 %v2364, %v2371
        %v2373 = vmul.f32 %v2372, %v2327
        %v2374 = vmax.f32 %v2373, 1e-06
        %v2375 = vsel %vm1321, %v2374, 0.0
        %2376 = vadd.xlane.f32.xlu0 %v2375
        %v2377 = vpop.xlane.xlu0 %2376
        %v2378 = vmax.f32 %v2377, 1e-12
        %v2379 = vrcp.pop %v2378
        %v2380 = vmul.f32 %v2378, %v2379
        %v2381 = vsub.f32 1.0, %v2380
        %v2382 = vmul.f32 %v2379, %v2381
        %v2383 = vadd.f32 %v2379, %v2382
        %vm2384 = vweird.f32 %v2378
        %vm2385 = vweird.f32 %v2379
        %vm2386 = vmor %vm2384, %vm2385
        %v2387 = vsel %vm2386, %v2379, %v2383
        %v2388 = vand.u32 2147483647, %v2378
        %vm2389 = vcmp.eq.f32.partialorder %v2388, 8.507059e+37
        %v2390 = vand.u32 %v2378, 2147483648
        %v2391 = vor.u32 1.1754944e-38, %v2390
        %v2392 = vsel %vm2389, %v2391, %v2387
        %v2393 = vmul.f32 %v2374, %v2392
        %2394 = vmatpush.msra.mxu0 0.0
        %2395 = vmatpush.msra.mxu0 0.0
        %2396 = vmatpush.msra.mxu0 0.0
        %2397 = vmatpush.msra.mxu0 0.0
        %2398 = vmatpush.msra.mxu0 0.0
        %2399 = vmatpush.msra.mxu0 0.0
        %2400 = vmatpush.msra.mxu0 0.0
        %2401 = vmatpush.msra.mxu0 0.0
        %2402 = vmatpush.msra.mxu0 0.0
        %2403 = vmatpush.msra.mxu0 0.0
        %2404 = vmatpush.msra.mxu0 0.0
        %2405 = vmatpush.msra.mxu0 0.0
        %2406 = vmatpush.msra.mxu0 0.0
        %2407 = vmatpush.msra.mxu0 0.0
        %2408 = vmatpush.msra.mxu0 0.0
        %2409 = vmatpush.msra.mxu0 %v2393
        %2410 = vmatmul.f32.gmra.mxu0 %v1063
        %v2411 = vpop.f32.mrf.mxu0
        %v2412 = vadd.f32 0.0, %v2411
        %2413 = vmatmul.f32.gmra.mxu0 %v1066
        %v2414 = vpop.f32.mrf.mxu0
        %v2415 = vadd.f32 0.0, %v2414
        %2416 = vmatmul.f32.gmra.mxu0 %v1069
        %v2417 = vpop.f32.mrf.mxu0
        %v2418 = vadd.f32 0.0, %v2417
        %2419 = vmatmul.f32.gmra.mxu0 %v1072
        %v2420 = vpop.f32.mrf.mxu0
        %v2421 = vadd.f32 0.0, %v2420
        %2422 = vmatmul.f32.gmra.mxu0 %v1075
        %v2423 = vpop.f32.mrf.mxu0
        %v2424 = vadd.f32 0.0, %v2423
        %2425 = vmatmul.f32.gmra.mxu0 %v1078
        %v2426 = vpop.f32.mrf.mxu0
        %v2427 = vadd.f32 0.0, %v2426
        %2428 = vmatmul.f32.gmra.mxu0 %v1081
        %v2429 = vpop.f32.mrf.mxu0
        %v2430 = vadd.f32 0.0, %v2429
        %2431 = vmatmul.f32.gmra.mxu0 %v1084
        %v2432 = vpop.f32.mrf.mxu0
        %v2433 = vadd.f32 0.0, %v2432
        %2434 = vmatmul.f32.gmra.mxu0 %v1087
        %v2435 = vpop.f32.mrf.mxu0
        %v2436 = vadd.f32 0.0, %v2435
        %2437 = vmatmul.f32.gmra.mxu0 %v1090
        %v2438 = vpop.f32.mrf.mxu0
        %v2439 = vadd.f32 0.0, %v2438
        %2440 = vmatmul.f32.gmra.mxu0 %v1093
        %v2441 = vpop.f32.mrf.mxu0
        %v2442 = vadd.f32 0.0, %v2441
        %2443 = vmatmul.f32.gmra.mxu0 %v1096
        %v2444 = vpop.f32.mrf.mxu0
        %v2445 = vadd.f32 0.0, %v2444
        %2446 = vmatmul.f32.gmra.mxu0 %v1099
        %v2447 = vpop.f32.mrf.mxu0
        %v2448 = vadd.f32 0.0, %v2447
        %2449 = vmatmul.f32.gmra.mxu0 %v1102
        %v2450 = vpop.f32.mrf.mxu0
        %v2451 = vadd.f32 0.0, %v2450
        %2452 = vmatmul.f32.gmra.mxu0 %v1105
        %v2453 = vpop.f32.mrf.mxu0
        %v2454 = vadd.f32 0.0, %v2453
        %2455 = vmatmul.f32.gmra.mxu0 %v1108
        %v2456 = vpop.f32.mrf.mxu0
        %v2457 = vadd.f32 0.0, %v2456
        %2458 = vdwg.mxu0
        %v2459 = vmul.f32 %v2412, %v1612
        %v2460 = vmul.f32 %v2415, %v1613
        %v2461 = vmul.f32 %v2418, %v1614
        %v2462 = vmul.f32 %v2421, %v1615
        %v2463 = vmul.f32 %v2424, %v1616
        %v2464 = vmul.f32 %v2427, %v1617
        %v2465 = vmul.f32 %v2430, %v1618
        %v2466 = vmul.f32 %v2433, %v1619
        %v2467 = vmul.f32 %v2436, %v1620
        %v2468 = vmul.f32 %v2439, %v1621
        %v2469 = vmul.f32 %v2442, %v1622
        %v2470 = vmul.f32 %v2445, %v1623
        %v2471 = vmul.f32 %v2448, %v1624
        %v2472 = vmul.f32 %v2451, %v1625
        %v2473 = vmul.f32 %v2454, %v1626
        %v2474 = vmul.f32 %v2457, %v1627
        %v2475 = vsel %vm1321, %v2459, 0.0
        %2476 = vadd.xlane.f32.xlu0 %v2475
        %v2477 = vpop.xlane.xlu0 %2476
        %v2478 = vsel %vm1321, %v2460, 0.0
        %2479 = vadd.xlane.f32.xlu0 %v2478
        %v2480 = vpop.xlane.xlu0 %2479
        %v2481 = vsel %vm1321, %v2461, 0.0
        %2482 = vadd.xlane.f32.xlu0 %v2481
        %v2483 = vpop.xlane.xlu0 %2482
        %v2484 = vsel %vm1321, %v2462, 0.0
        %2485 = vadd.xlane.f32.xlu0 %v2484
        %v2486 = vpop.xlane.xlu0 %2485
        %v2487 = vsel %vm1321, %v2463, 0.0
        %2488 = vadd.xlane.f32.xlu0 %v2487
        %v2489 = vpop.xlane.xlu0 %2488
        %v2490 = vsel %vm1321, %v2464, 0.0
        %2491 = vadd.xlane.f32.xlu0 %v2490
        %v2492 = vpop.xlane.xlu0 %2491
        %v2493 = vsel %vm1321, %v2465, 0.0
        %2494 = vadd.xlane.f32.xlu0 %v2493
        %v2495 = vpop.xlane.xlu0 %2494
        %v2496 = vsel %vm1321, %v2466, 0.0
        %2497 = vadd.xlane.f32.xlu0 %v2496
        %v2498 = vpop.xlane.xlu0 %2497
        %v2499 = vsel %vm1321, %v2467, 0.0
        %2500 = vadd.xlane.f32.xlu0 %v2499
        %v2501 = vpop.xlane.xlu0 %2500
        %v2502 = vsel %vm1321, %v2468, 0.0
        %2503 = vadd.xlane.f32.xlu0 %v2502
        %v2504 = vpop.xlane.xlu0 %2503
        %v2505 = vsel %vm1321, %v2469, 0.0
        %2506 = vadd.xlane.f32.xlu0 %v2505
        %v2507 = vpop.xlane.xlu0 %2506
        %v2508 = vsel %vm1321, %v2470, 0.0
        %2509 = vadd.xlane.f32.xlu0 %v2508
        %v2510 = vpop.xlane.xlu0 %2509
        %v2511 = vsel %vm1321, %v2471, 0.0
        %2512 = vadd.xlane.f32.xlu0 %v2511
        %v2513 = vpop.xlane.xlu0 %2512
        %v2514 = vsel %vm1321, %v2472, 0.0
        %2515 = vadd.xlane.f32.xlu0 %v2514
        %v2516 = vpop.xlane.xlu0 %2515
        %v2517 = vsel %vm1321, %v2473, 0.0
        %2518 = vadd.xlane.f32.xlu0 %v2517
        %v2519 = vpop.xlane.xlu0 %2518
        %v2520 = vsel %vm1321, %v2474, 0.0
        %2521 = vadd.xlane.f32.xlu0 %v2520
        %v2522 = vpop.xlane.xlu0 %2521
        %v2523 = vmul.f32 %v686, %v2477
        %v2524 = vmul.f32 %v687, %v2480
        %v2525 = vmul.f32 %v688, %v2483
        %v2526 = vmul.f32 %v689, %v2486
        %v2527 = vmul.f32 %v690, %v2489
        %v2528 = vmul.f32 %v691, %v2492
        %v2529 = vmul.f32 %v692, %v2495
        %v2530 = vmul.f32 %v693, %v2498
        %v2531 = vmul.f32 %v694, %v2501
        %v2532 = vmul.f32 %v695, %v2504
        %v2533 = vmul.f32 %v696, %v2507
        %v2534 = vmul.f32 %v697, %v2510
        %v2535 = vmul.f32 %v698, %v2513
        %v2536 = vmul.f32 %v699, %v2516
        %v2537 = vmul.f32 %v700, %v2519
        %v2538 = vmul.f32 %v701, %v2522
        %2539 = vmatpush.msra.mxu0 %v2538
        %2540 = vmatpush.msra.mxu0 %v2537
        %2541 = vmatpush.msra.mxu0 %v2536
        %2542 = vmatpush.msra.mxu0 %v2535
        %2543 = vmatpush.msra.mxu0 %v2534
        %2544 = vmatpush.msra.mxu0 %v2533
        %2545 = vmatpush.msra.mxu0 %v2532
        %2546 = vmatpush.msra.mxu0 %v2531
        %2547 = vmatpush.msra.mxu0 %v2530
        %2548 = vmatpush.msra.mxu0 %v2529
        %2549 = vmatpush.msra.mxu0 %v2528
        %2550 = vmatpush.msra.mxu0 %v2527
        %2551 = vmatpush.msra.mxu0 %v2526
        %2552 = vmatpush.msra.mxu0 %v2525
        %2553 = vmatpush.msra.mxu0 %v2524
        %2554 = vmatpush.msra.mxu0 %v2523
        %2555 = vmatmul.f32.gmra.mxu0 %v814
        %v2556 = vpop.f32.mrf.mxu0
        %v2557 = vadd.f32 0.0, %v2556
        %2558 = vdwg.mxu0
        %v2559 = vld [vmem:[%s12] sm:$0x1]
        %v2561 = vperm.slane %v2559, 0
        %v2563 = vmul.f32 %v2557, %v2561
        %v2564 = vsel %vm921, %v2563, 0.0
        %2565 = vadd.xlane.f32.xlu0 %v2564
        %v2566 = vpop.xlane.xlu0 %2565
        %v2567 = vld [vmem:[%s13] sm:$0x1]
        %v2569 = vperm.slane %v2567, 0
        %v2571 = vmul.f32 %v704, %v2569
        %v2572 = vsel %vm1321, %v2571, 0.0
        %2573 = vadd.xlane.f32.xlu0 %v2572
        %v2574 = vpop.xlane.xlu0 %2573
        %v2575 = vadd.f32 %v2566, %v2574
        %v2576 = vld [vmem:[%s14] sm:$0x1]
        %v2578 = vperm.slane %v2576, 0
        %v2580 = vmul.f32 %v702, %v2578
        %v2581 = vsel %vm921, %v2580, 0.0
        %2582 = vadd.xlane.f32.xlu0 %v2581
        %v2583 = vpop.xlane.xlu0 %2582
        %v2584 = vadd.f32 %v2575, %v2583
        %v2585 = vld [vmem:[#allocation3] sm:$0x1]
        %v2587 = vperm.slane %v2585, 0
        %v2589 = vadd.f32 %v2584, %v2587
        %v2590 = vxor.u32 %v2589, 2147483648
        %v2591 = vmul.f32 %v2590, 1.442695
        %v2592 = vpow.pop %v2591
        %v2593 = vadd.f32 %v2592, 1.0
        %v2594 = vrcp.pop %v2593
        %v2595 = vmul.f32 %v2593, %v2594
        %v2596 = vsub.f32 1.0, %v2595
        %v2597 = vmul.f32 %v2594, %v2596
        %v2598 = vadd.f32 %v2594, %v2597
        %vm2599 = vweird.f32 %v2593
        %vm2600 = vweird.f32 %v2594
        %vm2601 = vmor %vm2599, %vm2600
        %v2602 = vsel %vm2601, %v2594, %v2598
        %v2603 = vand.u32 2147483647, %v2593
        %vm2604 = vcmp.eq.f32.partialorder %v2603, 8.507059e+37
        %v2605 = vand.u32 %v2593, 2147483648
        %v2606 = vor.u32 1.1754944e-38, %v2605
        %v2607 = vsel %vm2604, %v2606, %v2602
        %v2608 = vmul.f32 1.0, %v2607
        %2609 = vst.msk [vmem:[%s642] sm:$0xff] %vm921, %v2557
        %2610 = vst.msk [vmem:[%s649] sm:$0xff] %vm1321, %v2393
        %vm2611 = vcmask 7168
        %2612 = vst.msk [vmem:[%s685] sm:$0xff] %vm2611, %v2608
        %s2613 = sand.u32 %s414, 1
        %s2614 = scalar_lea.sflag [#allocation5], %s2613
        %s2615 = sand.u32 %s414, 1
        %s2616 = smul.addr %s2615, 8
        %s2617 = scalar_lea.vmem [#allocation4], %s2616
        %s2618 = sand.u32 %s440, 1
        %s2619 = scalar_lea.sflag [#allocation7], %s2618
        %s2620 = sand.u32 %s440, 1
        %s2621 = smul.addr %s2620, 8
        %s2622 = scalar_lea.vmem [#allocation6], %s2621
        %p2623 = scmp.lt.s32.totalorder %s40, 1
        %s2624 = scalar_select %p2623, %s40, 1
        %s2625 = smul.addr %s2624, 8
        %s2626 = scalar_lea.vmem %s18, %s2625
        // Predicated region
        $region85: #{tpu_custom_call.1} parent=83 // pred_check
          %p2627 = pneg %p424
        $region86: #{tpu_custom_call.1} parent=83 // pred_check_branch
          %2629 = sbr.rel (%p2627) target = $region88
        $region87: #{tpu_custom_call.1} parent=83 // pred_region
          %2631 = vsyncadd %s2614, 0
          %s2632 = smul.addr %s40, 8
          %s2633 = scalar_lea.hbm %s16, %s2632
          %s2635 = sshll.u32 %s2617, 4
          %s2636 = int_to_ptr.vmem [resolvable:$true] %s2635
          %s2637 = sshll.u32 %s2633, 4
          %s2638 = int_to_ptr.hbm [resolvable:$true] %s2637
          %2640 = dma.vmem_to_hbm [thread:$0]  %s2636, 128, %s2638, %s2614
        $region88: #{tpu_custom_call.1} parent=83 // pred_fallthru
          _
        // Predicated region
        $region89: #{tpu_custom_call.1} parent=83 // pred_check
          %p2641 = pneg %p450
        $region90: #{tpu_custom_call.1} parent=83 // pred_check_branch
          %2643 = sbr.rel (%p2641) target = $region92
        $region91: #{tpu_custom_call.1} parent=83 // pred_region
          %2645 = vsyncadd %s2619, 0
          %s2646 = smul.addr %s40, 8
          %s2647 = scalar_lea.hbm %s17, %s2646
          %s2649 = sshll.u32 %s2622, 4
          %s2650 = int_to_ptr.vmem [resolvable:$true] %s2649
          %s2651 = sshll.u32 %s2647, 4
          %s2652 = int_to_ptr.hbm [resolvable:$true] %s2651
          %2654 = dma.vmem_to_hbm [thread:$0]  %s2650, 128, %s2652, %s2619
        $region92: #{tpu_custom_call.1} parent=83 // pred_fallthru
          _
        // Predicated region
        $region93: #{tpu_custom_call.1} parent=83 // pred_check
          %p2655 = pneg %p476
        $region94: #{tpu_custom_call.1} parent=83 // pred_check_branch
          %2657 = sbr.rel (%p2655) target = $region96
        $region95: #{tpu_custom_call.1} parent=83 // pred_region
          _
        $region96: #{tpu_custom_call.1} parent=83 // pred_fallthru
          _
      $region84: #{tpu_custom_call.1} parent=5 // pred_fallthru
        _
      %p2658 = scmp.le.s32.totalorder 2, %s35
      // Predicated region
      $region97: #{tpu_custom_call.1} parent=5 // pred_check
        %p2659 = pneg %p2658
      $region98: #{tpu_custom_call.1} parent=5 // pred_check_branch
        %2661 = sbr.rel (%p2659) target = $region100
      $region99: #{tpu_custom_call.1} parent=5 // pred_region
        %s2662 = ssub.s32 %s35, 2
        // Predicated region
        $region101: #{tpu_custom_call.1} parent=99 // pred_check
          %p2663 = pneg %p430
        $region102: #{tpu_custom_call.1} parent=99 // pred_check_branch
          %2665 = sbr.rel (%p2663) target = $region104
        $region103: #{tpu_custom_call.1} parent=99 // pred_region
          %s2666 = sand.u32 %s415, 1
          %s2667 = scalar_lea.sflag [#allocation5], %s2666
          %s2668 = sand.u32 %s415, 1
          %s2669 = smul.addr %s2668, 8
          %s2670 = scalar_lea.vmem [#allocation4], %s2669
          %2672 = dma.done %s2667, 128
        $region104: #{tpu_custom_call.1} parent=99 // pred_fallthru
          _
        // Predicated region
        $region105: #{tpu_custom_call.1} parent=99 // pred_check
          %p2673 = pneg %p456
        $region106: #{tpu_custom_call.1} parent=99 // pred_check_branch
          %2675 = sbr.rel (%p2673) target = $region108
        $region107: #{tpu_custom_call.1} parent=99 // pred_region
          %s2676 = sand.u32 %s441, 1
          %s2677 = scalar_lea.sflag [#allocation7], %s2676
          %s2678 = sand.u32 %s441, 1
          %s2679 = smul.addr %s2678, 8
          %s2680 = scalar_lea.vmem [#allocation6], %s2679
          %2682 = dma.done %s2677, 128
        $region108: #{tpu_custom_call.1} parent=99 // pred_fallthru
          _
        // Predicated region
        $region109: #{tpu_custom_call.1} parent=99 // pred_check
          %p2683 = pneg %p482
        $region110: #{tpu_custom_call.1} parent=99 // pred_check_branch
          %2685 = sbr.rel (%p2683) target = $region112
        $region111: #{tpu_custom_call.1} parent=99 // pred_region
          %p2686 = scmp.lt.s32.totalorder %s41, 1
          %s2687 = scalar_select %p2686, %s41, 1
          %s2688 = smul.addr %s2687, 8
          %s2689 = scalar_lea.vmem %s18, %s2688
        $region112: #{tpu_custom_call.1} parent=99 // pred_fallthru
          _
      $region100: #{tpu_custom_call.1} parent=5 // pred_fallthru
        _
    $region6: #{tpu_custom_call.1} parent=1 // loop_footer
      %s39 = sadd.s32 1, %s35
    $region7: #{tpu_custom_call.1} parent=1 // loop_footer_branch
      %34 = sbr.rel target = $region3
    $region8: #{tpu_custom_call.1} parent=1 // loop_exit
      _
    %2690 = vsyncpa [#allocation5], 1
    %s2691 = scalar_lea.sflag [#allocation5], 1
    %2692 = vsyncpa %s2691, 1
    %2693 = vsyncpa [#allocation7], 1
    %s2694 = scalar_lea.sflag [#allocation7], 1
    %2695 = vsyncpa %s2694, 1

</llo_original>
